<compile_context>
chip_gen: v7x
topology: tpu7x:2x2x1
jax: 0.10.0
libtpu: 0.0.40
codegen_flags: <defaults>
</compile_context>

<pallas_src>
import math
from functools import partial

import jax
import jax.numpy as jnp
from jax.experimental import pallas as pl
from jax.experimental.pallas import tpu as pltpu


# -----------------------------------------------------------------------------
# small helpers
# -----------------------------------------------------------------------------

def _row_tile(n):
    """Largest row tile (multiple of 8, <=512) dividing n with >=2 grid steps."""
    for t in (512, 256, 128, 64, 32, 16, 8):
        if n % t == 0 and n // t >= 2:
            return t
    for t in (512, 256, 128, 64, 32, 16, 8):
        if n % t == 0:
            return t
    return n


def _col_tile(n):
    """Tile for the FFN hidden dim F (multiple of 128 if possible, else full)."""
    for t in (2048, 1024, 512, 256, 128):
        if n % t == 0:
            return t
    return n


def _vmem_limit(blocks):
    """Scoped-VMEM request sized from per-step resident blocks (double-buffered)
    plus headroom, clamped to a range safe on v5e/v6e/v7x."""
    need = sum(math.prod(s) * jnp.dtype(d).itemsize for s, d in blocks)
    return int(min(64 << 20, max(32 << 20, 2 * need + (4 << 20))))


# -----------------------------------------------------------------------------
# Pallas kernels
# -----------------------------------------------------------------------------

def _linear_kernel(x_ref, w_ref, b_ref, o_ref):
    # y = x @ w + b ; w is pre-transposed (Din, Dout) and stored bf16.
    y = jnp.dot(x_ref[...].astype(jnp.bfloat16), w_ref[...],
                preferred_element_type=jnp.float32)
    o_ref[...] = (y + b_ref[...]).astype(o_ref.dtype)


def linear(x, w, b):
    N, Din = x.shape
    Dout = w.shape[1]
    tm = _row_tile(N)
    vmem = _vmem_limit([((tm, Din), x.dtype), ((Din, Dout), w.dtype),
                        ((1, Dout), b.dtype), ((tm, Dout), x.dtype)])
    return pl.pallas_call(
        _linear_kernel,
        out_shape=jax.ShapeDtypeStruct((N, Dout), x.dtype),
        grid=(N // tm,),
        in_specs=[
            pl.BlockSpec((tm, Din), lambda i: (i, 0)),
            pl.BlockSpec((Din, Dout), lambda i: (0, 0)),
            pl.BlockSpec((1, Dout), lambda i: (0, 0)),
        ],
        out_specs=pl.BlockSpec((tm, Dout), lambda i: (i, 0)),
        compiler_params=pltpu.CompilerParams(
            dimension_semantics=("parallel",), vmem_limit_bytes=vmem),
    )(x, w, b)


def _linear_res_ln_kernel(x_ref, w_ref, b_ref, r_ref, g_ref, bt_ref, o_ref, *, eps):
    # LN( x @ w + b + residual ) -- out-projection + residual + LayerNorm fused.
    y = jnp.dot(x_ref[...].astype(jnp.bfloat16), w_ref[...],
                preferred_element_type=jnp.float32)
    y = y + b_ref[...] + r_ref[...].astype(jnp.float32)
    mu = jnp.mean(y, axis=-1, keepdims=True)
    var = jnp.mean((y - mu) ** 2, axis=-1, keepdims=True)
    yn = (y - mu) * jax.lax.rsqrt(var + eps)
    o_ref[...] = (yn * g_ref[...] + bt_ref[...]).astype(o_ref.dtype)


def linear_res_ln(x, w, b, residual, gamma, beta, eps=1e-5):
    N, Din = x.shape
    Dout = w.shape[1]
    tm = _row_tile(N)
    vmem = _vmem_limit([((tm, Din), x.dtype), ((Din, Dout), w.dtype),
                        ((tm, Dout), residual.dtype), ((tm, Dout), x.dtype),
                        ((1, Dout), jnp.float32)])
    return pl.pallas_call(
        partial(_linear_res_ln_kernel, eps=eps),
        out_shape=jax.ShapeDtypeStruct((N, Dout), x.dtype),
        grid=(N // tm,),
        in_specs=[
            pl.BlockSpec((tm, Din), lambda i: (i, 0)),
            pl.BlockSpec((Din, Dout), lambda i: (0, 0)),
            pl.BlockSpec((1, Dout), lambda i: (0, 0)),
            pl.BlockSpec((tm, Dout), lambda i: (i, 0)),
            pl.BlockSpec((1, Dout), lambda i: (0, 0)),
            pl.BlockSpec((1, Dout), lambda i: (0, 0)),
        ],
        out_specs=pl.BlockSpec((tm, Dout), lambda i: (i, 0)),
        compiler_params=pltpu.CompilerParams(
            dimension_semantics=("parallel",), vmem_limit_bytes=vmem),
    )(x, w, b, residual, gamma, beta)


def _ffn_res_ln_kernel(x_ref, w1_ref, b1_ref, w2_ref, b2_ref, g_ref, bt_ref,
                       *rest, eps, has_final):
    # LN( x + W2 relu(W1 x + b1) + b2 ), F-tiled with a resident f32 accumulator.
    # If has_final: apply the stack's final LayerNorm too (fused on last layer).
    if has_final:
        g2_ref, bt2_ref, o_ref, acc_ref = rest
    else:
        o_ref, acc_ref = rest

    f = pl.program_id(1)

    @pl.when(f == 0)
    def _():
        acc_ref[...] = jnp.zeros_like(acc_ref)

    xb = x_ref[...].astype(jnp.bfloat16)
    h = jnp.dot(xb, w1_ref[...], preferred_element_type=jnp.float32)
    h = jnp.maximum(h + b1_ref[...], 0.0)
    acc_ref[...] += jnp.dot(h.astype(jnp.bfloat16), w2_ref[...],
                            preferred_element_type=jnp.float32)

    @pl.when(f == pl.num_programs(1) - 1)
    def _():
        y = acc_ref[...] + b2_ref[...] + x_ref[...].astype(jnp.float32)
        mu = jnp.mean(y, axis=-1, keepdims=True)
        var = jnp.mean((y - mu) ** 2, axis=-1, keepdims=True)
        y = (y - mu) * jax.lax.rsqrt(var + eps) * g_ref[...] + bt_ref[...]
        if has_final:
            mu2 = jnp.mean(y, axis=-1, keepdims=True)
            var2 = jnp.mean((y - mu2) ** 2, axis=-1, keepdims=True)
            y = (y - mu2) * jax.lax.rsqrt(var2 + eps) * g2_ref[...] + bt2_ref[...]
        o_ref[...] = y.astype(o_ref.dtype)


def ffn_res_ln(x, w1, b1, w2, b2, gamma, beta, final_ln=None, eps=1e-5):
    N, D = x.shape
    F = w1.shape[1]
    tm = _row_tile(N)
    tf = _col_tile(F)
    has_final = final_ln is not None

    in_specs = [
        pl.BlockSpec((tm, D), lambda i, f: (i, 0)),
        pl.BlockSpec((D, tf), lambda i, f: (0, f)),
        pl.BlockSpec((1, tf), lambda i, f: (0, f)),
        pl.BlockSpec((tf, D), lambda i, f: (f, 0)),
        pl.BlockSpec((1, D), lambda i, f: (0, 0)),
        pl.BlockSpec((1, D), lambda i, f: (0, 0)),
        pl.BlockSpec((1, D), lambda i, f: (0, 0)),
    ]
    args = [x, w1, b1, w2, b2, gamma, beta]
    if has_final:
        in_specs += [pl.BlockSpec((1, D), lambda i, f: (0, 0)),
                     pl.BlockSpec((1, D), lambda i, f: (0, 0))]
        args += [final_ln[0], final_ln[1]]

    vmem = _vmem_limit([((tm, D), x.dtype), ((D, tf), w1.dtype),
                        ((tf, D), w2.dtype), ((1, tf), jnp.float32),
                        ((tm, tf), jnp.float32),        # relu intermediate
                        ((tm, D), jnp.float32),          # accumulator
                        ((tm, D), x.dtype)])

    return pl.pallas_call(
        partial(_ffn_res_ln_kernel, eps=eps, has_final=has_final),
        out_shape=jax.ShapeDtypeStruct((N, D), x.dtype),
        grid=(N // tm, F // tf),
        in_specs=in_specs,
        out_specs=pl.BlockSpec((tm, D), lambda i, f: (i, 0)),
        scratch_shapes=[pltpu.VMEM((tm, D), jnp.float32)],
        compiler_params=pltpu.CompilerParams(
            dimension_semantics=("parallel", "arbitrary"),
            vmem_limit_bytes=vmem),
    )(*args)


def _attend_heads(q2d, k2d_fn, v2d_fn, nhead, dh, scale, out_dtype):
    """Per-head attention on 2-D value slabs already resident in vregs."""
    heads = []
    for h in range(nhead):
        q = q2d[:, h * dh:(h + 1) * dh].astype(jnp.bfloat16)
        k = k2d_fn(h).astype(jnp.bfloat16)
        v = v2d_fn(h).astype(jnp.bfloat16)
        # s = q @ k.T (contraction expressed via dot_general, no explicit .T)
        s = jax.lax.dot_general(q, k, (((1,), (1,)), ((), ())),
                                preferred_element_type=jnp.float32) * scale
        m = jnp.max(s, axis=-1, keepdims=True)
        p = jnp.exp(s - m)
        p = p / jnp.sum(p, axis=-1, keepdims=True)   # exact softmax (parity)
        heads.append(jnp.dot(p.astype(jnp.bfloat16), v,
                             preferred_element_type=jnp.float32))
    return jnp.concatenate(heads, axis=-1).astype(out_dtype)


def _self_attn_kernel(qkv_ref, o_ref, *, nhead, dh, scale):
    D = nhead * dh
    x = qkv_ref[0]                                    # (T, 3D), f32
    out = _attend_heads(
        x[:, :D],
        lambda h: x[:, D + h * dh:D + (h + 1) * dh],
        lambda h: x[:, 2 * D + h * dh:2 * D + (h + 1) * dh],
        nhead, dh, scale, o_ref.dtype)
    o_ref[0] = out                                    # lane-dense (T, D) store


def _cross_attn_kernel(q_ref, kv_ref, o_ref, *, nhead, dh, scale):
    D = nhead * dh
    q2d = q_ref[0]                                    # (Tq, D)
    kv = kv_ref[0]                                    # (Tk, 2D)
    out = _attend_heads(
        q2d,
        lambda h: kv[:, h * dh:(h + 1) * dh],
        lambda h: kv[:, D + h * dh:D + (h + 1) * dh],
        nhead, dh, scale, o_ref.dtype)
    o_ref[0] = out


def self_attention(qkv, B, T, D, nhead):
    """qkv: (B*T, 3D) fused projection output -> (B*T, D) attention output."""
    dh = D // nhead
    qkv3 = qkv.reshape(B, T, 3 * D)                   # free reshape (batch-first)
    vmem = _vmem_limit([((1, T, 3 * D), qkv.dtype), ((1, T, D), qkv.dtype),
                        ((nhead, T, T), jnp.float32)])
    out = pl.pallas_call(
        partial(_self_attn_kernel, nhead=nhead, dh=dh, scale=1.0 / math.sqrt(dh)),
        out_shape=jax.ShapeDtypeStruct((B, T, D), qkv.dtype),
        grid=(B,),
        in_specs=[pl.BlockSpec((1, T, 3 * D), lambda b: (b, 0, 0))],
        out_specs=pl.BlockSpec((1, T, D), lambda b: (b, 0, 0)),
        compiler_params=pltpu.CompilerParams(
            dimension_semantics=("parallel",), vmem_limit_bytes=vmem),
    )(qkv3)
    return out.reshape(B * T, D)


def cross_attention(q, kv, B, Tq, Tk, D, nhead):
    """q: (B*Tq, D), kv: (B*Tk, 2D) fused projection -> (B*Tq, D)."""
    dh = D // nhead
    q3 = q.reshape(B, Tq, D)
    kv3 = kv.reshape(B, Tk, 2 * D)
    vmem = _vmem_limit([((1, Tq, D), q.dtype), ((1, Tk, 2 * D), kv.dtype),
                        ((1, Tq, D), q.dtype), ((nhead, Tq, Tk), jnp.float32)])
    out = pl.pallas_call(
        partial(_cross_attn_kernel, nhead=nhead, dh=dh, scale=1.0 / math.sqrt(dh)),
        out_shape=jax.ShapeDtypeStruct((B, Tq, D), q.dtype),
        grid=(B,),
        in_specs=[pl.BlockSpec((1, Tq, D), lambda b: (b, 0, 0)),
                  pl.BlockSpec((1, Tk, 2 * D), lambda b: (b, 0, 0))],
        out_specs=pl.BlockSpec((1, Tq, D), lambda b: (b, 0, 0)),
        compiler_params=pltpu.CompilerParams(
            dimension_semantics=("parallel",), vmem_limit_bytes=vmem),
    )(q3, kv3)
    return out.reshape(B * Tq, D)


# -----------------------------------------------------------------------------
# Decoder layer + decoder stack (post-norm, eval mode, masks=None)
# -----------------------------------------------------------------------------

def _self_attn_block(x2d, p, B, T, D, nhead, norm_g, norm_b):
    qkv = linear(x2d, p["in_proj_w_t"], p["in_proj_b"])          # fused QKV (B*T, 3D)
    o = self_attention(qkv, B, T, D, nhead)                      # (B*T, D)
    return linear_res_ln(o, p["out_w_t"], p["out_b"], x2d, norm_g, norm_b)


def _cross_attn_block(x2d, m2d, p, B, Tq, Tk, D, nhead, norm_g, norm_b):
    q = linear(x2d, p["q_w_t"], p["q_b"])                        # (B*Tq, D)
    kv = linear(m2d, p["kv_w_t"], p["kv_b"])                     # fused KV (B*Tk, 2D)
    o = cross_attention(q, kv, B, Tq, Tk, D, nhead)
    return linear_res_ln(o, p["out_w_t"], p["out_b"], x2d, norm_g, norm_b)


def decoder_layer(x2d, m2d, p, B, T, Tm, D, nhead, final_norm=None):
    x2d = _self_attn_block(x2d, p["self_attn"], B, T, D, nhead,
                           p["norm1_g"], p["norm1_b"])
    x2d = _cross_attn_block(x2d, m2d, p["cross_attn"], B, T, Tm, D, nhead,
                            p["norm2_g"], p["norm2_b"])
    x2d = ffn_res_ln(x2d, p["w1_t"], p["b1"], p["w2_t"], p["b2"],
                     p["norm3_g"], p["norm3_b"], final_ln=final_norm)
    return x2d


def transformer_decoder(tgt, memory, params, nhead):
    # TODO(synk): masks and return_weights=True path are not implemented.
    T, B, D = tgt.shape
    Tm = memory.shape[0]
    # batch-first internal layout: one transpose in, one transpose out
    x2d = jnp.transpose(tgt, (1, 0, 2)).reshape(B * T, D)
    m2d = jnp.transpose(memory, (1, 0, 2)).reshape(B * Tm, D)
    n = len(params["layers"])
    for i, lp in enumerate(params["layers"]):
        fn = params["final_norm"] if (i == n - 1) else None      # fuse final LN
        x2d = decoder_layer(x2d, m2d, lp, B, T, Tm, D, nhead, final_norm=fn)
    return jnp.transpose(x2d.reshape(B, T, D), (1, 0, 2))


# -----------------------------------------------------------------------------
# Parameters: init in PyTorch layout, then one-time prep (transpose/split/bf16)
# -----------------------------------------------------------------------------

def init_params_pt(key, num_layers, d_model, nhead, dim_ff):
    """Deterministic parameters in PyTorch nn.TransformerDecoderLayer layout."""
    def dense(k, shape, scale):
        return jax.random.normal(k, shape, jnp.float32) * scale

    layers = []
    for _ in range(num_layers):
        keys = jax.random.split(key, 7)
        key = keys[0]
        s_d = 1.0 / math.sqrt(d_model)
        s_f = 1.0 / math.sqrt(dim_ff)
        layers.append({
            "self_attn": {
                "in_proj_weight": dense(keys[1], (3 * d_model, d_model), s_d),
                "in_proj_bias": jnp.zeros((3 * d_model,), jnp.float32),
                "out_proj_weight": dense(keys[2], (d_model, d_model), s_d),
                "out_proj_bias": jnp.zeros((d_model,), jnp.float32),
            },
            "cross_attn": {
                "in_proj_weight": dense(keys[3], (3 * d_model, d_model), s_d),
                "in_proj_bias": jnp.zeros((3 * d_model,), jnp.float32),
                "out_proj_weight": dense(keys[4], (d_model, d_model), s_d),
                "out_proj_bias": jnp.zeros((d_model,), jnp.float32),
            },
            "linear1_weight": dense(keys[5], (dim_ff, d_model), s_d),
            "linear1_bias": jnp.zeros((dim_ff,), jnp.float32),
            "linear2_weight": dense(keys[6], (d_model, dim_ff), s_f),
            "linear2_bias": jnp.zeros((d_model,), jnp.float32),
            "norm1_weight": jnp.ones((d_model,), jnp.float32),
            "norm1_bias": jnp.zeros((d_model,), jnp.float32),
            "norm2_weight": jnp.ones((d_model,), jnp.float32),
            "norm2_bias": jnp.zeros((d_model,), jnp.float32),
            "norm3_weight": jnp.ones((d_model,), jnp.float32),
            "norm3_bias": jnp.zeros((d_model,), jnp.float32),
        })
    final_norm = (jnp.ones((d_model,), jnp.float32),
                  jnp.zeros((d_model,), jnp.float32))
    return {"layers": layers, "final_norm": final_norm}


def prepare_params(pt, d_model):
    """One-time prep: pre-transpose weights to (Din, Dout) and cast them to bf16
    (MXU-native; f32 accumulation kept in-kernel), make biases / LN params 2-D
    row vectors (f32), split cross-attn in_proj into q + fused kv."""
    D = d_model
    row = lambda v: v.reshape(1, -1)
    wt = lambda w: w.T.astype(jnp.bfloat16)
    layers = []
    for lp in pt["layers"]:
        sa, ca = lp["self_attn"], lp["cross_attn"]
        layers.append({
            "self_attn": {
                "in_proj_w_t": wt(sa["in_proj_weight"]),          # (D, 3D) bf16
                "in_proj_b": row(sa["in_proj_bias"]),
                "out_w_t": wt(sa["out_proj_weight"]),             # (D, D) bf16
                "out_b": row(sa["out_proj_bias"]),
            },
            "cross_attn": {
                "q_w_t": wt(ca["in_proj_weight"][:D]),            # (D, D) bf16
                "q_b": row(ca["in_proj_bias"][:D]),
                "kv_w_t": wt(ca["in_proj_weight"][D:]),           # (D, 2D) bf16
                "kv_b": row(ca["in_proj_bias"][D:]),
                "out_w_t": wt(ca["out_proj_weight"]),
                "out_b": row(ca["out_proj_bias"]),
            },
            "w1_t": wt(lp["linear1_weight"]), "b1": row(lp["linear1_bias"]),
            "w2_t": wt(lp["linear2_weight"]), "b2": row(lp["linear2_bias"]),
            "norm1_g": row(lp["norm1_weight"]), "norm1_b": row(lp["norm1_bias"]),
            "norm2_g": row(lp["norm2_weight"]), "norm2_b": row(lp["norm2_bias"]),
            "norm3_g": row(lp["norm3_weight"]), "norm3_b": row(lp["norm3_bias"]),
        })
    fn = pt["final_norm"]
    final = (row(fn[0]), row(fn[1])) if fn is not None else None
    return {"layers": layers, "final_norm": final}


# -----------------------------------------------------------------------------
# main
# -----------------------------------------------------------------------------

if __name__ == "__main__":
    num_layers = 2
    d_model = 32
    nhead = 4
    dim_ff = 64
    batch = 2
    tgt_len = 8
    mem_len = 8

    key = jax.random.PRNGKey(0)
    k_tgt, k_mem, k_params = jax.random.split(key, 3)

    # PyTorch default layout: (seq_len, batch, d_model)
    tgt = jax.random.normal(k_tgt, (tgt_len, batch, d_model), jnp.float32)
    memory = jax.random.normal(k_mem, (mem_len, batch, d_model), jnp.float32)

    pt_params = init_params_pt(k_params, num_layers, d_model, nhead, dim_ff)
    params = prepare_params(pt_params, d_model)

    fwd = jax.jit(partial(transformer_decoder, nhead=nhead))
    out = fwd(tgt, memory, params)
    out = jax.block_until_ready(out)

    assert out.shape == (tgt_len, batch, d_model)
    assert bool(jnp.all(jnp.isfinite(out)))
    print("KERNEL_OK")
</pallas_src>

<mosaic_0001>
module attributes {stable_mosaic.version = 11 : i64} {
  func.func @_linear_kernel(%arg0: i32, %arg1: memref<8x32xf32, #tpu.memory_space<vmem>>, %arg2: memref<32x64xbf16, #tpu.memory_space<vmem>>, %arg3: memref<1x64xf32, #tpu.memory_space<vmem>>, %arg4: memref<8x64xf32, #tpu.memory_space<vmem>>) attributes {dimension_semantics = [#tpu.dimension_semantics<parallel>], iteration_bounds = array<i64: 2>, scalar_prefetch = 0 : i64, scratch_operands = 0 : i64, tpu.core_type = #tpu.core_type<tc>, window_params = [{transform_indices = @transform_0, window_bounds = array<i64: 8, 32>}, {pipeline_mode = #tpu.pipeline_mode<synchronous>, transform_indices = @transform_1, window_bounds = array<i64: 32, 64>}, {pipeline_mode = #tpu.pipeline_mode<synchronous>, transform_indices = @transform_2, window_bounds = array<i64: 1, 64>}, {transform_indices = @transform_3, window_bounds = array<i64: 8, 64>}]} {
    %c0 = arith.constant 0 : index
    %c0_0 = arith.constant 0 : index
    %0 = vector.load %arg1[%c0, %c0_0] : memref<8x32xf32, #tpu.memory_space<vmem>>, vector<8x32xf32>
    %1 = arith.truncf %0 : vector<8x32xf32> to vector<8x32xbf16>
    %c0_1 = arith.constant 0 : index
    %c0_2 = arith.constant 0 : index
    %2 = vector.load %arg2[%c0_1, %c0_2] : memref<32x64xbf16, #tpu.memory_space<vmem>>, vector<32x64xbf16>
    %cst = arith.constant dense<0.000000e+00> : vector<8x64xf32>
    %3 = tpu.matmul %1, %2, %cst {dimension_numbers = #tpu.dot_dimension_numbers<[1], [0], [0], [1], [0, 0, 1, 1], [], []>} : vector<8x32xbf16>, vector<32x64xbf16>, vector<8x64xf32> -> vector<8x64xf32>
    %c0_3 = arith.constant 0 : index
    %c0_4 = arith.constant 0 : index
    %4 = vector.load %arg3[%c0_3, %c0_4] : memref<1x64xf32, #tpu.memory_space<vmem>>, vector<1x64xf32>
    %5 = vector.broadcast %4 : vector<1x64xf32> to vector<8x64xf32>
    %6 = arith.addf %3, %5 : vector<8x64xf32>
    %c0_5 = arith.constant 0 : index
    %c0_6 = arith.constant 0 : index
    %7 = vector.load %arg4[%c0_5, %c0_6] : memref<8x64xf32, #tpu.memory_space<vmem>>, vector<8x64xf32>
    tpu.vector_store %arg4[%c0_5, %c0_6], %6 {strides = array<i32>} : memref<8x64xf32, #tpu.memory_space<vmem>>, vector<8x64xf32>,
    return
  }
  func.func @transform_0(%arg0: i32) -> (i32, i32) {
    %c0_i32 = arith.constant 0 : i32
    %c0_i32_0 = arith.constant 0 : i32
    return %arg0, %c0_i32 : i32, i32
  }
  func.func @transform_1(%arg0: i32) -> (i32, i32) {
    %c0_i32 = arith.constant 0 : i32
    %c0_i32_0 = arith.constant 0 : i32
    %c0_i32_1 = arith.constant 0 : i32
    return %c0_i32, %c0_i32_0 : i32, i32
  }
  func.func @transform_2(%arg0: i32) -> (i32, i32) {
    %c0_i32 = arith.constant 0 : i32
    %c0_i32_0 = arith.constant 0 : i32
    %c0_i32_1 = arith.constant 0 : i32
    return %c0_i32, %c0_i32_0 : i32, i32
  }
  func.func @transform_3(%arg0: i32) -> (i32, i32) {
    %c0_i32 = arith.constant 0 : i32
    %c0_i32_0 = arith.constant 0 : i32
    return %arg0, %c0_i32 : i32, i32
  }
}

module attributes {stable_mosaic.version = 11 : i64} {
  func.func @_linear_kernel(%arg0: i32, %arg1: memref<8x32xf32, #tpu.memory_space<vmem>>, %arg2: memref<32x96xbf16, #tpu.memory_space<vmem>>, %arg3: memref<1x96xf32, #tpu.memory_space<vmem>>, %arg4: memref<8x96xf32, #tpu.memory_space<vmem>>) attributes {dimension_semantics = [#tpu.dimension_semantics<parallel>], iteration_bounds = array<i64: 2>, scalar_prefetch = 0 : i64, scratch_operands = 0 : i64, tpu.core_type = #tpu.core_type<tc>, window_params = [{transform_indices = @transform_0, window_bounds = array<i64: 8, 32>}, {pipeline_mode = #tpu.pipeline_mode<synchronous>, transform_indices = @transform_1, window_bounds = array<i64: 32, 96>}, {pipeline_mode = #tpu.pipeline_mode<synchronous>, transform_indices = @transform_2, window_bounds = array<i64: 1, 96>}, {transform_indices = @transform_3, window_bounds = array<i64: 8, 96>}]} {
    %c0 = arith.constant 0 : index
    %c0_0 = arith.constant 0 : index
    %0 = vector.load %arg1[%c0, %c0_0] : memref<8x32xf32, #tpu.memory_space<vmem>>, vector<8x32xf32>
    %1 = arith.truncf %0 : vector<8x32xf32> to vector<8x32xbf16>
    %c0_1 = arith.constant 0 : index
    %c0_2 = arith.constant 0 : index
    %2 = vector.load %arg2[%c0_1, %c0_2] : memref<32x96xbf16, #tpu.memory_space<vmem>>, vector<32x96xbf16>
    %cst = arith.constant dense<0.000000e+00> : vector<8x96xf32>
    %3 = tpu.matmul %1, %2, %cst {dimension_numbers = #tpu.dot_dimension_numbers<[1], [0], [0], [1], [0, 0, 1, 1], [], []>} : vector<8x32xbf16>, vector<32x96xbf16>, vector<8x96xf32> -> vector<8x96xf32>
    %c0_3 = arith.constant 0 : index
    %c0_4 = arith.constant 0 : index
    %4 = vector.load %arg3[%c0_3, %c0_4] : memref<1x96xf32, #tpu.memory_space<vmem>>, vector<1x96xf32>
    %5 = vector.broadcast %4 : vector<1x96xf32> to vector<8x96xf32>
    %6 = arith.addf %3, %5 : vector<8x96xf32>
    %c0_5 = arith.constant 0 : index
    %c0_6 = arith.constant 0 : index
    %7 = vector.load %arg4[%c0_5, %c0_6] : memref<8x96xf32, #tpu.memory_space<vmem>>, vector<8x96xf32>
    tpu.vector_store %arg4[%c0_5, %c0_6], %6 {strides = array<i32>} : memref<8x96xf32, #tpu.memory_space<vmem>>, vector<8x96xf32>,
    return
  }
  func.func @transform_0(%arg0: i32) -> (i32, i32) {
    %c0_i32 = arith.constant 0 : i32
    %c0_i32_0 = arith.constant 0 : i32
    return %arg0, %c0_i32 : i32, i32
  }
  func.func @transform_1(%arg0: i32) -> (i32, i32) {
    %c0_i32 = arith.constant 0 : i32
    %c0_i32_0 = arith.constant 0 : i32
    %c0_i32_1 = arith.constant 0 : i32
    return %c0_i32, %c0_i32_0 : i32, i32
  }
  func.func @transform_2(%arg0: i32) -> (i32, i32) {
    %c0_i32 = arith.constant 0 : i32
    %c0_i32_0 = arith.constant 0 : i32
    %c0_i32_1 = arith.constant 0 : i32
    return %c0_i32, %c0_i32_0 : i32, i32
  }
  func.func @transform_3(%arg0: i32) -> (i32, i32) {
    %c0_i32 = arith.constant 0 : i32
    %c0_i32_0 = arith.constant 0 : i32
    return %arg0, %c0_i32 : i32, i32
  }
}

module attributes {stable_mosaic.version = 11 : i64} {
  func.func @_linear_res_ln_kernel(%arg0: i32, %arg1: memref<8x32xf32, #tpu.memory_space<vmem>>, %arg2: memref<32x32xbf16, #tpu.memory_space<vmem>>, %arg3: memref<1x32xf32, #tpu.memory_space<vmem>>, %arg4: memref<8x32xf32, #tpu.memory_space<vmem>>, %arg5: memref<1x32xf32, #tpu.memory_space<vmem>>, %arg6: memref<1x32xf32, #tpu.memory_space<vmem>>, %arg7: memref<8x32xf32, #tpu.memory_space<vmem>>) attributes {dimension_semantics = [#tpu.dimension_semantics<parallel>], iteration_bounds = array<i64: 2>, scalar_prefetch = 0 : i64, scratch_operands = 0 : i64, tpu.core_type = #tpu.core_type<tc>, window_params = [{transform_indices = @transform_0, window_bounds = array<i64: 8, 32>}, {pipeline_mode = #tpu.pipeline_mode<synchronous>, transform_indices = @transform_1, window_bounds = array<i64: 32, 32>}, {pipeline_mode = #tpu.pipeline_mode<synchronous>, transform_indices = @transform_2, window_bounds = array<i64: 1, 32>}, {transform_indices = @transform_3, window_bounds = array<i64: 8, 32>}, {pipeline_mode = #tpu.pipeline_mode<synchronous>, transform_indices = @transform_4, window_bounds = array<i64: 1, 32>}, {pipeline_mode = #tpu.pipeline_mode<synchronous>, transform_indices = @transform_5, window_bounds = array<i64: 1, 32>}, {transform_indices = @transform_6, window_bounds = array<i64: 8, 32>}]} {
    %c0 = arith.constant 0 : index
    %c0_0 = arith.constant 0 : index
    %0 = vector.load %arg1[%c0, %c0_0] : memref<8x32xf32, #tpu.memory_space<vmem>>, vector<8x32xf32>
    %1 = arith.truncf %0 : vector<8x32xf32> to vector<8x32xbf16>
    %c0_1 = arith.constant 0 : index
    %c0_2 = arith.constant 0 : index
    %2 = vector.load %arg2[%c0_1, %c0_2] : memref<32x32xbf16, #tpu.memory_space<vmem>>, vector<32x32xbf16>
    %cst = arith.constant dense<0.000000e+00> : vector<8x32xf32>
    %3 = tpu.matmul %1, %2, %cst {dimension_numbers = #tpu.dot_dimension_numbers<[1], [0], [0], [1], [0, 0, 1, 1], [], []>} : vector<8x32xbf16>, vector<32x32xbf16>, vector<8x32xf32> -> vector<8x32xf32>
    %c0_3 = arith.constant 0 : index
    %c0_4 = arith.constant 0 : index
    %4 = vector.load %arg3[%c0_3, %c0_4] : memref<1x32xf32, #tpu.memory_space<vmem>>, vector<1x32xf32>
    %5 = vector.broadcast %4 : vector<1x32xf32> to vector<8x32xf32>
    %6 = arith.addf %3, %5 : vector<8x32xf32>
    %c0_5 = arith.constant 0 : index
    %c0_6 = arith.constant 0 : index
    %7 = vector.load %arg4[%c0_5, %c0_6] : memref<8x32xf32, #tpu.memory_space<vmem>>, vector<8x32xf32>
    %8 = arith.addf %6, %7 : vector<8x32xf32>
    %cst_7 = arith.constant dense<0.000000e+00> : vector<8xf32>
    %9 = vector.multi_reduction <add>, %8, %cst_7 [1] : vector<8x32xf32> to vector<8xf32>
    %10 = vector.shape_cast %9 : vector<8xf32> to vector<8x1xf32>
    %cst_8 = arith.constant 3.200000e+01 : f32
    %11 = vector.broadcast %cst_8 : f32 to vector<8x1xf32>
    %12 = arith.divf %10, %11 : vector<8x1xf32>
    %13 = vector.broadcast %12 : vector<8x1xf32> to vector<8x32xf32>
    %14 = arith.subf %8, %13 : vector<8x32xf32>
    %15 = arith.mulf %14, %14 : vector<8x32xf32>
    %cst_9 = arith.constant dense<0.000000e+00> : vector<8xf32>
    %16 = vector.multi_reduction <add>, %15, %cst_9 [1] : vector<8x32xf32> to vector<8xf32>
    %17 = vector.shape_cast %16 : vector<8xf32> to vector<8x1xf32>
    %cst_10 = arith.constant 3.200000e+01 : f32
    %18 = vector.broadcast %cst_10 : f32 to vector<8x1xf32>
    %19 = arith.divf %17, %18 : vector<8x1xf32>
    %20 = vector.broadcast %12 : vector<8x1xf32> to vector<8x32xf32>
    %21 = arith.subf %8, %20 : vector<8x32xf32>
    %cst_11 = arith.constant 9.99999974E-6 : f32
    %22 = vector.broadcast %cst_11 : f32 to vector<8x1xf32>
    %23 = arith.addf %19, %22 : vector<8x1xf32>
    %24 = math.rsqrt %23 : vector<8x1xf32>
    %25 = vector.broadcast %24 : vector<8x1xf32> to vector<8x32xf32>
    %26 = arith.mulf %21, %25 : vector<8x32xf32>
    %c0_12 = arith.constant 0 : index
    %c0_13 = arith.constant 0 : index
    %27 = vector.load %arg5[%c0_12, %c0_13] : memref<1x32xf32, #tpu.memory_space<vmem>>, vector<1x32xf32>
    %28 = vector.broadcast %27 : vector<1x32xf32> to vector<8x32xf32>
    %29 = arith.mulf %26, %28 : vector<8x32xf32>
    %c0_14 = arith.constant 0 : index
    %c0_15 = arith.constant 0 : index
    %30 = vector.load %arg6[%c0_14, %c0_15] : memref<1x32xf32, #tpu.memory_space<vmem>>, vector<1x32xf32>
    %31 = vector.broadcast %30 : vector<1x32xf32> to vector<8x32xf32>
    %32 = arith.addf %29, %31 : vector<8x32xf32>
    %c0_16 = arith.constant 0 : index
    %c0_17 = arith.constant 0 : index
    %33 = vector.load %arg7[%c0_16, %c0_17] : memref<8x32xf32, #tpu.memory_space<vmem>>, vector<8x32xf32>
    tpu.vector_store %arg7[%c0_16, %c0_17], %32 {strides = array<i32>} : memref<8x32xf32, #tpu.memory_space<vmem>>, vector<8x32xf32>,
    return
  }
  func.func @transform_0(%arg0: i32) -> (i32, i32) {
    %c0_i32 = arith.constant 0 : i32
    %c0_i32_0 = arith.constant 0 : i32
    return %arg0, %c0_i32 : i32, i32
  }
  func.func @transform_1(%arg0: i32) -> (i32, i32) {
    %c0_i32 = arith.constant 0 : i32
    %c0_i32_0 = arith.constant 0 : i32
    %c0_i32_1 = arith.constant 0 : i32
    return %c0_i32, %c0_i32_0 : i32, i32
  }
  func.func @transform_2(%arg0: i32) -> (i32, i32) {
    %c0_i32 = arith.constant 0 : i32
    %c0_i32_0 = arith.constant 0 : i32
    %c0_i32_1 = arith.constant 0 : i32
    return %c0_i32, %c0_i32_0 : i32, i32
  }
  func.func @transform_3(%arg0: i32) -> (i32, i32) {
    %c0_i32 = arith.constant 0 : i32
    %c0_i32_0 = arith.constant 0 : i32
    return %arg0, %c0_i32 : i32, i32
  }
  func.func @transform_4(%arg0: i32) -> (i32, i32) {
    %c0_i32 = arith.constant 0 : i32
    %c0_i32_0 = arith.constant 0 : i32
    %c0_i32_1 = arith.constant 0 : i32
    return %c0_i32, %c0_i32_0 : i32, i32
  }
  func.func @transform_5(%arg0: i32) -> (i32, i32) {
    %c0_i32 = arith.constant 0 : i32
    %c0_i32_0 = arith.constant 0 : i32
    %c0_i32_1 = arith.constant 0 : i32
    return %c0_i32, %c0_i32_0 : i32, i32
  }
  func.func @transform_6(%arg0: i32) -> (i32, i32) {
    %c0_i32 = arith.constant 0 : i32
    %c0_i32_0 = arith.constant 0 : i32
    return %arg0, %c0_i32 : i32, i32
  }
}

module attributes {stable_mosaic.version = 11 : i64} {
  func.func @_self_attn_kernel(%arg0: i32, %arg1: memref<1x8x96xf32, #tpu.memory_space<vmem>>, %arg2: memref<1x8x32xf32, #tpu.memory_space<vmem>>) attributes {dimension_semantics = [#tpu.dimension_semantics<parallel>], iteration_bounds = array<i64: 2>, scalar_prefetch = 0 : i64, scratch_operands = 0 : i64, tpu.core_type = #tpu.core_type<tc>, window_params = [{transform_indices = @transform_0, window_bounds = array<i64: 1, 8, 96>}, {transform_indices = @transform_1, window_bounds = array<i64: 1, 8, 32>}]} {
    %c0 = arith.constant 0 : index
    %c0_0 = arith.constant 0 : index
    %c0_1 = arith.constant 0 : index
    %0 = vector.load %arg1[%c0, %c0_0, %c0_1] : memref<1x8x96xf32, #tpu.memory_space<vmem>>, vector<1x8x96xf32>
    %1 = vector.shape_cast %0 : vector<1x8x96xf32> to vector<8x96xf32>
    %2 = vector.extract_strided_slice %1 {offsets = [0, 0], sizes = [8, 32], strides = [1, 1]} : vector<8x96xf32> to vector<8x32xf32>
    %3 = vector.extract_strided_slice %2 {offsets = [0, 0], sizes = [8, 8], strides = [1, 1]} : vector<8x32xf32> to vector<8x8xf32>
    %4 = arith.truncf %3 : vector<8x8xf32> to vector<8x8xbf16>
    %5 = vector.extract_strided_slice %1 {offsets = [0, 32], sizes = [8, 8], strides = [1, 1]} : vector<8x96xf32> to vector<8x8xf32>
    %6 = arith.truncf %5 : vector<8x8xf32> to vector<8x8xbf16>
    %7 = vector.extract_strided_slice %1 {offsets = [0, 64], sizes = [8, 8], strides = [1, 1]} : vector<8x96xf32> to vector<8x8xf32>
    %8 = arith.truncf %7 : vector<8x8xf32> to vector<8x8xbf16>
    %cst = arith.constant dense<0.000000e+00> : vector<8x8xf32>
    %9 = tpu.matmul %4, %6, %cst {dimension_numbers = #tpu.dot_dimension_numbers<[1], [1], [0], [0], [0, 0, 1, 0], [], []>} : vector<8x8xbf16>, vector<8x8xbf16>, vector<8x8xf32> -> vector<8x8xf32>
    %cst_2 = arith.constant 0.353553385 : f32
    %10 = vector.broadcast %cst_2 : f32 to vector<8x8xf32>
    %11 = arith.mulf %9, %10 : vector<8x8xf32>
    %cst_3 = arith.constant dense<0xFF800000> : vector<8xf32>
    %12 = vector.multi_reduction <maximumf>, %11, %cst_3 [1] : vector<8x8xf32> to vector<8xf32>
    %13 = vector.shape_cast %12 : vector<8xf32> to vector<8x1xf32>
    %14 = vector.broadcast %13 : vector<8x1xf32> to vector<8x8xf32>
    %15 = arith.subf %11, %14 : vector<8x8xf32>
    %16 = math.exp %15 : vector<8x8xf32>
    %cst_4 = arith.constant dense<0.000000e+00> : vector<8xf32>
    %17 = vector.multi_reduction <add>, %16, %cst_4 [1] : vector<8x8xf32> to vector<8xf32>
    %18 = vector.shape_cast %17 : vector<8xf32> to vector<8x1xf32>
    %19 = vector.broadcast %18 : vector<8x1xf32> to vector<8x8xf32>
    %20 = arith.divf %16, %19 : vector<8x8xf32>
    %21 = arith.truncf %20 : vector<8x8xf32> to vector<8x8xbf16>
    %cst_5 = arith.constant dense<0.000000e+00> : vector<8x8xf32>
    %22 = tpu.matmul %21, %8, %cst_5 {dimension_numbers = #tpu.dot_dimension_numbers<[1], [0], [0], [1], [0, 0, 1, 1], [], []>} : vector<8x8xbf16>, vector<8x8xbf16>, vector<8x8xf32> -> vector<8x8xf32>
    %23 = vector.extract_strided_slice %2 {offsets = [0, 8], sizes = [8, 8], strides = [1, 1]} : vector<8x32xf32> to vector<8x8xf32>
    %24 = arith.truncf %23 : vector<8x8xf32> to vector<8x8xbf16>
    %25 = vector.extract_strided_slice %1 {offsets = [0, 40], sizes = [8, 8], strides = [1, 1]} : vector<8x96xf32> to vector<8x8xf32>
    %26 = arith.truncf %25 : vector<8x8xf32> to vector<8x8xbf16>
    %27 = vector.extract_strided_slice %1 {offsets = [0, 72], sizes = [8, 8], strides = [1, 1]} : vector<8x96xf32> to vector<8x8xf32>
    %28 = arith.truncf %27 : vector<8x8xf32> to vector<8x8xbf16>
    %cst_6 = arith.constant dense<0.000000e+00> : vector<8x8xf32>
    %29 = tpu.matmul %24, %26, %cst_6 {dimension_numbers = #tpu.dot_dimension_numbers<[1], [1], [0], [0], [0, 0, 1, 0], [], []>} : vector<8x8xbf16>, vector<8x8xbf16>, vector<8x8xf32> -> vector<8x8xf32>
    %cst_7 = arith.constant 0.353553385 : f32
    %30 = vector.broadcast %cst_7 : f32 to vector<8x8xf32>
    %31 = arith.mulf %29, %30 : vector<8x8xf32>
    %cst_8 = arith.constant dense<0xFF800000> : vector<8xf32>
    %32 = vector.multi_reduction <maximumf>, %31, %cst_8 [1] : vector<8x8xf32> to vector<8xf32>
    %33 = vector.shape_cast %32 : vector<8xf32> to vector<8x1xf32>
    %34 = vector.broadcast %33 : vector<8x1xf32> to vector<8x8xf32>
    %35 = arith.subf %31, %34 : vector<8x8xf32>
    %36 = math.exp %35 : vector<8x8xf32>
    %cst_9 = arith.constant dense<0.000000e+00> : vector<8xf32>
    %37 = vector.multi_reduction <add>, %36, %cst_9 [1] : vector<8x8xf32> to vector<8xf32>
    %38 = vector.shape_cast %37 : vector<8xf32> to vector<8x1xf32>
    %39 = vector.broadcast %38 : vector<8x1xf32> to vector<8x8xf32>
    %40 = arith.divf %36, %39 : vector<8x8xf32>
    %41 = arith.truncf %40 : vector<8x8xf32> to vector<8x8xbf16>
    %cst_10 = arith.constant dense<0.000000e+00> : vector<8x8xf32>
    %42 = tpu.matmul %41, %28, %cst_10 {dimension_numbers = #tpu.dot_dimension_numbers<[1], [0], [0], [1], [0, 0, 1, 1], [], []>} : vector<8x8xbf16>, vector<8x8xbf16>, vector<8x8xf32> -> vector<8x8xf32>
    %43 = vector.extract_strided_slice %2 {offsets = [0, 16], sizes = [8, 8], strides = [1, 1]} : vector<8x32xf32> to vector<8x8xf32>
    %44 = arith.truncf %43 : vector<8x8xf32> to vector<8x8xbf16>
    %45 = vector.extract_strided_slice %1 {offsets = [0, 48], sizes = [8, 8], strides = [1, 1]} : vector<8x96xf32> to vector<8x8xf32>
    %46 = arith.truncf %45 : vector<8x8xf32> to vector<8x8xbf16>
    %47 = vector.extract_strided_slice %1 {offsets = [0, 80], sizes = [8, 8], strides = [1, 1]} : vector<8x96xf32> to vector<8x8xf32>
    %48 = arith.truncf %47 : vector<8x8xf32> to vector<8x8xbf16>
    %cst_11 = arith.constant dense<0.000000e+00> : vector<8x8xf32>
    %49 = tpu.matmul %44, %46, %cst_11 {dimension_numbers = #tpu.dot_dimension_numbers<[1], [1], [0], [0], [0, 0, 1, 0], [], []>} : vector<8x8xbf16>, vector<8x8xbf16>, vector<8x8xf32> -> vector<8x8xf32>
    %cst_12 = arith.constant 0.353553385 : f32
    %50 = vector.broadcast %cst_12 : f32 to vector<8x8xf32>
    %51 = arith.mulf %49, %50 : vector<8x8xf32>
    %cst_13 = arith.constant dense<0xFF800000> : vector<8xf32>
    %52 = vector.multi_reduction <maximumf>, %51, %cst_13 [1] : vector<8x8xf32> to vector<8xf32>
    %53 = vector.shape_cast %52 : vector<8xf32> to vector<8x1xf32>
    %54 = vector.broadcast %53 : vector<8x1xf32> to vector<8x8xf32>
    %55 = arith.subf %51, %54 : vector<8x8xf32>
    %56 = math.exp %55 : vector<8x8xf32>
    %cst_14 = arith.constant dense<0.000000e+00> : vector<8xf32>
    %57 = vector.multi_reduction <add>, %56, %cst_14 [1] : vector<8x8xf32> to vector<8xf32>
    %58 = vector.shape_cast %57 : vector<8xf32> to vector<8x1xf32>
    %59 = vector.broadcast %58 : vector<8x1xf32> to vector<8x8xf32>
    %60 = arith.divf %56, %59 : vector<8x8xf32>
    %61 = arith.truncf %60 : vector<8x8xf32> to vector<8x8xbf16>
    %cst_15 = arith.constant dense<0.000000e+00> : vector<8x8xf32>
    %62 = tpu.matmul %61, %48, %cst_15 {dimension_numbers = #tpu.dot_dimension_numbers<[1], [0], [0], [1], [0, 0, 1, 1], [], []>} : vector<8x8xbf16>, vector<8x8xbf16>, vector<8x8xf32> -> vector<8x8xf32>
    %63 = vector.extract_strided_slice %2 {offsets = [0, 24], sizes = [8, 8], strides = [1, 1]} : vector<8x32xf32> to vector<8x8xf32>
    %64 = arith.truncf %63 : vector<8x8xf32> to vector<8x8xbf16>
    %65 = vector.extract_strided_slice %1 {offsets = [0, 56], sizes = [8, 8], strides = [1, 1]} : vector<8x96xf32> to vector<8x8xf32>
    %66 = arith.truncf %65 : vector<8x8xf32> to vector<8x8xbf16>
    %67 = vector.extract_strided_slice %1 {offsets = [0, 88], sizes = [8, 8], strides = [1, 1]} : vector<8x96xf32> to vector<8x8xf32>
    %68 = arith.truncf %67 : vector<8x8xf32> to vector<8x8xbf16>
    %cst_16 = arith.constant dense<0.000000e+00> : vector<8x8xf32>
    %69 = tpu.matmul %64, %66, %cst_16 {dimension_numbers = #tpu.dot_dimension_numbers<[1], [1], [0], [0], [0, 0, 1, 0], [], []>} : vector<8x8xbf16>, vector<8x8xbf16>, vector<8x8xf32> -> vector<8x8xf32>
    %cst_17 = arith.constant 0.353553385 : f32
    %70 = vector.broadcast %cst_17 : f32 to vector<8x8xf32>
    %71 = arith.mulf %69, %70 : vector<8x8xf32>
    %cst_18 = arith.constant dense<0xFF800000> : vector<8xf32>
    %72 = vector.multi_reduction <maximumf>, %71, %cst_18 [1] : vector<8x8xf32> to vector<8xf32>
    %73 = vector.shape_cast %72 : vector<8xf32> to vector<8x1xf32>
    %74 = vector.broadcast %73 : vector<8x1xf32> to vector<8x8xf32>
    %75 = arith.subf %71, %74 : vector<8x8xf32>
    %76 = math.exp %75 : vector<8x8xf32>
    %cst_19 = arith.constant dense<0.000000e+00> : vector<8xf32>
    %77 = vector.multi_reduction <add>, %76, %cst_19 [1] : vector<8x8xf32> to vector<8xf32>
    %78 = vector.shape_cast %77 : vector<8xf32> to vector<8x1xf32>
    %79 = vector.broadcast %78 : vector<8x1xf32> to vector<8x8xf32>
    %80 = arith.divf %76, %79 : vector<8x8xf32>
    %81 = arith.truncf %80 : vector<8x8xf32> to vector<8x8xbf16>
    %cst_20 = arith.constant dense<0.000000e+00> : vector<8x8xf32>
    %82 = tpu.matmul %81, %68, %cst_20 {dimension_numbers = #tpu.dot_dimension_numbers<[1], [0], [0], [1], [0, 0, 1, 1], [], []>} : vector<8x8xbf16>, vector<8x8xbf16>, vector<8x8xf32> -> vector<8x8xf32>
    %83 = tpu.concatenate %22, %42, %62, %82 in 1 : vector<8x8xf32>, vector<8x8xf32>, vector<8x8xf32>, vector<8x8xf32> -> vector<8x32xf32>
    %c0_21 = arith.constant 0 : index
    %c0_22 = arith.constant 0 : index
    %c0_23 = arith.constant 0 : index
    %84 = vector.load %arg2[%c0_21, %c0_22, %c0_23] : memref<1x8x32xf32, #tpu.memory_space<vmem>>, vector<1x8x32xf32>
    %85 = vector.shape_cast %84 : vector<1x8x32xf32> to vector<8x32xf32>
    %86 = vector.shape_cast %83 : vector<8x32xf32> to vector<1x8x32xf32>
    tpu.vector_store %arg2[%c0_21, %c0_22, %c0_23], %86 {strides = array<i32>} : memref<1x8x32xf32, #tpu.memory_space<vmem>>, vector<1x8x32xf32>,
    return
  }
  func.func @transform_0(%arg0: i32) -> (i32, i32, i32) {
    %c0_i32 = arith.constant 0 : i32
    %c0_i32_0 = arith.constant 0 : i32
    %c0_i32_1 = arith.constant 0 : i32
    return %arg0, %c0_i32, %c0_i32_0 : i32, i32, i32
  }
  func.func @transform_1(%arg0: i32) -> (i32, i32, i32) {
    %c0_i32 = arith.constant 0 : i32
    %c0_i32_0 = arith.constant 0 : i32
    %c0_i32_1 = arith.constant 0 : i32
    return %arg0, %c0_i32, %c0_i32_0 : i32, i32, i32
  }
}

module attributes {stable_mosaic.version = 11 : i64} {
  func.func @_linear_kernel(%arg0: i32, %arg1: memref<8x32xf32, #tpu.memory_space<vmem>>, %arg2: memref<32x32xbf16, #tpu.memory_space<vmem>>, %arg3: memref<1x32xf32, #tpu.memory_space<vmem>>, %arg4: memref<8x32xf32, #tpu.memory_space<vmem>>) attributes {dimension_semantics = [#tpu.dimension_semantics<parallel>], iteration_bounds = array<i64: 2>, scalar_prefetch = 0 : i64, scratch_operands = 0 : i64, tpu.core_type = #tpu.core_type<tc>, window_params = [{transform_indices = @transform_0, window_bounds = array<i64: 8, 32>}, {pipeline_mode = #tpu.pipeline_mode<synchronous>, transform_indices = @transform_1, window_bounds = array<i64: 32, 32>}, {pipeline_mode = #tpu.pipeline_mode<synchronous>, transform_indices = @transform_2, window_bounds = array<i64: 1, 32>}, {transform_indices = @transform_3, window_bounds = array<i64: 8, 32>}]} {
    %c0 = arith.constant 0 : index
    %c0_0 = arith.constant 0 : index
    %0 = vector.load %arg1[%c0, %c0_0] : memref<8x32xf32, #tpu.memory_space<vmem>>, vector<8x32xf32>
    %1 = arith.truncf %0 : vector<8x32xf32> to vector<8x32xbf16>
    %c0_1 = arith.constant 0 : index
    %c0_2 = arith.constant 0 : index
    %2 = vector.load %arg2[%c0_1, %c0_2] : memref<32x32xbf16, #tpu.memory_space<vmem>>, vector<32x32xbf16>
    %cst = arith.constant dense<0.000000e+00> : vector<8x32xf32>
    %3 = tpu.matmul %1, %2, %cst {dimension_numbers = #tpu.dot_dimension_numbers<[1], [0], [0], [1], [0, 0, 1, 1], [], []>} : vector<8x32xbf16>, vector<32x32xbf16>, vector<8x32xf32> -> vector<8x32xf32>
    %c0_3 = arith.constant 0 : index
    %c0_4 = arith.constant 0 : index
    %4 = vector.load %arg3[%c0_3, %c0_4] : memref<1x32xf32, #tpu.memory_space<vmem>>, vector<1x32xf32>
    %5 = vector.broadcast %4 : vector<1x32xf32> to vector<8x32xf32>
    %6 = arith.addf %3, %5 : vector<8x32xf32>
    %c0_5 = arith.constant 0 : index
    %c0_6 = arith.constant 0 : index
    %7 = vector.load %arg4[%c0_5, %c0_6] : memref<8x32xf32, #tpu.memory_space<vmem>>, vector<8x32xf32>
    tpu.vector_store %arg4[%c0_5, %c0_6], %6 {strides = array<i32>} : memref<8x32xf32, #tpu.memory_space<vmem>>, vector<8x32xf32>,
    return
  }
  func.func @transform_0(%arg0: i32) -> (i32, i32) {
    %c0_i32 = arith.constant 0 : i32
    %c0_i32_0 = arith.constant 0 : i32
    return %arg0, %c0_i32 : i32, i32
  }
  func.func @transform_1(%arg0: i32) -> (i32, i32) {
    %c0_i32 = arith.constant 0 : i32
    %c0_i32_0 = arith.constant 0 : i32
    %c0_i32_1 = arith.constant 0 : i32
    return %c0_i32, %c0_i32_0 : i32, i32
  }
  func.func @transform_2(%arg0: i32) -> (i32, i32) {
    %c0_i32 = arith.constant 0 : i32
    %c0_i32_0 = arith.constant 0 : i32
    %c0_i32_1 = arith.constant 0 : i32
    return %c0_i32, %c0_i32_0 : i32, i32
  }
  func.func @transform_3(%arg0: i32) -> (i32, i32) {
    %c0_i32 = arith.constant 0 : i32
    %c0_i32_0 = arith.constant 0 : i32
    return %arg0, %c0_i32 : i32, i32
  }
}

module attributes {stable_mosaic.version = 11 : i64} {
  func.func @_cross_attn_kernel(%arg0: i32, %arg1: memref<1x8x32xf32, #tpu.memory_space<vmem>>, %arg2: memref<1x8x64xf32, #tpu.memory_space<vmem>>, %arg3: memref<1x8x32xf32, #tpu.memory_space<vmem>>) attributes {dimension_semantics = [#tpu.dimension_semantics<parallel>], iteration_bounds = array<i64: 2>, scalar_prefetch = 0 : i64, scratch_operands = 0 : i64, tpu.core_type = #tpu.core_type<tc>, window_params = [{transform_indices = @transform_0, window_bounds = array<i64: 1, 8, 32>}, {transform_indices = @transform_1, window_bounds = array<i64: 1, 8, 64>}, {transform_indices = @transform_2, window_bounds = array<i64: 1, 8, 32>}]} {
    %c0 = arith.constant 0 : index
    %c0_0 = arith.constant 0 : index
    %c0_1 = arith.constant 0 : index
    %0 = vector.load %arg1[%c0, %c0_0, %c0_1] : memref<1x8x32xf32, #tpu.memory_space<vmem>>, vector<1x8x32xf32>
    %1 = vector.shape_cast %0 : vector<1x8x32xf32> to vector<8x32xf32>
    %c0_2 = arith.constant 0 : index
    %c0_3 = arith.constant 0 : index
    %c0_4 = arith.constant 0 : index
    %2 = vector.load %arg2[%c0_2, %c0_3, %c0_4] : memref<1x8x64xf32, #tpu.memory_space<vmem>>, vector<1x8x64xf32>
    %3 = vector.shape_cast %2 : vector<1x8x64xf32> to vector<8x64xf32>
    %4 = vector.extract_strided_slice %1 {offsets = [0, 0], sizes = [8, 8], strides = [1, 1]} : vector<8x32xf32> to vector<8x8xf32>
    %5 = arith.truncf %4 : vector<8x8xf32> to vector<8x8xbf16>
    %6 = vector.extract_strided_slice %3 {offsets = [0, 0], sizes = [8, 8], strides = [1, 1]} : vector<8x64xf32> to vector<8x8xf32>
    %7 = arith.truncf %6 : vector<8x8xf32> to vector<8x8xbf16>
    %8 = vector.extract_strided_slice %3 {offsets = [0, 32], sizes = [8, 8], strides = [1, 1]} : vector<8x64xf32> to vector<8x8xf32>
    %9 = arith.truncf %8 : vector<8x8xf32> to vector<8x8xbf16>
    %cst = arith.constant dense<0.000000e+00> : vector<8x8xf32>
    %10 = tpu.matmul %5, %7, %cst {dimension_numbers = #tpu.dot_dimension_numbers<[1], [1], [0], [0], [0, 0, 1, 0], [], []>} : vector<8x8xbf16>, vector<8x8xbf16>, vector<8x8xf32> -> vector<8x8xf32>
    %cst_5 = arith.constant 0.353553385 : f32
    %11 = vector.broadcast %cst_5 : f32 to vector<8x8xf32>
    %12 = arith.mulf %10, %11 : vector<8x8xf32>
    %cst_6 = arith.constant dense<0xFF800000> : vector<8xf32>
    %13 = vector.multi_reduction <maximumf>, %12, %cst_6 [1] : vector<8x8xf32> to vector<8xf32>
    %14 = vector.shape_cast %13 : vector<8xf32> to vector<8x1xf32>
    %15 = vector.broadcast %14 : vector<8x1xf32> to vector<8x8xf32>
    %16 = arith.subf %12, %15 : vector<8x8xf32>
    %17 = math.exp %16 : vector<8x8xf32>
    %cst_7 = arith.constant dense<0.000000e+00> : vector<8xf32>
    %18 = vector.multi_reduction <add>, %17, %cst_7 [1] : vector<8x8xf32> to vector<8xf32>
    %19 = vector.shape_cast %18 : vector<8xf32> to vector<8x1xf32>
    %20 = vector.broadcast %19 : vector<8x1xf32> to vector<8x8xf32>
    %21 = arith.divf %17, %20 : vector<8x8xf32>
    %22 = arith.truncf %21 : vector<8x8xf32> to vector<8x8xbf16>
    %cst_8 = arith.constant dense<0.000000e+00> : vector<8x8xf32>
    %23 = tpu.matmul %22, %9, %cst_8 {dimension_numbers = #tpu.dot_dimension_numbers<[1], [0], [0], [1], [0, 0, 1, 1], [], []>} : vector<8x8xbf16>, vector<8x8xbf16>, vector<8x8xf32> -> vector<8x8xf32>
    %24 = vector.extract_strided_slice %1 {offsets = [0, 8], sizes = [8, 8], strides = [1, 1]} : vector<8x32xf32> to vector<8x8xf32>
    %25 = arith.truncf %24 : vector<8x8xf32> to vector<8x8xbf16>
    %26 = vector.extract_strided_slice %3 {offsets = [0, 8], sizes = [8, 8], strides = [1, 1]} : vector<8x64xf32> to vector<8x8xf32>
    %27 = arith.truncf %26 : vector<8x8xf32> to vector<8x8xbf16>
    %28 = vector.extract_strided_slice %3 {offsets = [0, 40], sizes = [8, 8], strides = [1, 1]} : vector<8x64xf32> to vector<8x8xf32>
    %29 = arith.truncf %28 : vector<8x8xf32> to vector<8x8xbf16>
    %cst_9 = arith.constant dense<0.000000e+00> : vector<8x8xf32>
    %30 = tpu.matmul %25, %27, %cst_9 {dimension_numbers = #tpu.dot_dimension_numbers<[1], [1], [0], [0], [0, 0, 1, 0], [], []>} : vector<8x8xbf16>, vector<8x8xbf16>, vector<8x8xf32> -> vector<8x8xf32>
    %cst_10 = arith.constant 0.353553385 : f32
    %31 = vector.broadcast %cst_10 : f32 to vector<8x8xf32>
    %32 = arith.mulf %30, %31 : vector<8x8xf32>
    %cst_11 = arith.constant dense<0xFF800000> : vector<8xf32>
    %33 = vector.multi_reduction <maximumf>, %32, %cst_11 [1] : vector<8x8xf32> to vector<8xf32>
    %34 = vector.shape_cast %33 : vector<8xf32> to vector<8x1xf32>
    %35 = vector.broadcast %34 : vector<8x1xf32> to vector<8x8xf32>
    %36 = arith.subf %32, %35 : vector<8x8xf32>
    %37 = math.exp %36 : vector<8x8xf32>
    %cst_12 = arith.constant dense<0.000000e+00> : vector<8xf32>
    %38 = vector.multi_reduction <add>, %37, %cst_12 [1] : vector<8x8xf32> to vector<8xf32>
    %39 = vector.shape_cast %38 : vector<8xf32> to vector<8x1xf32>
    %40 = vector.broadcast %39 : vector<8x1xf32> to vector<8x8xf32>
    %41 = arith.divf %37, %40 : vector<8x8xf32>
    %42 = arith.truncf %41 : vector<8x8xf32> to vector<8x8xbf16>
    %cst_13 = arith.constant dense<0.000000e+00> : vector<8x8xf32>
    %43 = tpu.matmul %42, %29, %cst_13 {dimension_numbers = #tpu.dot_dimension_numbers<[1], [0], [0], [1], [0, 0, 1, 1], [], []>} : vector<8x8xbf16>, vector<8x8xbf16>, vector<8x8xf32> -> vector<8x8xf32>
    %44 = vector.extract_strided_slice %1 {offsets = [0, 16], sizes = [8, 8], strides = [1, 1]} : vector<8x32xf32> to vector<8x8xf32>
    %45 = arith.truncf %44 : vector<8x8xf32> to vector<8x8xbf16>
    %46 = vector.extract_strided_slice %3 {offsets = [0, 16], sizes = [8, 8], strides = [1, 1]} : vector<8x64xf32> to vector<8x8xf32>
    %47 = arith.truncf %46 : vector<8x8xf32> to vector<8x8xbf16>
    %48 = vector.extract_strided_slice %3 {offsets = [0, 48], sizes = [8, 8], strides = [1, 1]} : vector<8x64xf32> to vector<8x8xf32>
    %49 = arith.truncf %48 : vector<8x8xf32> to vector<8x8xbf16>
    %cst_14 = arith.constant dense<0.000000e+00> : vector<8x8xf32>
    %50 = tpu.matmul %45, %47, %cst_14 {dimension_numbers = #tpu.dot_dimension_numbers<[1], [1], [0], [0], [0, 0, 1, 0], [], []>} : vector<8x8xbf16>, vector<8x8xbf16>, vector<8x8xf32> -> vector<8x8xf32>
    %cst_15 = arith.constant 0.353553385 : f32
    %51 = vector.broadcast %cst_15 : f32 to vector<8x8xf32>
    %52 = arith.mulf %50, %51 : vector<8x8xf32>
    %cst_16 = arith.constant dense<0xFF800000> : vector<8xf32>
    %53 = vector.multi_reduction <maximumf>, %52, %cst_16 [1] : vector<8x8xf32> to vector<8xf32>
    %54 = vector.shape_cast %53 : vector<8xf32> to vector<8x1xf32>
    %55 = vector.broadcast %54 : vector<8x1xf32> to vector<8x8xf32>
    %56 = arith.subf %52, %55 : vector<8x8xf32>
    %57 = math.exp %56 : vector<8x8xf32>
    %cst_17 = arith.constant dense<0.000000e+00> : vector<8xf32>
    %58 = vector.multi_reduction <add>, %57, %cst_17 [1] : vector<8x8xf32> to vector<8xf32>
    %59 = vector.shape_cast %58 : vector<8xf32> to vector<8x1xf32>
    %60 = vector.broadcast %59 : vector<8x1xf32> to vector<8x8xf32>
    %61 = arith.divf %57, %60 : vector<8x8xf32>
    %62 = arith.truncf %61 : vector<8x8xf32> to vector<8x8xbf16>
    %cst_18 = arith.constant dense<0.000000e+00> : vector<8x8xf32>
    %63 = tpu.matmul %62, %49, %cst_18 {dimension_numbers = #tpu.dot_dimension_numbers<[1], [0], [0], [1], [0, 0, 1, 1], [], []>} : vector<8x8xbf16>, vector<8x8xbf16>, vector<8x8xf32> -> vector<8x8xf32>
    %64 = vector.extract_strided_slice %1 {offsets = [0, 24], sizes = [8, 8], strides = [1, 1]} : vector<8x32xf32> to vector<8x8xf32>
    %65 = arith.truncf %64 : vector<8x8xf32> to vector<8x8xbf16>
    %66 = vector.extract_strided_slice %3 {offsets = [0, 24], sizes = [8, 8], strides = [1, 1]} : vector<8x64xf32> to vector<8x8xf32>
    %67 = arith.truncf %66 : vector<8x8xf32> to vector<8x8xbf16>
    %68 = vector.extract_strided_slice %3 {offsets = [0, 56], sizes = [8, 8], strides = [1, 1]} : vector<8x64xf32> to vector<8x8xf32>
    %69 = arith.truncf %68 : vector<8x8xf32> to vector<8x8xbf16>
    %cst_19 = arith.constant dense<0.000000e+00> : vector<8x8xf32>
    %70 = tpu.matmul %65, %67, %cst_19 {dimension_numbers = #tpu.dot_dimension_numbers<[1], [1], [0], [0], [0, 0, 1, 0], [], []>} : vector<8x8xbf16>, vector<8x8xbf16>, vector<8x8xf32> -> vector<8x8xf32>
    %cst_20 = arith.constant 0.353553385 : f32
    %71 = vector.broadcast %cst_20 : f32 to vector<8x8xf32>
    %72 = arith.mulf %70, %71 : vector<8x8xf32>
    %cst_21 = arith.constant dense<0xFF800000> : vector<8xf32>
    %73 = vector.multi_reduction <maximumf>, %72, %cst_21 [1] : vector<8x8xf32> to vector<8xf32>
    %74 = vector.shape_cast %73 : vector<8xf32> to vector<8x1xf32>
    %75 = vector.broadcast %74 : vector<8x1xf32> to vector<8x8xf32>
    %76 = arith.subf %72, %75 : vector<8x8xf32>
    %77 = math.exp %76 : vector<8x8xf32>
    %cst_22 = arith.constant dense<0.000000e+00> : vector<8xf32>
    %78 = vector.multi_reduction <add>, %77, %cst_22 [1] : vector<8x8xf32> to vector<8xf32>
    %79 = vector.shape_cast %78 : vector<8xf32> to vector<8x1xf32>
    %80 = vector.broadcast %79 : vector<8x1xf32> to vector<8x8xf32>
    %81 = arith.divf %77, %80 : vector<8x8xf32>
    %82 = arith.truncf %81 : vector<8x8xf32> to vector<8x8xbf16>
    %cst_23 = arith.constant dense<0.000000e+00> : vector<8x8xf32>
    %83 = tpu.matmul %82, %69, %cst_23 {dimension_numbers = #tpu.dot_dimension_numbers<[1], [0], [0], [1], [0, 0, 1, 1], [], []>} : vector<8x8xbf16>, vector<8x8xbf16>, vector<8x8xf32> -> vector<8x8xf32>
    %84 = tpu.concatenate %23, %43, %63, %83 in 1 : vector<8x8xf32>, vector<8x8xf32>, vector<8x8xf32>, vector<8x8xf32> -> vector<8x32xf32>
    %c0_24 = arith.constant 0 : index
    %c0_25 = arith.constant 0 : index
    %c0_26 = arith.constant 0 : index
    %85 = vector.load %arg3[%c0_24, %c0_25, %c0_26] : memref<1x8x32xf32, #tpu.memory_space<vmem>>, vector<1x8x32xf32>
    %86 = vector.shape_cast %85 : vector<1x8x32xf32> to vector<8x32xf32>
    %87 = vector.shape_cast %84 : vector<8x32xf32> to vector<1x8x32xf32>
    tpu.vector_store %arg3[%c0_24, %c0_25, %c0_26], %87 {strides = array<i32>} : memref<1x8x32xf32, #tpu.memory_space<vmem>>, vector<1x8x32xf32>,
    return
  }
  func.func @transform_0(%arg0: i32) -> (i32, i32, i32) {
    %c0_i32 = arith.constant 0 : i32
    %c0_i32_0 = arith.constant 0 : i32
    %c0_i32_1 = arith.constant 0 : i32
    return %arg0, %c0_i32, %c0_i32_0 : i32, i32, i32
  }
  func.func @transform_1(%arg0: i32) -> (i32, i32, i32) {
    %c0_i32 = arith.constant 0 : i32
    %c0_i32_0 = arith.constant 0 : i32
    %c0_i32_1 = arith.constant 0 : i32
    return %arg0, %c0_i32, %c0_i32_0 : i32, i32, i32
  }
  func.func @transform_2(%arg0: i32) -> (i32, i32, i32) {
    %c0_i32 = arith.constant 0 : i32
    %c0_i32_0 = arith.constant 0 : i32
    %c0_i32_1 = arith.constant 0 : i32
    return %arg0, %c0_i32, %c0_i32_0 : i32, i32, i32
  }
}

module attributes {stable_mosaic.version = 11 : i64} {
  func.func @_ffn_res_ln_kernel(%arg0: i32, %arg1: i32, %arg2: memref<8x32xf32, #tpu.memory_space<vmem>>, %arg3: memref<32x64xbf16, #tpu.memory_space<vmem>>, %arg4: memref<1x64xf32, #tpu.memory_space<vmem>>, %arg5: memref<64x32xbf16, #tpu.memory_space<vmem>>, %arg6: memref<1x32xf32, #tpu.memory_space<vmem>>, %arg7: memref<1x32xf32, #tpu.memory_space<vmem>>, %arg8: memref<1x32xf32, #tpu.memory_space<vmem>>, %arg9: memref<1x32xf32, #tpu.memory_space<vmem>>, %arg10: memref<1x32xf32, #tpu.memory_space<vmem>>, %arg11: memref<8x32xf32, #tpu.memory_space<vmem>>, %arg12: memref<8x32xf32, #tpu.memory_space<vmem>>) attributes {dimension_semantics = [#tpu.dimension_semantics<parallel>, #tpu.dimension_semantics<arbitrary>], iteration_bounds = array<i64: 2, 1>, scalar_prefetch = 0 : i64, scratch_operands = 1 : i64, tpu.core_type = #tpu.core_type<tc>, window_params = [{transform_indices = @transform_0, window_bounds = array<i64: 8, 32>}, {transform_indices = @transform_1, window_bounds = array<i64: 32, 64>}, {transform_indices = @transform_2, window_bounds = array<i64: 1, 64>}, {transform_indices = @transform_3, window_bounds = array<i64: 64, 32>}, {pipeline_mode = #tpu.pipeline_mode<synchronous>, transform_indices = @transform_4, window_bounds = array<i64: 1, 32>}, {pipeline_mode = #tpu.pipeline_mode<synchronous>, transform_indices = @transform_5, window_bounds = array<i64: 1, 32>}, {pipeline_mode = #tpu.pipeline_mode<synchronous>, transform_indices = @transform_6, window_bounds = array<i64: 1, 32>}, {pipeline_mode = #tpu.pipeline_mode<synchronous>, transform_indices = @transform_7, window_bounds = array<i64: 1, 32>}, {pipeline_mode = #tpu.pipeline_mode<synchronous>, transform_indices = @transform_8, window_bounds = array<i64: 1, 32>}, {transform_indices = @transform_9, window_bounds = array<i64: 8, 32>}]} {
    %c0_i32 = arith.constant 0 : i32
    %0 = arith.cmpi eq, %arg1, %c0_i32 : i32
    %1 = arith.extui %0 : i1 to i32
    %c0_i32_0 = arith.constant 0 : i32
    %2 = arith.cmpi ne, %1, %c0_i32_0 : i32
    scf.if %2 {
      %cst_16 = arith.constant 0.000000e+00 : f32
      %21 = vector.broadcast %cst_16 : f32 to vector<8x32xf32>
      %c0_17 = arith.constant 0 : index
      %c0_18 = arith.constant 0 : index
      %22 = vector.load %arg12[%c0_17, %c0_18] : memref<8x32xf32, #tpu.memory_space<vmem>>, vector<8x32xf32>
      tpu.vector_store %arg12[%c0_17, %c0_18], %21 {strides = array<i32>} : memref<8x32xf32, #tpu.memory_space<vmem>>, vector<8x32xf32>,
    } else {
    }
    %c0 = arith.constant 0 : index
    %c0_1 = arith.constant 0 : index
    %3 = vector.load %arg2[%c0, %c0_1] : memref<8x32xf32, #tpu.memory_space<vmem>>, vector<8x32xf32>
    %4 = arith.truncf %3 : vector<8x32xf32> to vector<8x32xbf16>
    %c0_2 = arith.constant 0 : index
    %c0_3 = arith.constant 0 : index
    %5 = vector.load %arg3[%c0_2, %c0_3] : memref<32x64xbf16, #tpu.memory_space<vmem>>, vector<32x64xbf16>
    %cst = arith.constant dense<0.000000e+00> : vector<8x64xf32>
    %6 = tpu.matmul %4, %5, %cst {dimension_numbers = #tpu.dot_dimension_numbers<[1], [0], [0], [1], [0, 0, 1, 1], [], []>} : vector<8x32xbf16>, vector<32x64xbf16>, vector<8x64xf32> -> vector<8x64xf32>
    %c0_4 = arith.constant 0 : index
    %c0_5 = arith.constant 0 : index
    %7 = vector.load %arg4[%c0_4, %c0_5] : memref<1x64xf32, #tpu.memory_space<vmem>>, vector<1x64xf32>
    %8 = vector.broadcast %7 : vector<1x64xf32> to vector<8x64xf32>
    %9 = arith.addf %6, %8 : vector<8x64xf32>
    %cst_6 = arith.constant 0.000000e+00 : f32
    %10 = vector.broadcast %cst_6 : f32 to vector<8x64xf32>
    %11 = arith.maximumf %9, %10 : vector<8x64xf32>
    %c0_7 = arith.constant 0 : index
    %c0_8 = arith.constant 0 : index
    %12 = vector.load %arg12[%c0_7, %c0_8] : memref<8x32xf32, #tpu.memory_space<vmem>>, vector<8x32xf32>
    %13 = arith.truncf %11 : vector<8x64xf32> to vector<8x64xbf16>
    %c0_9 = arith.constant 0 : index
    %c0_10 = arith.constant 0 : index
    %14 = vector.load %arg5[%c0_9, %c0_10] : memref<64x32xbf16, #tpu.memory_space<vmem>>, vector<64x32xbf16>
    %cst_11 = arith.constant dense<0.000000e+00> : vector<8x32xf32>
    %15 = tpu.matmul %13, %14, %cst_11 {dimension_numbers = #tpu.dot_dimension_numbers<[1], [0], [0], [1], [0, 0, 1, 1], [], []>} : vector<8x64xbf16>, vector<64x32xbf16>, vector<8x32xf32> -> vector<8x32xf32>
    %16 = arith.addf %12, %15 : vector<8x32xf32>
    %c0_12 = arith.constant 0 : index
    %c0_13 = arith.constant 0 : index
    %17 = vector.load %arg12[%c0_12, %c0_13] : memref<8x32xf32, #tpu.memory_space<vmem>>, vector<8x32xf32>
    tpu.vector_store %arg12[%c0_12, %c0_13], %16 {strides = array<i32>} : memref<8x32xf32, #tpu.memory_space<vmem>>, vector<8x32xf32>,
    %c0_i32_14 = arith.constant 0 : i32
    %18 = arith.cmpi eq, %arg1, %c0_i32_14 : i32
    %19 = arith.extui %18 : i1 to i32
    %c0_i32_15 = arith.constant 0 : i32
    %20 = arith.cmpi ne, %19, %c0_i32_15 : i32
    scf.if %20 {
      %c0_16 = arith.constant 0 : index
      %c0_17 = arith.constant 0 : index
      %21 = vector.load %arg12[%c0_16, %c0_17] : memref<8x32xf32, #tpu.memory_space<vmem>>, vector<8x32xf32>
      %c0_18 = arith.constant 0 : index
      %c0_19 = arith.constant 0 : index
      %22 = vector.load %arg6[%c0_18, %c0_19] : memref<1x32xf32, #tpu.memory_space<vmem>>, vector<1x32xf32>
      %23 = vector.broadcast %22 : vector<1x32xf32> to vector<8x32xf32>
      %24 = arith.addf %21, %23 : vector<8x32xf32>
      %c0_20 = arith.constant 0 : index
      %c0_21 = arith.constant 0 : index
      %25 = vector.load %arg2[%c0_20, %c0_21] : memref<8x32xf32, #tpu.memory_space<vmem>>, vector<8x32xf32>
      %26 = arith.addf %24, %25 : vector<8x32xf32>
      %cst_22 = arith.constant dense<0.000000e+00> : vector<8xf32>
      %27 = vector.multi_reduction <add>, %26, %cst_22 [1] : vector<8x32xf32> to vector<8xf32>
      %28 = vector.shape_cast %27 : vector<8xf32> to vector<8x1xf32>
      %cst_23 = arith.constant 3.200000e+01 : f32
      %29 = vector.broadcast %cst_23 : f32 to vector<8x1xf32>
      %30 = arith.divf %28, %29 : vector<8x1xf32>
      %31 = vector.broadcast %30 : vector<8x1xf32> to vector<8x32xf32>
      %32 = arith.subf %26, %31 : vector<8x32xf32>
      %33 = arith.mulf %32, %32 : vector<8x32xf32>
      %cst_24 = arith.constant dense<0.000000e+00> : vector<8xf32>
      %34 = vector.multi_reduction <add>, %33, %cst_24 [1] : vector<8x32xf32> to vector<8xf32>
      %35 = vector.shape_cast %34 : vector<8xf32> to vector<8x1xf32>
      %cst_25 = arith.constant 3.200000e+01 : f32
      %36 = vector.broadcast %cst_25 : f32 to vector<8x1xf32>
      %37 = arith.divf %35, %36 : vector<8x1xf32>
      %38 = vector.broadcast %30 : vector<8x1xf32> to vector<8x32xf32>
      %39 = arith.subf %26, %38 : vector<8x32xf32>
      %cst_26 = arith.constant 9.99999974E-6 : f32
      %40 = vector.broadcast %cst_26 : f32 to vector<8x1xf32>
      %41 = arith.addf %37, %40 : vector<8x1xf32>
      %42 = math.rsqrt %41 : vector<8x1xf32>
      %43 = vector.broadcast %42 : vector<8x1xf32> to vector<8x32xf32>
      %44 = arith.mulf %39, %43 : vector<8x32xf32>
      %c0_27 = arith.constant 0 : index
      %c0_28 = arith.constant 0 : index
      %45 = vector.load %arg7[%c0_27, %c0_28] : memref<1x32xf32, #tpu.memory_space<vmem>>, vector<1x32xf32>
      %46 = vector.broadcast %45 : vector<1x32xf32> to vector<8x32xf32>
      %47 = arith.mulf %44, %46 : vector<8x32xf32>
      %c0_29 = arith.constant 0 : index
      %c0_30 = arith.constant 0 : index
      %48 = vector.load %arg8[%c0_29, %c0_30] : memref<1x32xf32, #tpu.memory_space<vmem>>, vector<1x32xf32>
      %49 = vector.broadcast %48 : vector<1x32xf32> to vector<8x32xf32>
      %50 = arith.addf %47, %49 : vector<8x32xf32>
      %cst_31 = arith.constant dense<0.000000e+00> : vector<8xf32>
      %51 = vector.multi_reduction <add>, %50, %cst_31 [1] : vector<8x32xf32> to vector<8xf32>
      %52 = vector.shape_cast %51 : vector<8xf32> to vector<8x1xf32>
      %cst_32 = arith.constant 3.200000e+01 : f32
      %53 = vector.broadcast %cst_32 : f32 to vector<8x1xf32>
      %54 = arith.divf %52, %53 : vector<8x1xf32>
      %55 = vector.broadcast %54 : vector<8x1xf32> to vector<8x32xf32>
      %56 = arith.subf %50, %55 : vector<8x32xf32>
      %57 = arith.mulf %56, %56 : vector<8x32xf32>
      %cst_33 = arith.constant dense<0.000000e+00> : vector<8xf32>
      %58 = vector.multi_reduction <add>, %57, %cst_33 [1] : vector<8x32xf32> to vector<8xf32>
      %59 = vector.shape_cast %58 : vector<8xf32> to vector<8x1xf32>
      %cst_34 = arith.constant 3.200000e+01 : f32
      %60 = vector.broadcast %cst_34 : f32 to vector<8x1xf32>
      %61 = arith.divf %59, %60 : vector<8x1xf32>
      %62 = vector.broadcast %54 : vector<8x1xf32> to vector<8x32xf32>
      %63 = arith.subf %50, %62 : vector<8x32xf32>
      %cst_35 = arith.constant 9.99999974E-6 : f32
      %64 = vector.broadcast %cst_35 : f32 to vector<8x1xf32>
      %65 = arith.addf %61, %64 : vector<8x1xf32>
      %66 = math.rsqrt %65 : vector<8x1xf32>
      %67 = vector.broadcast %66 : vector<8x1xf32> to vector<8x32xf32>
      %68 = arith.mulf %63, %67 : vector<8x32xf32>
      %c0_36 = arith.constant 0 : index
      %c0_37 = arith.constant 0 : index
      %69 = vector.load %arg9[%c0_36, %c0_37] : memref<1x32xf32, #tpu.memory_space<vmem>>, vector<1x32xf32>
      %70 = vector.broadcast %69 : vector<1x32xf32> to vector<8x32xf32>
      %71 = arith.mulf %68, %70 : vector<8x32xf32>
      %c0_38 = arith.constant 0 : index
      %c0_39 = arith.constant 0 : index
      %72 = vector.load %arg10[%c0_38, %c0_39] : memref<1x32xf32, #tpu.memory_space<vmem>>, vector<1x32xf32>
      %73 = vector.broadcast %72 : vector<1x32xf32> to vector<8x32xf32>
      %74 = arith.addf %71, %73 : vector<8x32xf32>
      %c0_40 = arith.constant 0 : index
      %c0_41 = arith.constant 0 : index
      %75 = vector.load %arg11[%c0_40, %c0_41] : memref<8x32xf32, #tpu.memory_space<vmem>>, vector<8x32xf32>
      tpu.vector_store %arg11[%c0_40, %c0_41], %74 {strides = array<i32>} : memref<8x32xf32, #tpu.memory_space<vmem>>, vector<8x32xf32>,
    } else {
    }
    return
  }
  func.func @transform_0(%arg0: i32, %arg1: i32) -> (i32, i32) {
    %c0_i32 = arith.constant 0 : i32
    %c0_i32_0 = arith.constant 0 : i32
    return %arg0, %c0_i32 : i32, i32
  }
  func.func @transform_1(%arg0: i32, %arg1: i32) -> (i32, i32) {
    %c0_i32 = arith.constant 0 : i32
    %c0_i32_0 = arith.constant 0 : i32
    return %c0_i32, %arg1 : i32, i32
  }
  func.func @transform_2(%arg0: i32, %arg1: i32) -> (i32, i32) {
    %c0_i32 = arith.constant 0 : i32
    %c0_i32_0 = arith.constant 0 : i32
    return %c0_i32, %arg1 : i32, i32
  }
  func.func @transform_3(%arg0: i32, %arg1: i32) -> (i32, i32) {
    %c0_i32 = arith.constant 0 : i32
    %c0_i32_0 = arith.constant 0 : i32
    return %arg1, %c0_i32 : i32, i32
  }
  func.func @transform_4(%arg0: i32, %arg1: i32) -> (i32, i32) {
    %c0_i32 = arith.constant 0 : i32
    %c0_i32_0 = arith.constant 0 : i32
    %c0_i32_1 = arith.constant 0 : i32
    return %c0_i32, %c0_i32_0 : i32, i32
  }
  func.func @transform_5(%arg0: i32, %arg1: i32) -> (i32, i32) {
    %c0_i32 = arith.constant 0 : i32
    %c0_i32_0 = arith.constant 0 : i32
    %c0_i32_1 = arith.constant 0 : i32
    return %c0_i32, %c0_i32_0 : i32, i32
  }
  func.func @transform_6(%arg0: i32, %arg1: i32) -> (i32, i32) {
    %c0_i32 = arith.constant 0 : i32
    %c0_i32_0 = arith.constant 0 : i32
    %c0_i32_1 = arith.constant 0 : i32
    return %c0_i32, %c0_i32_0 : i32, i32
  }
  func.func @transform_7(%arg0: i32, %arg1: i32) -> (i32, i32) {
    %c0_i32 = arith.constant 0 : i32
    %c0_i32_0 = arith.constant 0 : i32
    %c0_i32_1 = arith.constant 0 : i32
    return %c0_i32, %c0_i32_0 : i32, i32
  }
  func.func @transform_8(%arg0: i32, %arg1: i32) -> (i32, i32) {
    %c0_i32 = arith.constant 0 : i32
    %c0_i32_0 = arith.constant 0 : i32
    %c0_i32_1 = arith.constant 0 : i32
    return %c0_i32, %c0_i32_0 : i32, i32
  }
  func.func @transform_9(%arg0: i32, %arg1: i32) -> (i32, i32) {
    %c0_i32 = arith.constant 0 : i32
    %c0_i32_0 = arith.constant 0 : i32
    return %arg0, %c0_i32 : i32, i32
  }
}

module attributes {stable_mosaic.version = 11 : i64} {
  func.func @_ffn_res_ln_kernel(%arg0: i32, %arg1: i32, %arg2: memref<8x32xf32, #tpu.memory_space<vmem>>, %arg3: memref<32x64xbf16, #tpu.memory_space<vmem>>, %arg4: memref<1x64xf32, #tpu.memory_space<vmem>>, %arg5: memref<64x32xbf16, #tpu.memory_space<vmem>>, %arg6: memref<1x32xf32, #tpu.memory_space<vmem>>, %arg7: memref<1x32xf32, #tpu.memory_space<vmem>>, %arg8: memref<1x32xf32, #tpu.memory_space<vmem>>, %arg9: memref<8x32xf32, #tpu.memory_space<vmem>>, %arg10: memref<8x32xf32, #tpu.memory_space<vmem>>) attributes {dimension_semantics = [#tpu.dimension_semantics<parallel>, #tpu.dimension_semantics<arbitrary>], iteration_bounds = array<i64: 2, 1>, scalar_prefetch = 0 : i64, scratch_operands = 1 : i64, tpu.core_type = #tpu.core_type<tc>, window_params = [{transform_indices = @transform_0, window_bounds = array<i64: 8, 32>}, {transform_indices = @transform_1, window_bounds = array<i64: 32, 64>}, {transform_indices = @transform_2, window_bounds = array<i64: 1, 64>}, {transform_indices = @transform_3, window_bounds = array<i64: 64, 32>}, {pipeline_mode = #tpu.pipeline_mode<synchronous>, transform_indices = @transform_4, window_bounds = array<i64: 1, 32>}, {pipeline_mode = #tpu.pipeline_mode<synchronous>, transform_indices = @transform_5, window_bounds = array<i64: 1, 32>}, {pipeline_mode = #tpu.pipeline_mode<synchronous>, transform_indices = @transform_6, window_bounds = array<i64: 1, 32>}, {transform_indices = @transform_7, window_bounds = array<i64: 8, 32>}]} {
    %c0_i32 = arith.constant 0 : i32
    %0 = arith.cmpi eq, %arg1, %c0_i32 : i32
    %1 = arith.extui %0 : i1 to i32
    %c0_i32_0 = arith.constant 0 : i32
    %2 = arith.cmpi ne, %1, %c0_i32_0 : i32
    scf.if %2 {
      %cst_16 = arith.constant 0.000000e+00 : f32
      %21 = vector.broadcast %cst_16 : f32 to vector<8x32xf32>
      %c0_17 = arith.constant 0 : index
      %c0_18 = arith.constant 0 : index
      %22 = vector.load %arg10[%c0_17, %c0_18] : memref<8x32xf32, #tpu.memory_space<vmem>>, vector<8x32xf32>
      tpu.vector_store %arg10[%c0_17, %c0_18], %21 {strides = array<i32>} : memref<8x32xf32, #tpu.memory_space<vmem>>, vector<8x32xf32>,
    } else {
    }
    %c0 = arith.constant 0 : index
    %c0_1 = arith.constant 0 : index
    %3 = vector.load %arg2[%c0, %c0_1] : memref<8x32xf32, #tpu.memory_space<vmem>>, vector<8x32xf32>
    %4 = arith.truncf %3 : vector<8x32xf32> to vector<8x32xbf16>
    %c0_2 = arith.constant 0 : index
    %c0_3 = arith.constant 0 : index
    %5 = vector.load %arg3[%c0_2, %c0_3] : memref<32x64xbf16, #tpu.memory_space<vmem>>, vector<32x64xbf16>
    %cst = arith.constant dense<0.000000e+00> : vector<8x64xf32>
    %6 = tpu.matmul %4, %5, %cst {dimension_numbers = #tpu.dot_dimension_numbers<[1], [0], [0], [1], [0, 0, 1, 1], [], []>} : vector<8x32xbf16>, vector<32x64xbf16>, vector<8x64xf32> -> vector<8x64xf32>
    %c0_4 = arith.constant 0 : index
    %c0_5 = arith.constant 0 : index
    %7 = vector.load %arg4[%c0_4, %c0_5] : memref<1x64xf32, #tpu.memory_space<vmem>>, vector<1x64xf32>
    %8 = vector.broadcast %7 : vector<1x64xf32> to vector<8x64xf32>
    %9 = arith.addf %6, %8 : vector<8x64xf32>
    %cst_6 = arith.constant 0.000000e+00 : f32
    %10 = vector.broadcast %cst_6 : f32 to vector<8x64xf32>
    %11 = arith.maximumf %9, %10 : vector<8x64xf32>
    %c0_7 = arith.constant 0 : index
    %c0_8 = arith.constant 0 : index
    %12 = vector.load %arg10[%c0_7, %c0_8] : memref<8x32xf32, #tpu.memory_space<vmem>>, vector<8x32xf32>
    %13 = arith.truncf %11 : vector<8x64xf32> to vector<8x64xbf16>
    %c0_9 = arith.constant 0 : index
    %c0_10 = arith.constant 0 : index
    %14 = vector.load %arg5[%c0_9, %c0_10] : memref<64x32xbf16, #tpu.memory_space<vmem>>, vector<64x32xbf16>
    %cst_11 = arith.constant dense<0.000000e+00> : vector<8x32xf32>
    %15 = tpu.matmul %13, %14, %cst_11 {dimension_numbers = #tpu.dot_dimension_numbers<[1], [0], [0], [1], [0, 0, 1, 1], [], []>} : vector<8x64xbf16>, vector<64x32xbf16>, vector<8x32xf32> -> vector<8x32xf32>
    %16 = arith.addf %12, %15 : vector<8x32xf32>
    %c0_12 = arith.constant 0 : index
    %c0_13 = arith.constant 0 : index
    %17 = vector.load %arg10[%c0_12, %c0_13] : memref<8x32xf32, #tpu.memory_space<vmem>>, vector<8x32xf32>
    tpu.vector_store %arg10[%c0_12, %c0_13], %16 {strides = array<i32>} : memref<8x32xf32, #tpu.memory_space<vmem>>, vector<8x32xf32>,
    %c0_i32_14 = arith.constant 0 : i32
    %18 = arith.cmpi eq, %arg1, %c0_i32_14 : i32
    %19 = arith.extui %18 : i1 to i32
    %c0_i32_15 = arith.constant 0 : i32
    %20 = arith.cmpi ne, %19, %c0_i32_15 : i32
    scf.if %20 {
      %c0_16 = arith.constant 0 : index
      %c0_17 = arith.constant 0 : index
      %21 = vector.load %arg10[%c0_16, %c0_17] : memref<8x32xf32, #tpu.memory_space<vmem>>, vector<8x32xf32>
      %c0_18 = arith.constant 0 : index
      %c0_19 = arith.constant 0 : index
      %22 = vector.load %arg6[%c0_18, %c0_19] : memref<1x32xf32, #tpu.memory_space<vmem>>, vector<1x32xf32>
      %23 = vector.broadcast %22 : vector<1x32xf32> to vector<8x32xf32>
      %24 = arith.addf %21, %23 : vector<8x32xf32>
      %c0_20 = arith.constant 0 : index
      %c0_21 = arith.constant 0 : index
      %25 = vector.load %arg2[%c0_20, %c0_21] : memref<8x32xf32, #tpu.memory_space<vmem>>, vector<8x32xf32>
      %26 = arith.addf %24, %25 : vector<8x32xf32>
      %cst_22 = arith.constant dense<0.000000e+00> : vector<8xf32>
      %27 = vector.multi_reduction <add>, %26, %cst_22 [1] : vector<8x32xf32> to vector<8xf32>
      %28 = vector.shape_cast %27 : vector<8xf32> to vector<8x1xf32>
      %cst_23 = arith.constant 3.200000e+01 : f32
      %29 = vector.broadcast %cst_23 : f32 to vector<8x1xf32>
      %30 = arith.divf %28, %29 : vector<8x1xf32>
      %31 = vector.broadcast %30 : vector<8x1xf32> to vector<8x32xf32>
      %32 = arith.subf %26, %31 : vector<8x32xf32>
      %33 = arith.mulf %32, %32 : vector<8x32xf32>
      %cst_24 = arith.constant dense<0.000000e+00> : vector<8xf32>
      %34 = vector.multi_reduction <add>, %33, %cst_24 [1] : vector<8x32xf32> to vector<8xf32>
      %35 = vector.shape_cast %34 : vector<8xf32> to vector<8x1xf32>
      %cst_25 = arith.constant 3.200000e+01 : f32
      %36 = vector.broadcast %cst_25 : f32 to vector<8x1xf32>
      %37 = arith.divf %35, %36 : vector<8x1xf32>
      %38 = vector.broadcast %30 : vector<8x1xf32> to vector<8x32xf32>
      %39 = arith.subf %26, %38 : vector<8x32xf32>
      %cst_26 = arith.constant 9.99999974E-6 : f32
      %40 = vector.broadcast %cst_26 : f32 to vector<8x1xf32>
      %41 = arith.addf %37, %40 : vector<8x1xf32>
      %42 = math.rsqrt %41 : vector<8x1xf32>
      %43 = vector.broadcast %42 : vector<8x1xf32> to vector<8x32xf32>
      %44 = arith.mulf %39, %43 : vector<8x32xf32>
      %c0_27 = arith.constant 0 : index
      %c0_28 = arith.constant 0 : index
      %45 = vector.load %arg7[%c0_27, %c0_28] : memref<1x32xf32, #tpu.memory_space<vmem>>, vector<1x32xf32>
      %46 = vector.broadcast %45 : vector<1x32xf32> to vector<8x32xf32>
      %47 = arith.mulf %44, %46 : vector<8x32xf32>
      %c0_29 = arith.constant 0 : index
      %c0_30 = arith.constant 0 : index
      %48 = vector.load %arg8[%c0_29, %c0_30] : memref<1x32xf32, #tpu.memory_space<vmem>>, vector<1x32xf32>
      %49 = vector.broadcast %48 : vector<1x32xf32> to vector<8x32xf32>
      %50 = arith.addf %47, %49 : vector<8x32xf32>
      %c0_31 = arith.constant 0 : index
      %c0_32 = arith.constant 0 : index
      %51 = vector.load %arg9[%c0_31, %c0_32] : memref<8x32xf32, #tpu.memory_space<vmem>>, vector<8x32xf32>
      tpu.vector_store %arg9[%c0_31, %c0_32], %50 {strides = array<i32>} : memref<8x32xf32, #tpu.memory_space<vmem>>, vector<8x32xf32>,
    } else {
    }
    return
  }
  func.func @transform_0(%arg0: i32, %arg1: i32) -> (i32, i32) {
    %c0_i32 = arith.constant 0 : i32
    %c0_i32_0 = arith.constant 0 : i32
    return %arg0, %c0_i32 : i32, i32
  }
  func.func @transform_1(%arg0: i32, %arg1: i32) -> (i32, i32) {
    %c0_i32 = arith.constant 0 : i32
    %c0_i32_0 = arith.constant 0 : i32
    return %c0_i32, %arg1 : i32, i32
  }
  func.func @transform_2(%arg0: i32, %arg1: i32) -> (i32, i32) {
    %c0_i32 = arith.constant 0 : i32
    %c0_i32_0 = arith.constant 0 : i32
    return %c0_i32, %arg1 : i32, i32
  }
  func.func @transform_3(%arg0: i32, %arg1: i32) -> (i32, i32) {
    %c0_i32 = arith.constant 0 : i32
    %c0_i32_0 = arith.constant 0 : i32
    return %arg1, %c0_i32 : i32, i32
  }
  func.func @transform_4(%arg0: i32, %arg1: i32) -> (i32, i32) {
    %c0_i32 = arith.constant 0 : i32
    %c0_i32_0 = arith.constant 0 : i32
    %c0_i32_1 = arith.constant 0 : i32
    return %c0_i32, %c0_i32_0 : i32, i32
  }
  func.func @transform_5(%arg0: i32, %arg1: i32) -> (i32, i32) {
    %c0_i32 = arith.constant 0 : i32
    %c0_i32_0 = arith.constant 0 : i32
    %c0_i32_1 = arith.constant 0 : i32
    return %c0_i32, %c0_i32_0 : i32, i32
  }
  func.func @transform_6(%arg0: i32, %arg1: i32) -> (i32, i32) {
    %c0_i32 = arith.constant 0 : i32
    %c0_i32_0 = arith.constant 0 : i32
    %c0_i32_1 = arith.constant 0 : i32
    return %c0_i32, %c0_i32_0 : i32, i32
  }
  func.func @transform_7(%arg0: i32, %arg1: i32) -> (i32, i32) {
    %c0_i32 = arith.constant 0 : i32
    %c0_i32_0 = arith.constant 0 : i32
    return %arg0, %c0_i32 : i32, i32
  }
}

</mosaic_0001>

<llo_original>
// kernel: transformer_decoder.16
$region0: #{transformer_decoder.16}
  #allocation0 [shape = 'u32[]', space=smem, size = 0x4, offset = 0x4, fixed_abs, tag = 'smem constant byte address 0x4 - core index']
  #allocation1 [shape = 'u32[144,128]{1,0:T(1,128)}', space=vmem, size = 0x12000, scoped, tag = 'internal scratch']
  %s0 = inlined_call_operand.vmem [shape: f32[16,32], index: 0, kind: input, shape index: {}]
  %s1 = inlined_call_operand.vmem [shape: bf16[32,96], index: 1, kind: input, shape index: {}]
  %s2 = inlined_call_operand.vmem [shape: f32[1,96], index: 2, kind: input, shape index: {}]
  %s3 = inlined_call_operand.vmem [shape: f32[16,96], index: 3, kind: output, shape index: {}]
  %s4 = sld [smem:[#allocation0]]
  $region45: #{transformer_decoder.16} parent=0
    _
  %s6 = ssub.s32 1, %s4
  %s7 = scalar_select 0, %s6, %s4
  loop: start=0, step=1, limit=4
  $region2: #{transformer_decoder.16} parent=0 // loop_pre_header
    _
  $region3: #{transformer_decoder.16} parent=0 // loop_header
    %s9 = sphi 0, %s13
    %p10 = scmp.ge.s32.totalorder %s9, 4
    %s19 = sphi 0, %s21
    %s22 = sphi 0, %s19
    %s23 = sphi 0, %s22
    %s39 = sphi 0, %s23
    %s43 = sphi 0, %s43
    %s45 = sphi 0, %s43
    %s46 = sphi 0, %s45
    %s60 = sphi 0, %s46
    %s64 = sphi 0, %s64
    %s66 = sphi 0, %s64
    %s67 = sphi 0, %s66
    %s81 = sphi 0, %s67
    %s87 = sphi 0, %s89
    %s90 = sphi 0, %s87
    %s91 = sphi 0, %s90
    %s107 = sphi 0, %s91
  $region4: #{transformer_decoder.16} parent=0 // loop_header_branch
    %12 = sbr.rel (%p10) target = $region8
  $region5: #{transformer_decoder.16} parent=0 // loop_body
    %s14 = ssub.s32 %s9, 1
    %s15 = ssub.s32 %s9, 2
    %s16 = sadd.s32 %s9, 1
    %s17 = ssub.s32 %s9, %s16
    %p18 = scmp.eq.s32.totalorder %s17, 0
    %s20 = sadd.s32 %s19, 1
    %s21 = scalar_select %p18, %s19, %s20
    %p24 = pneg %p18
    %p25 = scmp.eq.s32.totalorder %s9, 1
    %p26 = por %p24, %p25
    %p27 = scmp.ne.s32.totalorder %s19, %s22
    %p28 = scmp.eq.s32.totalorder %s9, 0
    %p29 = por %p27, %p28
    %p30 = scmp.ne.s32.totalorder %s19, %s22
    %p31 = scmp.eq.s32.totalorder %s14, 1
    %p32 = por %p30, %p31
    %p33 = scmp.ne.s32.totalorder %s22, %s23
    %p34 = scmp.eq.s32.totalorder %s14, 0
    %p35 = por %p33, %p34
    %p36 = scmp.ne.s32.totalorder %s22, %s23
    %p37 = scmp.eq.s32.totalorder %s15, 1
    %p38 = por %p36, %p37
    %p40 = scmp.ne.s32.totalorder %s23, %s39
    %p41 = scmp.eq.s32.totalorder %s15, 0
    %p42 = por %p40, %p41
    %s44 = sadd.s32 %s43, 1
    %p47 = scmp.eq.s32.totalorder %s9, 1
    %p48 = scmp.ne.s32.totalorder %s43, %s45
    %p49 = scmp.eq.s32.totalorder %s9, 0
    %p50 = por %p48, %p49
    %p51 = scmp.ne.s32.totalorder %s43, %s45
    %p52 = scmp.eq.s32.totalorder %s14, 1
    %p53 = por %p51, %p52
    %p54 = scmp.ne.s32.totalorder %s45, %s46
    %p55 = scmp.eq.s32.totalorder %s14, 0
    %p56 = por %p54, %p55
    %p57 = scmp.ne.s32.totalorder %s45, %s46
    %p58 = scmp.eq.s32.totalorder %s15, 1
    %p59 = por %p57, %p58
    %p61 = scmp.ne.s32.totalorder %s46, %s60
    %p62 = scmp.eq.s32.totalorder %s15, 0
    %p63 = por %p61, %p62
    %s65 = sadd.s32 %s64, 1
    %p68 = scmp.eq.s32.totalorder %s9, 1
    %p69 = scmp.ne.s32.totalorder %s64, %s66
    %p70 = scmp.eq.s32.totalorder %s9, 0
    %p71 = por %p69, %p70
    %p72 = scmp.ne.s32.totalorder %s64, %s66
    %p73 = scmp.eq.s32.totalorder %s14, 1
    %p74 = por %p72, %p73
    %p75 = scmp.ne.s32.totalorder %s66, %s67
    %p76 = scmp.eq.s32.totalorder %s14, 0
    %p77 = por %p75, %p76
    %p78 = scmp.ne.s32.totalorder %s66, %s67
    %p79 = scmp.eq.s32.totalorder %s15, 1
    %p80 = por %p78, %p79
    %p82 = scmp.ne.s32.totalorder %s67, %s81
    %p83 = scmp.eq.s32.totalorder %s15, 0
    %p84 = por %p82, %p83
    %s85 = ssub.s32 %s9, %s16
    %p86 = scmp.eq.s32.totalorder %s85, 0
    %s88 = sadd.s32 %s87, 1
    %s89 = scalar_select %p86, %s87, %s88
    %p92 = pneg %p86
    %p93 = scmp.eq.s32.totalorder %s9, 1
    %p94 = por %p92, %p93
    %p95 = scmp.ne.s32.totalorder %s87, %s90
    %p96 = scmp.eq.s32.totalorder %s9, 0
    %p97 = por %p95, %p96
    %p98 = scmp.ne.s32.totalorder %s87, %s90
    %p99 = scmp.eq.s32.totalorder %s14, 1
    %p100 = por %p98, %p99
    %p101 = scmp.ne.s32.totalorder %s90, %s91
    %p102 = scmp.eq.s32.totalorder %s14, 0
    %p103 = por %p101, %p102
    %p104 = scmp.ne.s32.totalorder %s90, %s91
    %p105 = scmp.eq.s32.totalorder %s15, 1
    %p106 = por %p104, %p105
    %p108 = scmp.ne.s32.totalorder %s91, %s107
    %p109 = scmp.eq.s32.totalorder %s15, 0
    %p110 = por %p108, %p109
    %p111 = scmp.le.s32.totalorder 1, %s9
    %p112 = scmp.lt.s32.totalorder %s9, 3
    %p113 = pnand %p111, %p112
    %p114 = pneg %p113
    // Predicated region
    $region9: #{transformer_decoder.16} parent=5 // pred_check
      _
    $region10: #{transformer_decoder.16} parent=5 // pred_check_branch
      %116 = sbr.rel (%p113) target = $region12
    $region11: #{transformer_decoder.16} parent=5 // pred_region
      %s117 = ssub.s32 %s9, 1
      // Predicated region
      $region13: #{transformer_decoder.16} parent=11 // pred_check
        %p118 = pneg %p56
      $region14: #{transformer_decoder.16} parent=11 // pred_check_branch
        %120 = sbr.rel (%p118) target = $region16
      $region15: #{transformer_decoder.16} parent=11 // pred_region
        _
      $region16: #{transformer_decoder.16} parent=11 // pred_fallthru
        _
      // Predicated region
      $region17: #{transformer_decoder.16} parent=11 // pred_check
        %p121 = pneg %p77
      $region18: #{transformer_decoder.16} parent=11 // pred_check_branch
        %123 = sbr.rel (%p121) target = $region20
      $region19: #{transformer_decoder.16} parent=11 // pred_region
        _
      $region20: #{transformer_decoder.16} parent=11 // pred_fallthru
        _
    $region12: #{transformer_decoder.16} parent=5 // pred_fallthru
      _
    %p124 = scmp.lt.s32.totalorder %s9, 2
    // Predicated region
    $region21: #{transformer_decoder.16} parent=5 // pred_check
      %p125 = pneg %p124
    $region22: #{transformer_decoder.16} parent=5 // pred_check_branch
      %127 = sbr.rel (%p125) target = $region24
    $region23: #{transformer_decoder.16} parent=5 // pred_region
      // Predicated region
      $region25: #{transformer_decoder.16} parent=23 // pred_check
        %p128 = pneg %p29
      $region26: #{transformer_decoder.16} parent=23 // pred_check_branch
        %130 = sbr.rel (%p128) target = $region28
      $region27: #{transformer_decoder.16} parent=23 // pred_region
        %p131 = scmp.lt.s32.totalorder %s9, 1
        %s132 = scalar_select %p131, %s9, 1
        %s133 = smul.addr %s132, 8
        %s134 = scalar_lea.vmem %s0, %s133
      $region28: #{transformer_decoder.16} parent=23 // pred_fallthru
        _
    $region24: #{transformer_decoder.16} parent=5 // pred_fallthru
      _
    %p135 = scmp.le.s32.totalorder 1, %s9
    %p136 = scmp.lt.s32.totalorder %s9, 3
    %p137 = pnand %p135, %p136
    %p138 = pneg %p137
    // Predicated region
    $region29: #{transformer_decoder.16} parent=5 // pred_check
      _
    $region30: #{transformer_decoder.16} parent=5 // pred_check_branch
      %140 = sbr.rel (%p137) target = $region32
    $region31: #{transformer_decoder.16} parent=5 // pred_region
      %s141 = ssub.s32 %s9, 1
      %p142 = scmp.lt.s32.totalorder %s14, 1
      %s143 = scalar_select %p142, %s14, 1
      %s144 = smul.addr %s143, 8
      %s145 = scalar_lea.vmem %s0, %s144
      %p146 = pneg %p35
      %p147 = pneg %p32
      %p148 = pneg %p56
      %p149 = pneg %p53
      %p150 = pneg %p77
      %p151 = pneg %p74
      %p152 = pneg %p103
      %p153 = pneg %p100
      %p154 = scmp.lt.s32.totalorder %s14, 1
      %s155 = scalar_select %p154, %s14, 1
      %s156 = smul.addr %s155, 8
      %s157 = scalar_lea.vmem %s3, %s156
      %p158 = scmp.lt.s32.totalorder %s14, 1
      %s159 = scalar_select %p158, %s14, 1
      %s160 = smul.addr %s159, 8
      %s161 = scalar_lea.vmem %s0, %s160
      %p162 = scmp.lt.s32.totalorder %s14, 1
      %s163 = scalar_select %p162, %s14, 1
      %s164 = smul.addr %s163, 8
      %s165 = scalar_lea.vmem %s3, %s164
      %v167 = vld [vmem:[%s161] sm:$0xff]
      %v168 = vpack.c.bf16 %v167, %v167
      %v169 = vld [vmem:[%s1] sm:$0xf]
      %v170 = vld [vmem:[%s1 + $0x4] sm:$0xf]
      %v171 = vld [vmem:[%s1 + $0x8] sm:$0xf]
      %v172 = vld [vmem:[%s1 + $0xc] sm:$0xf]
      %v173 = vld [vmem:[%s2] sm:$0x1]
      %v175 = vlaneseq
      %v176 = vshrl.u32 %v175, 7
      %v177 = vsub.s32 0, %v176
      %v178 = vrot.slane %v173, %v177
      %v184 = vunpack.c.l.b16 %v169
      %v185 = vunpack.c.l.b16 %v170
      %v186 = vunpack.c.l.b16 %v171
      %v187 = vunpack.c.l.b16 %v172
      %v188 = vpack.c.b16 %v185, %v184
      %v189 = vpack.c.b16 %v187, %v186
      %vm192 = vcmask 261120
      %v194 = vsel %vm192, %v168, 0
      %196 = vmatprep.subr.bf16.mxu0 0
      %197 = vmatpush1.bf16.msra.mxu0 %v188
      %198 = vmatprep.subr.bf16.mxu0 0
      %199 = vmatpush1.bf16.msra.mxu0 %v189
      %200 = vmatprep.subr.bf16.mxu0 0
      %201 = vmatpush1.bf16.msra.mxu0 0
      %202 = vmatprep.subr.bf16.mxu0 0
      %203 = vmatpush1.bf16.msra.mxu0 0
      %204 = vmatprep.subr.bf16.mxu0 0
      %205 = vmatpush1.bf16.msra.mxu0 0
      %206 = vmatprep.subr.bf16.mxu0 0
      %207 = vmatpush1.bf16.msra.mxu0 0
      %208 = vmatprep.subr.bf16.mxu0 0
      %209 = vmatpush1.bf16.msra.mxu0 0
      %210 = vmatprep.subr.bf16.mxu0 0
      %211 = vmatpush1.bf16.msra.mxu0 0
      %212 = vmatprep.subr.bf16.mxu0 0
      %213 = vmatpush1.bf16.msra.mxu0 0
      %214 = vmatprep.subr.bf16.mxu0 0
      %215 = vmatpush1.bf16.msra.mxu0 0
      %216 = vmatprep.subr.bf16.mxu0 0
      %217 = vmatpush1.bf16.msra.mxu0 0
      %218 = vmatprep.subr.bf16.mxu0 0
      %219 = vmatpush1.bf16.msra.mxu0 0
      %220 = vmatprep.subr.bf16.mxu0 0
      %221 = vmatpush1.bf16.msra.mxu0 0
      %222 = vmatprep.subr.bf16.mxu0 0
      %223 = vmatpush1.bf16.msra.mxu0 0
      %224 = vmatprep.subr.bf16.mxu0 0
      %225 = vmatpush1.bf16.msra.mxu0 0
      %226 = vmatprep.subr.bf16.mxu0 0
      %227 = vmatpush1.bf16.msra.mxu0 0
      %228 = vmatprep.mubr.bf16.mxu0 0
      %229 = vmatmul.mubr.bf16.gmra.mrb[0].mxu0 %v194
      %v230 = vpop.f32.mrb[0].mxu0
      %v231 = vadd.f32 %v178, %v230
      %v232 = vpop.f32.mrb[0].mxu0
      %v233 = vpop.f32.mrb[0].mxu0
      %v234 = vpop.f32.mrb[0].mxu0
      %235 = vdwg.mxu0
      %vm236 = vcmask 785408
      %237 = vst.msk [vmem:[%s165] sm:$0xff] %vm236, %v231
      %p238 = scmp.lt.s32.totalorder %s14, 1
      %s239 = scalar_select %p238, %s14, 1
      %s240 = smul.addr %s239, 8
      %s241 = scalar_lea.vmem %s3, %s240
      // Predicated region
      $region33: #{transformer_decoder.16} parent=31 // pred_check
        %p242 = pneg %p100
      $region34: #{transformer_decoder.16} parent=31 // pred_check_branch
        %244 = sbr.rel (%p242) target = $region36
      $region35: #{transformer_decoder.16} parent=31 // pred_region
        _
      $region36: #{transformer_decoder.16} parent=31 // pred_fallthru
        _
    $region32: #{transformer_decoder.16} parent=5 // pred_fallthru
      _
    %p245 = scmp.le.s32.totalorder 2, %s9
    // Predicated region
    $region37: #{transformer_decoder.16} parent=5 // pred_check
      %p246 = pneg %p245
    $region38: #{transformer_decoder.16} parent=5 // pred_check_branch
      %248 = sbr.rel (%p246) target = $region40
    $region39: #{transformer_decoder.16} parent=5 // pred_region
      %s249 = ssub.s32 %s9, 2
      // Predicated region
      $region41: #{transformer_decoder.16} parent=39 // pred_check
        %p250 = pneg %p106
      $region42: #{transformer_decoder.16} parent=39 // pred_check_branch
        %252 = sbr.rel (%p250) target = $region44
      $region43: #{transformer_decoder.16} parent=39 // pred_region
        %p253 = scmp.lt.s32.totalorder %s15, 1
        %s254 = scalar_select %p253, %s15, 1
        %s255 = smul.addr %s254, 8
        %s256 = scalar_lea.vmem %s3, %s255
      $region44: #{transformer_decoder.16} parent=39 // pred_fallthru
        _
    $region40: #{transformer_decoder.16} parent=5 // pred_fallthru
      _
  $region6: #{transformer_decoder.16} parent=0 // loop_footer
    %s13 = sadd.s32 1, %s9
  $region7: #{transformer_decoder.16} parent=0 // loop_footer_branch
    %8 = sbr.rel target = $region3
  $region8: #{transformer_decoder.16} parent=0 // loop_exit
    _

// kernel: transformer_decoder.28
$region0: #{transformer_decoder.28}
  #allocation0 [shape = 'u32[]', space=smem, size = 0x4, offset = 0x4, fixed_abs, tag = 'smem constant byte address 0x4 - core index']
  #allocation1 [shape = 'u32[144,128]{1,0:T(1,128)}', space=vmem, size = 0x12000, scoped, tag = 'internal scratch']
  %s0 = inlined_call_operand.vmem [shape: f32[16,32], index: 0, kind: input, shape index: {}]
  %s1 = inlined_call_operand.vmem [shape: bf16[32,64], index: 1, kind: input, shape index: {}]
  %s2 = inlined_call_operand.vmem [shape: f32[1,64], index: 2, kind: input, shape index: {}]
  %s3 = inlined_call_operand.vmem [shape: f32[16,64], index: 3, kind: output, shape index: {}]
  %s4 = sld [smem:[#allocation0]]
  $region45: #{transformer_decoder.28} parent=0
    _
  %s6 = ssub.s32 1, %s4
  %s7 = scalar_select 0, %s6, %s4
  loop: start=0, step=1, limit=4
  $region2: #{transformer_decoder.28} parent=0 // loop_pre_header
    _
  $region3: #{transformer_decoder.28} parent=0 // loop_header
    %s9 = sphi 0, %s13
    %p10 = scmp.ge.s32.totalorder %s9, 4
    %s19 = sphi 0, %s21
    %s22 = sphi 0, %s19
    %s23 = sphi 0, %s22
    %s39 = sphi 0, %s23
    %s43 = sphi 0, %s43
    %s45 = sphi 0, %s43
    %s46 = sphi 0, %s45
    %s60 = sphi 0, %s46
    %s64 = sphi 0, %s64
    %s66 = sphi 0, %s64
    %s67 = sphi 0, %s66
    %s81 = sphi 0, %s67
    %s87 = sphi 0, %s89
    %s90 = sphi 0, %s87
    %s91 = sphi 0, %s90
    %s107 = sphi 0, %s91
  $region4: #{transformer_decoder.28} parent=0 // loop_header_branch
    %12 = sbr.rel (%p10) target = $region8
  $region5: #{transformer_decoder.28} parent=0 // loop_body
    %s14 = ssub.s32 %s9, 1
    %s15 = ssub.s32 %s9, 2
    %s16 = sadd.s32 %s9, 1
    %s17 = ssub.s32 %s9, %s16
    %p18 = scmp.eq.s32.totalorder %s17, 0
    %s20 = sadd.s32 %s19, 1
    %s21 = scalar_select %p18, %s19, %s20
    %p24 = pneg %p18
    %p25 = scmp.eq.s32.totalorder %s9, 1
    %p26 = por %p24, %p25
    %p27 = scmp.ne.s32.totalorder %s19, %s22
    %p28 = scmp.eq.s32.totalorder %s9, 0
    %p29 = por %p27, %p28
    %p30 = scmp.ne.s32.totalorder %s19, %s22
    %p31 = scmp.eq.s32.totalorder %s14, 1
    %p32 = por %p30, %p31
    %p33 = scmp.ne.s32.totalorder %s22, %s23
    %p34 = scmp.eq.s32.totalorder %s14, 0
    %p35 = por %p33, %p34
    %p36 = scmp.ne.s32.totalorder %s22, %s23
    %p37 = scmp.eq.s32.totalorder %s15, 1
    %p38 = por %p36, %p37
    %p40 = scmp.ne.s32.totalorder %s23, %s39
    %p41 = scmp.eq.s32.totalorder %s15, 0
    %p42 = por %p40, %p41
    %s44 = sadd.s32 %s43, 1
    %p47 = scmp.eq.s32.totalorder %s9, 1
    %p48 = scmp.ne.s32.totalorder %s43, %s45
    %p49 = scmp.eq.s32.totalorder %s9, 0
    %p50 = por %p48, %p49
    %p51 = scmp.ne.s32.totalorder %s43, %s45
    %p52 = scmp.eq.s32.totalorder %s14, 1
    %p53 = por %p51, %p52
    %p54 = scmp.ne.s32.totalorder %s45, %s46
    %p55 = scmp.eq.s32.totalorder %s14, 0
    %p56 = por %p54, %p55
    %p57 = scmp.ne.s32.totalorder %s45, %s46
    %p58 = scmp.eq.s32.totalorder %s15, 1
    %p59 = por %p57, %p58
    %p61 = scmp.ne.s32.totalorder %s46, %s60
    %p62 = scmp.eq.s32.totalorder %s15, 0
    %p63 = por %p61, %p62
    %s65 = sadd.s32 %s64, 1
    %p68 = scmp.eq.s32.totalorder %s9, 1
    %p69 = scmp.ne.s32.totalorder %s64, %s66
    %p70 = scmp.eq.s32.totalorder %s9, 0
    %p71 = por %p69, %p70
    %p72 = scmp.ne.s32.totalorder %s64, %s66
    %p73 = scmp.eq.s32.totalorder %s14, 1
    %p74 = por %p72, %p73
    %p75 = scmp.ne.s32.totalorder %s66, %s67
    %p76 = scmp.eq.s32.totalorder %s14, 0
    %p77 = por %p75, %p76
    %p78 = scmp.ne.s32.totalorder %s66, %s67
    %p79 = scmp.eq.s32.totalorder %s15, 1
    %p80 = por %p78, %p79
    %p82 = scmp.ne.s32.totalorder %s67, %s81
    %p83 = scmp.eq.s32.totalorder %s15, 0
    %p84 = por %p82, %p83
    %s85 = ssub.s32 %s9, %s16
    %p86 = scmp.eq.s32.totalorder %s85, 0
    %s88 = sadd.s32 %s87, 1
    %s89 = scalar_select %p86, %s87, %s88
    %p92 = pneg %p86
    %p93 = scmp.eq.s32.totalorder %s9, 1
    %p94 = por %p92, %p93
    %p95 = scmp.ne.s32.totalorder %s87, %s90
    %p96 = scmp.eq.s32.totalorder %s9, 0
    %p97 = por %p95, %p96
    %p98 = scmp.ne.s32.totalorder %s87, %s90
    %p99 = scmp.eq.s32.totalorder %s14, 1
    %p100 = por %p98, %p99
    %p101 = scmp.ne.s32.totalorder %s90, %s91
    %p102 = scmp.eq.s32.totalorder %s14, 0
    %p103 = por %p101, %p102
    %p104 = scmp.ne.s32.totalorder %s90, %s91
    %p105 = scmp.eq.s32.totalorder %s15, 1
    %p106 = por %p104, %p105
    %p108 = scmp.ne.s32.totalorder %s91, %s107
    %p109 = scmp.eq.s32.totalorder %s15, 0
    %p110 = por %p108, %p109
    %p111 = scmp.le.s32.totalorder 1, %s9
    %p112 = scmp.lt.s32.totalorder %s9, 3
    %p113 = pnand %p111, %p112
    %p114 = pneg %p113
    // Predicated region
    $region9: #{transformer_decoder.28} parent=5 // pred_check
      _
    $region10: #{transformer_decoder.28} parent=5 // pred_check_branch
      %116 = sbr.rel (%p113) target = $region12
    $region11: #{transformer_decoder.28} parent=5 // pred_region
      %s117 = ssub.s32 %s9, 1
      // Predicated region
      $region13: #{transformer_decoder.28} parent=11 // pred_check
        %p118 = pneg %p56
      $region14: #{transformer_decoder.28} parent=11 // pred_check_branch
        %120 = sbr.rel (%p118) target = $region16
      $region15: #{transformer_decoder.28} parent=11 // pred_region
        _
      $region16: #{transformer_decoder.28} parent=11 // pred_fallthru
        _
      // Predicated region
      $region17: #{transformer_decoder.28} parent=11 // pred_check
        %p121 = pneg %p77
      $region18: #{transformer_decoder.28} parent=11 // pred_check_branch
        %123 = sbr.rel (%p121) target = $region20
      $region19: #{transformer_decoder.28} parent=11 // pred_region
        _
      $region20: #{transformer_decoder.28} parent=11 // pred_fallthru
        _
    $region12: #{transformer_decoder.28} parent=5 // pred_fallthru
      _
    %p124 = scmp.lt.s32.totalorder %s9, 2
    // Predicated region
    $region21: #{transformer_decoder.28} parent=5 // pred_check
      %p125 = pneg %p124
    $region22: #{transformer_decoder.28} parent=5 // pred_check_branch
      %127 = sbr.rel (%p125) target = $region24
    $region23: #{transformer_decoder.28} parent=5 // pred_region
      // Predicated region
      $region25: #{transformer_decoder.28} parent=23 // pred_check
        %p128 = pneg %p29
      $region26: #{transformer_decoder.28} parent=23 // pred_check_branch
        %130 = sbr.rel (%p128) target = $region28
      $region27: #{transformer_decoder.28} parent=23 // pred_region
        %p131 = scmp.lt.s32.totalorder %s9, 1
        %s132 = scalar_select %p131, %s9, 1
        %s133 = smul.addr %s132, 8
        %s134 = scalar_lea.vmem %s0, %s133
      $region28: #{transformer_decoder.28} parent=23 // pred_fallthru
        _
    $region24: #{transformer_decoder.28} parent=5 // pred_fallthru
      _
    %p135 = scmp.le.s32.totalorder 1, %s9
    %p136 = scmp.lt.s32.totalorder %s9, 3
    %p137 = pnand %p135, %p136
    %p138 = pneg %p137
    // Predicated region
    $region29: #{transformer_decoder.28} parent=5 // pred_check
      _
    $region30: #{transformer_decoder.28} parent=5 // pred_check_branch
      %140 = sbr.rel (%p137) target = $region32
    $region31: #{transformer_decoder.28} parent=5 // pred_region
      %s141 = ssub.s32 %s9, 1
      %p142 = scmp.lt.s32.totalorder %s14, 1
      %s143 = scalar_select %p142, %s14, 1
      %s144 = smul.addr %s143, 8
      %s145 = scalar_lea.vmem %s0, %s144
      %p146 = pneg %p35
      %p147 = pneg %p32
      %p148 = pneg %p56
      %p149 = pneg %p53
      %p150 = pneg %p77
      %p151 = pneg %p74
      %p152 = pneg %p103
      %p153 = pneg %p100
      %p154 = scmp.lt.s32.totalorder %s14, 1
      %s155 = scalar_select %p154, %s14, 1
      %s156 = smul.addr %s155, 8
      %s157 = scalar_lea.vmem %s3, %s156
      %p158 = scmp.lt.s32.totalorder %s14, 1
      %s159 = scalar_select %p158, %s14, 1
      %s160 = smul.addr %s159, 8
      %s161 = scalar_lea.vmem %s0, %s160
      %p162 = scmp.lt.s32.totalorder %s14, 1
      %s163 = scalar_select %p162, %s14, 1
      %s164 = smul.addr %s163, 8
      %s165 = scalar_lea.vmem %s3, %s164
      %v167 = vld [vmem:[%s161] sm:$0xff]
      %v168 = vpack.c.bf16 %v167, %v167
      %v169 = vld [vmem:[%s1] sm:$0xf]
      %v170 = vld [vmem:[%s1 + $0x4] sm:$0xf]
      %v171 = vld [vmem:[%s1 + $0x8] sm:$0xf]
      %v172 = vld [vmem:[%s1 + $0xc] sm:$0xf]
      %v173 = vld [vmem:[%s2] sm:$0x1]
      %v175 = vlaneseq
      %v176 = vshrl.u32 %v175, 7
      %v177 = vsub.s32 0, %v176
      %v178 = vrot.slane %v173, %v177
      %v184 = vunpack.c.l.b16 %v169
      %v185 = vunpack.c.l.b16 %v170
      %v186 = vunpack.c.l.b16 %v171
      %v187 = vunpack.c.l.b16 %v172
      %v188 = vpack.c.b16 %v185, %v184
      %v189 = vpack.c.b16 %v187, %v186
      %vm192 = vcmask 261120
      %v194 = vsel %vm192, %v168, 0
      %196 = vmatprep.subr.bf16.mxu0 0
      %197 = vmatpush1.bf16.msra.mxu0 %v188
      %198 = vmatprep.subr.bf16.mxu0 0
      %199 = vmatpush1.bf16.msra.mxu0 %v189
      %200 = vmatprep.subr.bf16.mxu0 0
      %201 = vmatpush1.bf16.msra.mxu0 0
      %202 = vmatprep.subr.bf16.mxu0 0
      %203 = vmatpush1.bf16.msra.mxu0 0
      %204 = vmatprep.subr.bf16.mxu0 0
      %205 = vmatpush1.bf16.msra.mxu0 0
      %206 = vmatprep.subr.bf16.mxu0 0
      %207 = vmatpush1.bf16.msra.mxu0 0
      %208 = vmatprep.subr.bf16.mxu0 0
      %209 = vmatpush1.bf16.msra.mxu0 0
      %210 = vmatprep.subr.bf16.mxu0 0
      %211 = vmatpush1.bf16.msra.mxu0 0
      %212 = vmatprep.subr.bf16.mxu0 0
      %213 = vmatpush1.bf16.msra.mxu0 0
      %214 = vmatprep.subr.bf16.mxu0 0
      %215 = vmatpush1.bf16.msra.mxu0 0
      %216 = vmatprep.subr.bf16.mxu0 0
      %217 = vmatpush1.bf16.msra.mxu0 0
      %218 = vmatprep.subr.bf16.mxu0 0
      %219 = vmatpush1.bf16.msra.mxu0 0
      %220 = vmatprep.subr.bf16.mxu0 0
      %221 = vmatpush1.bf16.msra.mxu0 0
      %222 = vmatprep.subr.bf16.mxu0 0
      %223 = vmatpush1.bf16.msra.mxu0 0
      %224 = vmatprep.subr.bf16.mxu0 0
      %225 = vmatpush1.bf16.msra.mxu0 0
      %226 = vmatprep.subr.bf16.mxu0 0
      %227 = vmatpush1.bf16.msra.mxu0 0
      %228 = vmatprep.mubr.bf16.mxu0 0
      %229 = vmatmul.mubr.bf16.gmra.mrb[0].mxu0 %v194
      %v230 = vpop.f32.mrb[0].mxu0
      %v231 = vadd.f32 %v178, %v230
      %v232 = vpop.f32.mrb[0].mxu0
      %v233 = vpop.f32.mrb[0].mxu0
      %v234 = vpop.f32.mrb[0].mxu0
      %235 = vdwg.mxu0
      %vm236 = vcmask 523264
      %237 = vst.msk [vmem:[%s165] sm:$0xff] %vm236, %v231
      %p238 = scmp.lt.s32.totalorder %s14, 1
      %s239 = scalar_select %p238, %s14, 1
      %s240 = smul.addr %s239, 8
      %s241 = scalar_lea.vmem %s3, %s240
      // Predicated region
      $region33: #{transformer_decoder.28} parent=31 // pred_check
        %p242 = pneg %p100
      $region34: #{transformer_decoder.28} parent=31 // pred_check_branch
        %244 = sbr.rel (%p242) target = $region36
      $region35: #{transformer_decoder.28} parent=31 // pred_region
        _
      $region36: #{transformer_decoder.28} parent=31 // pred_fallthru
        _
    $region32: #{transformer_decoder.28} parent=5 // pred_fallthru
      _
    %p245 = scmp.le.s32.totalorder 2, %s9
    // Predicated region
    $region37: #{transformer_decoder.28} parent=5 // pred_check
      %p246 = pneg %p245
    $region38: #{transformer_decoder.28} parent=5 // pred_check_branch
      %248 = sbr.rel (%p246) target = $region40
    $region39: #{transformer_decoder.28} parent=5 // pred_region
      %s249 = ssub.s32 %s9, 2
      // Predicated region
      $region41: #{transformer_decoder.28} parent=39 // pred_check
        %p250 = pneg %p106
      $region42: #{transformer_decoder.28} parent=39 // pred_check_branch
        %252 = sbr.rel (%p250) target = $region44
      $region43: #{transformer_decoder.28} parent=39 // pred_region
        %p253 = scmp.lt.s32.totalorder %s15, 1
        %s254 = scalar_select %p253, %s15, 1
        %s255 = smul.addr %s254, 8
        %s256 = scalar_lea.vmem %s3, %s255
      $region44: #{transformer_decoder.28} parent=39 // pred_fallthru
        _
    $region40: #{transformer_decoder.28} parent=5 // pred_fallthru
      _
  $region6: #{transformer_decoder.28} parent=0 // loop_footer
    %s13 = sadd.s32 1, %s9
  $region7: #{transformer_decoder.28} parent=0 // loop_footer_branch
    %8 = sbr.rel target = $region3
  $region8: #{transformer_decoder.28} parent=0 // loop_exit
    _

// kernel: transformer_decoder.18
$region0: #{transformer_decoder.18}
  #allocation0 [shape = 'u32[]', space=smem, size = 0x4, offset = 0x4, fixed_abs, tag = 'smem constant byte address 0x4 - core index']
  #allocation1 [shape = 'u32[144,128]{1,0:T(1,128)}', space=vmem, size = 0x12000, scoped, tag = 'internal scratch']
  %s0 = inlined_call_operand.vmem [shape: f32[16,32], index: 0, kind: input, shape index: {}]
  %s1 = inlined_call_operand.vmem [shape: bf16[32,32], index: 1, kind: input, shape index: {}]
  %s2 = inlined_call_operand.vmem [shape: f32[1,32], index: 2, kind: input, shape index: {}]
  %s3 = inlined_call_operand.vmem [shape: f32[16,32], index: 3, kind: input, shape index: {}]
  %s4 = inlined_call_operand.vmem [shape: f32[1,32], index: 4, kind: input, shape index: {}]
  %s5 = inlined_call_operand.vmem [shape: f32[1,32], index: 5, kind: input, shape index: {}]
  %s6 = inlined_call_operand.vmem [shape: f32[16,32], index: 6, kind: output, shape index: {}]
  %s7 = sld [smem:[#allocation0]]
  $region57: #{transformer_decoder.18} parent=0
    _
  %s9 = ssub.s32 1, %s7
  %s10 = scalar_select 0, %s9, %s7
  loop: start=0, step=1, limit=4
  $region2: #{transformer_decoder.18} parent=0 // loop_pre_header
    _
  $region3: #{transformer_decoder.18} parent=0 // loop_header
    %s12 = sphi 0, %s16
    %p13 = scmp.ge.s32.totalorder %s12, 4
    %s22 = sphi 0, %s24
    %s25 = sphi 0, %s22
    %s26 = sphi 0, %s25
    %s42 = sphi 0, %s26
    %s46 = sphi 0, %s46
    %s48 = sphi 0, %s46
    %s49 = sphi 0, %s48
    %s63 = sphi 0, %s49
    %s67 = sphi 0, %s67
    %s69 = sphi 0, %s67
    %s70 = sphi 0, %s69
    %s84 = sphi 0, %s70
    %s90 = sphi 0, %s92
    %s93 = sphi 0, %s90
    %s94 = sphi 0, %s93
    %s110 = sphi 0, %s94
    %s114 = sphi 0, %s114
    %s116 = sphi 0, %s114
    %s117 = sphi 0, %s116
    %s131 = sphi 0, %s117
    %s135 = sphi 0, %s135
    %s137 = sphi 0, %s135
    %s138 = sphi 0, %s137
    %s152 = sphi 0, %s138
    %s158 = sphi 0, %s160
    %s161 = sphi 0, %s158
    %s162 = sphi 0, %s161
    %s178 = sphi 0, %s162
  $region4: #{transformer_decoder.18} parent=0 // loop_header_branch
    %15 = sbr.rel (%p13) target = $region8
  $region5: #{transformer_decoder.18} parent=0 // loop_body
    %s17 = ssub.s32 %s12, 1
    %s18 = ssub.s32 %s12, 2
    %s19 = sadd.s32 %s12, 1
    %s20 = ssub.s32 %s12, %s19
    %p21 = scmp.eq.s32.totalorder %s20, 0
    %s23 = sadd.s32 %s22, 1
    %s24 = scalar_select %p21, %s22, %s23
    %p27 = pneg %p21
    %p28 = scmp.eq.s32.totalorder %s12, 1
    %p29 = por %p27, %p28
    %p30 = scmp.ne.s32.totalorder %s22, %s25
    %p31 = scmp.eq.s32.totalorder %s12, 0
    %p32 = por %p30, %p31
    %p33 = scmp.ne.s32.totalorder %s22, %s25
    %p34 = scmp.eq.s32.totalorder %s17, 1
    %p35 = por %p33, %p34
    %p36 = scmp.ne.s32.totalorder %s25, %s26
    %p37 = scmp.eq.s32.totalorder %s17, 0
    %p38 = por %p36, %p37
    %p39 = scmp.ne.s32.totalorder %s25, %s26
    %p40 = scmp.eq.s32.totalorder %s18, 1
    %p41 = por %p39, %p40
    %p43 = scmp.ne.s32.totalorder %s26, %s42
    %p44 = scmp.eq.s32.totalorder %s18, 0
    %p45 = por %p43, %p44
    %s47 = sadd.s32 %s46, 1
    %p50 = scmp.eq.s32.totalorder %s12, 1
    %p51 = scmp.ne.s32.totalorder %s46, %s48
    %p52 = scmp.eq.s32.totalorder %s12, 0
    %p53 = por %p51, %p52
    %p54 = scmp.ne.s32.totalorder %s46, %s48
    %p55 = scmp.eq.s32.totalorder %s17, 1
    %p56 = por %p54, %p55
    %p57 = scmp.ne.s32.totalorder %s48, %s49
    %p58 = scmp.eq.s32.totalorder %s17, 0
    %p59 = por %p57, %p58
    %p60 = scmp.ne.s32.totalorder %s48, %s49
    %p61 = scmp.eq.s32.totalorder %s18, 1
    %p62 = por %p60, %p61
    %p64 = scmp.ne.s32.totalorder %s49, %s63
    %p65 = scmp.eq.s32.totalorder %s18, 0
    %p66 = por %p64, %p65
    %s68 = sadd.s32 %s67, 1
    %p71 = scmp.eq.s32.totalorder %s12, 1
    %p72 = scmp.ne.s32.totalorder %s67, %s69
    %p73 = scmp.eq.s32.totalorder %s12, 0
    %p74 = por %p72, %p73
    %p75 = scmp.ne.s32.totalorder %s67, %s69
    %p76 = scmp.eq.s32.totalorder %s17, 1
    %p77 = por %p75, %p76
    %p78 = scmp.ne.s32.totalorder %s69, %s70
    %p79 = scmp.eq.s32.totalorder %s17, 0
    %p80 = por %p78, %p79
    %p81 = scmp.ne.s32.totalorder %s69, %s70
    %p82 = scmp.eq.s32.totalorder %s18, 1
    %p83 = por %p81, %p82
    %p85 = scmp.ne.s32.totalorder %s70, %s84
    %p86 = scmp.eq.s32.totalorder %s18, 0
    %p87 = por %p85, %p86
    %s88 = ssub.s32 %s12, %s19
    %p89 = scmp.eq.s32.totalorder %s88, 0
    %s91 = sadd.s32 %s90, 1
    %s92 = scalar_select %p89, %s90, %s91
    %p95 = pneg %p89
    %p96 = scmp.eq.s32.totalorder %s12, 1
    %p97 = por %p95, %p96
    %p98 = scmp.ne.s32.totalorder %s90, %s93
    %p99 = scmp.eq.s32.totalorder %s12, 0
    %p100 = por %p98, %p99
    %p101 = scmp.ne.s32.totalorder %s90, %s93
    %p102 = scmp.eq.s32.totalorder %s17, 1
    %p103 = por %p101, %p102
    %p104 = scmp.ne.s32.totalorder %s93, %s94
    %p105 = scmp.eq.s32.totalorder %s17, 0
    %p106 = por %p104, %p105
    %p107 = scmp.ne.s32.totalorder %s93, %s94
    %p108 = scmp.eq.s32.totalorder %s18, 1
    %p109 = por %p107, %p108
    %p111 = scmp.ne.s32.totalorder %s94, %s110
    %p112 = scmp.eq.s32.totalorder %s18, 0
    %p113 = por %p111, %p112
    %s115 = sadd.s32 %s114, 1
    %p118 = scmp.eq.s32.totalorder %s12, 1
    %p119 = scmp.ne.s32.totalorder %s114, %s116
    %p120 = scmp.eq.s32.totalorder %s12, 0
    %p121 = por %p119, %p120
    %p122 = scmp.ne.s32.totalorder %s114, %s116
    %p123 = scmp.eq.s32.totalorder %s17, 1
    %p124 = por %p122, %p123
    %p125 = scmp.ne.s32.totalorder %s116, %s117
    %p126 = scmp.eq.s32.totalorder %s17, 0
    %p127 = por %p125, %p126
    %p128 = scmp.ne.s32.totalorder %s116, %s117
    %p129 = scmp.eq.s32.totalorder %s18, 1
    %p130 = por %p128, %p129
    %p132 = scmp.ne.s32.totalorder %s117, %s131
    %p133 = scmp.eq.s32.totalorder %s18, 0
    %p134 = por %p132, %p133
    %s136 = sadd.s32 %s135, 1
    %p139 = scmp.eq.s32.totalorder %s12, 1
    %p140 = scmp.ne.s32.totalorder %s135, %s137
    %p141 = scmp.eq.s32.totalorder %s12, 0
    %p142 = por %p140, %p141
    %p143 = scmp.ne.s32.totalorder %s135, %s137
    %p144 = scmp.eq.s32.totalorder %s17, 1
    %p145 = por %p143, %p144
    %p146 = scmp.ne.s32.totalorder %s137, %s138
    %p147 = scmp.eq.s32.totalorder %s17, 0
    %p148 = por %p146, %p147
    %p149 = scmp.ne.s32.totalorder %s137, %s138
    %p150 = scmp.eq.s32.totalorder %s18, 1
    %p151 = por %p149, %p150
    %p153 = scmp.ne.s32.totalorder %s138, %s152
    %p154 = scmp.eq.s32.totalorder %s18, 0
    %p155 = por %p153, %p154
    %s156 = ssub.s32 %s12, %s19
    %p157 = scmp.eq.s32.totalorder %s156, 0
    %s159 = sadd.s32 %s158, 1
    %s160 = scalar_select %p157, %s158, %s159
    %p163 = pneg %p157
    %p164 = scmp.eq.s32.totalorder %s12, 1
    %p165 = por %p163, %p164
    %p166 = scmp.ne.s32.totalorder %s158, %s161
    %p167 = scmp.eq.s32.totalorder %s12, 0
    %p168 = por %p166, %p167
    %p169 = scmp.ne.s32.totalorder %s158, %s161
    %p170 = scmp.eq.s32.totalorder %s17, 1
    %p171 = por %p169, %p170
    %p172 = scmp.ne.s32.totalorder %s161, %s162
    %p173 = scmp.eq.s32.totalorder %s17, 0
    %p174 = por %p172, %p173
    %p175 = scmp.ne.s32.totalorder %s161, %s162
    %p176 = scmp.eq.s32.totalorder %s18, 1
    %p177 = por %p175, %p176
    %p179 = scmp.ne.s32.totalorder %s162, %s178
    %p180 = scmp.eq.s32.totalorder %s18, 0
    %p181 = por %p179, %p180
    %p182 = scmp.le.s32.totalorder 1, %s12
    %p183 = scmp.lt.s32.totalorder %s12, 3
    %p184 = pnand %p182, %p183
    %p185 = pneg %p184
    // Predicated region
    $region9: #{transformer_decoder.18} parent=5 // pred_check
      _
    $region10: #{transformer_decoder.18} parent=5 // pred_check_branch
      %187 = sbr.rel (%p184) target = $region12
    $region11: #{transformer_decoder.18} parent=5 // pred_region
      %s188 = ssub.s32 %s12, 1
      // Predicated region
      $region13: #{transformer_decoder.18} parent=11 // pred_check
        %p189 = pneg %p59
      $region14: #{transformer_decoder.18} parent=11 // pred_check_branch
        %191 = sbr.rel (%p189) target = $region16
      $region15: #{transformer_decoder.18} parent=11 // pred_region
        _
      $region16: #{transformer_decoder.18} parent=11 // pred_fallthru
        _
      // Predicated region
      $region17: #{transformer_decoder.18} parent=11 // pred_check
        %p192 = pneg %p80
      $region18: #{transformer_decoder.18} parent=11 // pred_check_branch
        %194 = sbr.rel (%p192) target = $region20
      $region19: #{transformer_decoder.18} parent=11 // pred_region
        _
      $region20: #{transformer_decoder.18} parent=11 // pred_fallthru
        _
      // Predicated region
      $region21: #{transformer_decoder.18} parent=11 // pred_check
        %p195 = pneg %p127
      $region22: #{transformer_decoder.18} parent=11 // pred_check_branch
        %197 = sbr.rel (%p195) target = $region24
      $region23: #{transformer_decoder.18} parent=11 // pred_region
        _
      $region24: #{transformer_decoder.18} parent=11 // pred_fallthru
        _
      // Predicated region
      $region25: #{transformer_decoder.18} parent=11 // pred_check
        %p198 = pneg %p148
      $region26: #{transformer_decoder.18} parent=11 // pred_check_branch
        %200 = sbr.rel (%p198) target = $region28
      $region27: #{transformer_decoder.18} parent=11 // pred_region
        _
      $region28: #{transformer_decoder.18} parent=11 // pred_fallthru
        _
    $region12: #{transformer_decoder.18} parent=5 // pred_fallthru
      _
    %p201 = scmp.lt.s32.totalorder %s12, 2
    // Predicated region
    $region29: #{transformer_decoder.18} parent=5 // pred_check
      %p202 = pneg %p201
    $region30: #{transformer_decoder.18} parent=5 // pred_check_branch
      %204 = sbr.rel (%p202) target = $region32
    $region31: #{transformer_decoder.18} parent=5 // pred_region
      // Predicated region
      $region33: #{transformer_decoder.18} parent=31 // pred_check
        %p205 = pneg %p32
      $region34: #{transformer_decoder.18} parent=31 // pred_check_branch
        %207 = sbr.rel (%p205) target = $region36
      $region35: #{transformer_decoder.18} parent=31 // pred_region
        %p208 = scmp.lt.s32.totalorder %s12, 1
        %s209 = scalar_select %p208, %s12, 1
        %s210 = smul.addr %s209, 8
        %s211 = scalar_lea.vmem %s0, %s210
      $region36: #{transformer_decoder.18} parent=31 // pred_fallthru
        _
      // Predicated region
      $region37: #{transformer_decoder.18} parent=31 // pred_check
        %p212 = pneg %p100
      $region38: #{transformer_decoder.18} parent=31 // pred_check_branch
        %214 = sbr.rel (%p212) target = $region40
      $region39: #{transformer_decoder.18} parent=31 // pred_region
        %p215 = scmp.lt.s32.totalorder %s12, 1
        %s216 = scalar_select %p215, %s12, 1
        %s217 = smul.addr %s216, 8
        %s218 = scalar_lea.vmem %s3, %s217
      $region40: #{transformer_decoder.18} parent=31 // pred_fallthru
        _
    $region32: #{transformer_decoder.18} parent=5 // pred_fallthru
      _
    %p219 = scmp.le.s32.totalorder 1, %s12
    %p220 = scmp.lt.s32.totalorder %s12, 3
    %p221 = pnand %p219, %p220
    %p222 = pneg %p221
    // Predicated region
    $region41: #{transformer_decoder.18} parent=5 // pred_check
      _
    $region42: #{transformer_decoder.18} parent=5 // pred_check_branch
      %224 = sbr.rel (%p221) target = $region44
    $region43: #{transformer_decoder.18} parent=5 // pred_region
      %s225 = ssub.s32 %s12, 1
      %p226 = scmp.lt.s32.totalorder %s17, 1
      %s227 = scalar_select %p226, %s17, 1
      %s228 = smul.addr %s227, 8
      %s229 = scalar_lea.vmem %s0, %s228
      %p230 = pneg %p38
      %p231 = pneg %p35
      %p232 = pneg %p59
      %p233 = pneg %p56
      %p234 = pneg %p80
      %p235 = pneg %p77
      %p236 = scmp.lt.s32.totalorder %s17, 1
      %s237 = scalar_select %p236, %s17, 1
      %s238 = smul.addr %s237, 8
      %s239 = scalar_lea.vmem %s3, %s238
      %p240 = pneg %p106
      %p241 = pneg %p103
      %p242 = pneg %p127
      %p243 = pneg %p124
      %p244 = pneg %p148
      %p245 = pneg %p145
      %p246 = pneg %p174
      %p247 = pneg %p171
      %p248 = scmp.lt.s32.totalorder %s17, 1
      %s249 = scalar_select %p248, %s17, 1
      %s250 = smul.addr %s249, 8
      %s251 = scalar_lea.vmem %s6, %s250
      %p252 = scmp.lt.s32.totalorder %s17, 1
      %s253 = scalar_select %p252, %s17, 1
      %s254 = smul.addr %s253, 8
      %s255 = scalar_lea.vmem %s0, %s254
      %p256 = scmp.lt.s32.totalorder %s17, 1
      %s257 = scalar_select %p256, %s17, 1
      %s258 = smul.addr %s257, 8
      %s259 = scalar_lea.vmem %s3, %s258
      %p260 = scmp.lt.s32.totalorder %s17, 1
      %s261 = scalar_select %p260, %s17, 1
      %s262 = smul.addr %s261, 8
      %s263 = scalar_lea.vmem %s6, %s262
      %v265 = vld [vmem:[%s255] sm:$0xff]
      %v266 = vpack.c.bf16 %v265, %v265
      %v267 = vld [vmem:[%s1] sm:$0xf]
      %v268 = vld [vmem:[%s1 + $0x4] sm:$0xf]
      %v269 = vld [vmem:[%s1 + $0x8] sm:$0xf]
      %v270 = vld [vmem:[%s1 + $0xc] sm:$0xf]
      %v271 = vld [vmem:[%s2] sm:$0x1]
      %v273 = vlaneseq
      %v274 = vshrl.u32 %v273, 7
      %v275 = vsub.s32 0, %v274
      %v276 = vrot.slane %v271, %v275
      %v282 = vunpack.c.l.b16 %v267
      %v283 = vunpack.c.l.b16 %v268
      %v284 = vunpack.c.l.b16 %v269
      %v285 = vunpack.c.l.b16 %v270
      %v286 = vpack.c.b16 %v283, %v282
      %v287 = vpack.c.b16 %v285, %v284
      %vm290 = vcmask 261120
      %v292 = vsel %vm290, %v266, 0
      %294 = vmatprep.subr.bf16.mxu0 0
      %295 = vmatpush1.bf16.msra.mxu0 %v286
      %296 = vmatprep.subr.bf16.mxu0 0
      %297 = vmatpush1.bf16.msra.mxu0 %v287
      %298 = vmatprep.subr.bf16.mxu0 0
      %299 = vmatpush1.bf16.msra.mxu0 0
      %300 = vmatprep.subr.bf16.mxu0 0
      %301 = vmatpush1.bf16.msra.mxu0 0
      %302 = vmatprep.subr.bf16.mxu0 0
      %303 = vmatpush1.bf16.msra.mxu0 0
      %304 = vmatprep.subr.bf16.mxu0 0
      %305 = vmatpush1.bf16.msra.mxu0 0
      %306 = vmatprep.subr.bf16.mxu0 0
      %307 = vmatpush1.bf16.msra.mxu0 0
      %308 = vmatprep.subr.bf16.mxu0 0
      %309 = vmatpush1.bf16.msra.mxu0 0
      %310 = vmatprep.subr.bf16.mxu0 0
      %311 = vmatpush1.bf16.msra.mxu0 0
      %312 = vmatprep.subr.bf16.mxu0 0
      %313 = vmatpush1.bf16.msra.mxu0 0
      %314 = vmatprep.subr.bf16.mxu0 0
      %315 = vmatpush1.bf16.msra.mxu0 0
      %316 = vmatprep.subr.bf16.mxu0 0
      %317 = vmatpush1.bf16.msra.mxu0 0
      %318 = vmatprep.subr.bf16.mxu0 0
      %319 = vmatpush1.bf16.msra.mxu0 0
      %320 = vmatprep.subr.bf16.mxu0 0
      %321 = vmatpush1.bf16.msra.mxu0 0
      %322 = vmatprep.subr.bf16.mxu0 0
      %323 = vmatpush1.bf16.msra.mxu0 0
      %324 = vmatprep.subr.bf16.mxu0 0
      %325 = vmatpush1.bf16.msra.mxu0 0
      %326 = vmatprep.mubr.bf16.mxu0 0
      %327 = vmatmul.mubr.bf16.gmra.mrb[0].mxu0 %v292
      %v328 = vpop.f32.mrb[0].mxu0
      %v329 = vadd.f32 %v276, %v328
      %v330 = vpop.f32.mrb[0].mxu0
      %v331 = vpop.f32.mrb[0].mxu0
      %v332 = vpop.f32.mrb[0].mxu0
      %333 = vdwg.mxu0
      %v334 = vld [vmem:[%s259] sm:$0xff]
      %v335 = vadd.f32 %v329, %v334
      %v336 = vsel %vm290, %v335, 0.0
      %337 = vadd.xlane.f32.xlu0 %v336
      %v338 = vpop.xlane.xlu0 %337
      %v339 = vrcp.pop 32.0
      %v340 = vmul.f32 %v338, %v339
      %v341 = vsub.f32 %v335, %v340
      %v342 = vmul.f32 %v341, %v341
      %v343 = vsel %vm290, %v342, 0.0
      %344 = vadd.xlane.f32.xlu0 %v343
      %v345 = vpop.xlane.xlu0 %344
      %v346 = vmul.f32 %v345, %v339
      %v347 = vadd.f32 %v346, 1e-05
      %v348 = vrsqrt.pop %v347
      %v349 = vmul.f32 %v341, %v348
      %v350 = vld [vmem:[%s4] sm:$0x1]
      %v352 = vlaneseq
      %v353 = vshrl.u32 %v352, 7
      %v354 = vsub.s32 0, %v353
      %v355 = vrot.slane %v350, %v354
      %v357 = vmul.f32 %v349, %v355
      %v358 = vld [vmem:[%s5] sm:$0x1]
      %v360 = vlaneseq
      %v361 = vshrl.u32 %v360, 7
      %v362 = vsub.s32 0, %v361
      %v363 = vrot.slane %v358, %v362
      %v365 = vadd.f32 %v357, %v363
      %366 = vst.msk [vmem:[%s263] sm:$0xff] %vm290, %v365
      %p367 = scmp.lt.s32.totalorder %s17, 1
      %s368 = scalar_select %p367, %s17, 1
      %s369 = smul.addr %s368, 8
      %s370 = scalar_lea.vmem %s6, %s369
      // Predicated region
      $region45: #{transformer_decoder.18} parent=43 // pred_check
        %p371 = pneg %p171
      $region46: #{transformer_decoder.18} parent=43 // pred_check_branch
        %373 = sbr.rel (%p371) target = $region48
      $region47: #{transformer_decoder.18} parent=43 // pred_region
        _
      $region48: #{transformer_decoder.18} parent=43 // pred_fallthru
        _
    $region44: #{transformer_decoder.18} parent=5 // pred_fallthru
      _
    %p374 = scmp.le.s32.totalorder 2, %s12
    // Predicated region
    $region49: #{transformer_decoder.18} parent=5 // pred_check
      %p375 = pneg %p374
    $region50: #{transformer_decoder.18} parent=5 // pred_check_branch
      %377 = sbr.rel (%p375) target = $region52
    $region51: #{transformer_decoder.18} parent=5 // pred_region
      %s378 = ssub.s32 %s12, 2
      // Predicated region
      $region53: #{transformer_decoder.18} parent=51 // pred_check
        %p379 = pneg %p177
      $region54: #{transformer_decoder.18} parent=51 // pred_check_branch
        %381 = sbr.rel (%p379) target = $region56
      $region55: #{transformer_decoder.18} parent=51 // pred_region
        %p382 = scmp.lt.s32.totalorder %s18, 1
        %s383 = scalar_select %p382, %s18, 1
        %s384 = smul.addr %s383, 8
        %s385 = scalar_lea.vmem %s6, %s384
      $region56: #{transformer_decoder.18} parent=51 // pred_fallthru
        _
    $region52: #{transformer_decoder.18} parent=5 // pred_fallthru
      _
  $region6: #{transformer_decoder.18} parent=0 // loop_footer
    %s16 = sadd.s32 1, %s12
  $region7: #{transformer_decoder.18} parent=0 // loop_footer_branch
    %11 = sbr.rel target = $region3
  $region8: #{transformer_decoder.18} parent=0 // loop_exit
    _

// kernel: transformer_decoder.19
$region0: #{transformer_decoder.19}
  #allocation0 [shape = 'u32[]', space=smem, size = 0x4, offset = 0x4, fixed_abs, tag = 'smem constant byte address 0x4 - core index']
  #allocation1 [shape = 'u32[144,128]{1,0:T(1,128)}', space=vmem, size = 0x12000, scoped, tag = 'internal scratch']
  %s0 = inlined_call_operand.vmem [shape: f32[16,32], index: 0, kind: input, shape index: {}]
  %s1 = inlined_call_operand.vmem [shape: bf16[32,32], index: 1, kind: input, shape index: {}]
  %s2 = inlined_call_operand.vmem [shape: f32[1,32], index: 2, kind: input, shape index: {}]
  %s3 = inlined_call_operand.vmem [shape: f32[16,32], index: 3, kind: output, shape index: {}]
  %s4 = sld [smem:[#allocation0]]
  $region45: #{transformer_decoder.19} parent=0
    _
  %s6 = ssub.s32 1, %s4
  %s7 = scalar_select 0, %s6, %s4
  loop: start=0, step=1, limit=4
  $region2: #{transformer_decoder.19} parent=0 // loop_pre_header
    _
  $region3: #{transformer_decoder.19} parent=0 // loop_header
    %s9 = sphi 0, %s13
    %p10 = scmp.ge.s32.totalorder %s9, 4
    %s19 = sphi 0, %s21
    %s22 = sphi 0, %s19
    %s23 = sphi 0, %s22
    %s39 = sphi 0, %s23
    %s43 = sphi 0, %s43
    %s45 = sphi 0, %s43
    %s46 = sphi 0, %s45
    %s60 = sphi 0, %s46
    %s64 = sphi 0, %s64
    %s66 = sphi 0, %s64
    %s67 = sphi 0, %s66
    %s81 = sphi 0, %s67
    %s87 = sphi 0, %s89
    %s90 = sphi 0, %s87
    %s91 = sphi 0, %s90
    %s107 = sphi 0, %s91
  $region4: #{transformer_decoder.19} parent=0 // loop_header_branch
    %12 = sbr.rel (%p10) target = $region8
  $region5: #{transformer_decoder.19} parent=0 // loop_body
    %s14 = ssub.s32 %s9, 1
    %s15 = ssub.s32 %s9, 2
    %s16 = sadd.s32 %s9, 1
    %s17 = ssub.s32 %s9, %s16
    %p18 = scmp.eq.s32.totalorder %s17, 0
    %s20 = sadd.s32 %s19, 1
    %s21 = scalar_select %p18, %s19, %s20
    %p24 = pneg %p18
    %p25 = scmp.eq.s32.totalorder %s9, 1
    %p26 = por %p24, %p25
    %p27 = scmp.ne.s32.totalorder %s19, %s22
    %p28 = scmp.eq.s32.totalorder %s9, 0
    %p29 = por %p27, %p28
    %p30 = scmp.ne.s32.totalorder %s19, %s22
    %p31 = scmp.eq.s32.totalorder %s14, 1
    %p32 = por %p30, %p31
    %p33 = scmp.ne.s32.totalorder %s22, %s23
    %p34 = scmp.eq.s32.totalorder %s14, 0
    %p35 = por %p33, %p34
    %p36 = scmp.ne.s32.totalorder %s22, %s23
    %p37 = scmp.eq.s32.totalorder %s15, 1
    %p38 = por %p36, %p37
    %p40 = scmp.ne.s32.totalorder %s23, %s39
    %p41 = scmp.eq.s32.totalorder %s15, 0
    %p42 = por %p40, %p41
    %s44 = sadd.s32 %s43, 1
    %p47 = scmp.eq.s32.totalorder %s9, 1
    %p48 = scmp.ne.s32.totalorder %s43, %s45
    %p49 = scmp.eq.s32.totalorder %s9, 0
    %p50 = por %p48, %p49
    %p51 = scmp.ne.s32.totalorder %s43, %s45
    %p52 = scmp.eq.s32.totalorder %s14, 1
    %p53 = por %p51, %p52
    %p54 = scmp.ne.s32.totalorder %s45, %s46
    %p55 = scmp.eq.s32.totalorder %s14, 0
    %p56 = por %p54, %p55
    %p57 = scmp.ne.s32.totalorder %s45, %s46
    %p58 = scmp.eq.s32.totalorder %s15, 1
    %p59 = por %p57, %p58
    %p61 = scmp.ne.s32.totalorder %s46, %s60
    %p62 = scmp.eq.s32.totalorder %s15, 0
    %p63 = por %p61, %p62
    %s65 = sadd.s32 %s64, 1
    %p68 = scmp.eq.s32.totalorder %s9, 1
    %p69 = scmp.ne.s32.totalorder %s64, %s66
    %p70 = scmp.eq.s32.totalorder %s9, 0
    %p71 = por %p69, %p70
    %p72 = scmp.ne.s32.totalorder %s64, %s66
    %p73 = scmp.eq.s32.totalorder %s14, 1
    %p74 = por %p72, %p73
    %p75 = scmp.ne.s32.totalorder %s66, %s67
    %p76 = scmp.eq.s32.totalorder %s14, 0
    %p77 = por %p75, %p76
    %p78 = scmp.ne.s32.totalorder %s66, %s67
    %p79 = scmp.eq.s32.totalorder %s15, 1
    %p80 = por %p78, %p79
    %p82 = scmp.ne.s32.totalorder %s67, %s81
    %p83 = scmp.eq.s32.totalorder %s15, 0
    %p84 = por %p82, %p83
    %s85 = ssub.s32 %s9, %s16
    %p86 = scmp.eq.s32.totalorder %s85, 0
    %s88 = sadd.s32 %s87, 1
    %s89 = scalar_select %p86, %s87, %s88
    %p92 = pneg %p86
    %p93 = scmp.eq.s32.totalorder %s9, 1
    %p94 = por %p92, %p93
    %p95 = scmp.ne.s32.totalorder %s87, %s90
    %p96 = scmp.eq.s32.totalorder %s9, 0
    %p97 = por %p95, %p96
    %p98 = scmp.ne.s32.totalorder %s87, %s90
    %p99 = scmp.eq.s32.totalorder %s14, 1
    %p100 = por %p98, %p99
    %p101 = scmp.ne.s32.totalorder %s90, %s91
    %p102 = scmp.eq.s32.totalorder %s14, 0
    %p103 = por %p101, %p102
    %p104 = scmp.ne.s32.totalorder %s90, %s91
    %p105 = scmp.eq.s32.totalorder %s15, 1
    %p106 = por %p104, %p105
    %p108 = scmp.ne.s32.totalorder %s91, %s107
    %p109 = scmp.eq.s32.totalorder %s15, 0
    %p110 = por %p108, %p109
    %p111 = scmp.le.s32.totalorder 1, %s9
    %p112 = scmp.lt.s32.totalorder %s9, 3
    %p113 = pnand %p111, %p112
    %p114 = pneg %p113
    // Predicated region
    $region9: #{transformer_decoder.19} parent=5 // pred_check
      _
    $region10: #{transformer_decoder.19} parent=5 // pred_check_branch
      %116 = sbr.rel (%p113) target = $region12
    $region11: #{transformer_decoder.19} parent=5 // pred_region
      %s117 = ssub.s32 %s9, 1
      // Predicated region
      $region13: #{transformer_decoder.19} parent=11 // pred_check
        %p118 = pneg %p56
      $region14: #{transformer_decoder.19} parent=11 // pred_check_branch
        %120 = sbr.rel (%p118) target = $region16
      $region15: #{transformer_decoder.19} parent=11 // pred_region
        _
      $region16: #{transformer_decoder.19} parent=11 // pred_fallthru
        _
      // Predicated region
      $region17: #{transformer_decoder.19} parent=11 // pred_check
        %p121 = pneg %p77
      $region18: #{transformer_decoder.19} parent=11 // pred_check_branch
        %123 = sbr.rel (%p121) target = $region20
      $region19: #{transformer_decoder.19} parent=11 // pred_region
        _
      $region20: #{transformer_decoder.19} parent=11 // pred_fallthru
        _
    $region12: #{transformer_decoder.19} parent=5 // pred_fallthru
      _
    %p124 = scmp.lt.s32.totalorder %s9, 2
    // Predicated region
    $region21: #{transformer_decoder.19} parent=5 // pred_check
      %p125 = pneg %p124
    $region22: #{transformer_decoder.19} parent=5 // pred_check_branch
      %127 = sbr.rel (%p125) target = $region24
    $region23: #{transformer_decoder.19} parent=5 // pred_region
      // Predicated region
      $region25: #{transformer_decoder.19} parent=23 // pred_check
        %p128 = pneg %p29
      $region26: #{transformer_decoder.19} parent=23 // pred_check_branch
        %130 = sbr.rel (%p128) target = $region28
      $region27: #{transformer_decoder.19} parent=23 // pred_region
        %p131 = scmp.lt.s32.totalorder %s9, 1
        %s132 = scalar_select %p131, %s9, 1
        %s133 = smul.addr %s132, 8
        %s134 = scalar_lea.vmem %s0, %s133
      $region28: #{transformer_decoder.19} parent=23 // pred_fallthru
        _
    $region24: #{transformer_decoder.19} parent=5 // pred_fallthru
      _
    %p135 = scmp.le.s32.totalorder 1, %s9
    %p136 = scmp.lt.s32.totalorder %s9, 3
    %p137 = pnand %p135, %p136
    %p138 = pneg %p137
    // Predicated region
    $region29: #{transformer_decoder.19} parent=5 // pred_check
      _
    $region30: #{transformer_decoder.19} parent=5 // pred_check_branch
      %140 = sbr.rel (%p137) target = $region32
    $region31: #{transformer_decoder.19} parent=5 // pred_region
      %s141 = ssub.s32 %s9, 1
      %p142 = scmp.lt.s32.totalorder %s14, 1
      %s143 = scalar_select %p142, %s14, 1
      %s144 = smul.addr %s143, 8
      %s145 = scalar_lea.vmem %s0, %s144
      %p146 = pneg %p35
      %p147 = pneg %p32
      %p148 = pneg %p56
      %p149 = pneg %p53
      %p150 = pneg %p77
      %p151 = pneg %p74
      %p152 = pneg %p103
      %p153 = pneg %p100
      %p154 = scmp.lt.s32.totalorder %s14, 1
      %s155 = scalar_select %p154, %s14, 1
      %s156 = smul.addr %s155, 8
      %s157 = scalar_lea.vmem %s3, %s156
      %p158 = scmp.lt.s32.totalorder %s14, 1
      %s159 = scalar_select %p158, %s14, 1
      %s160 = smul.addr %s159, 8
      %s161 = scalar_lea.vmem %s0, %s160
      %p162 = scmp.lt.s32.totalorder %s14, 1
      %s163 = scalar_select %p162, %s14, 1
      %s164 = smul.addr %s163, 8
      %s165 = scalar_lea.vmem %s3, %s164
      %v167 = vld [vmem:[%s161] sm:$0xff]
      %v168 = vpack.c.bf16 %v167, %v167
      %v169 = vld [vmem:[%s1] sm:$0xf]
      %v170 = vld [vmem:[%s1 + $0x4] sm:$0xf]
      %v171 = vld [vmem:[%s1 + $0x8] sm:$0xf]
      %v172 = vld [vmem:[%s1 + $0xc] sm:$0xf]
      %v173 = vld [vmem:[%s2] sm:$0x1]
      %v175 = vlaneseq
      %v176 = vshrl.u32 %v175, 7
      %v177 = vsub.s32 0, %v176
      %v178 = vrot.slane %v173, %v177
      %v184 = vunpack.c.l.b16 %v169
      %v185 = vunpack.c.l.b16 %v170
      %v186 = vunpack.c.l.b16 %v171
      %v187 = vunpack.c.l.b16 %v172
      %v188 = vpack.c.b16 %v185, %v184
      %v189 = vpack.c.b16 %v187, %v186
      %vm192 = vcmask 261120
      %v194 = vsel %vm192, %v168, 0
      %196 = vmatprep.subr.bf16.mxu0 0
      %197 = vmatpush1.bf16.msra.mxu0 %v188
      %198 = vmatprep.subr.bf16.mxu0 0
      %199 = vmatpush1.bf16.msra.mxu0 %v189
      %200 = vmatprep.subr.bf16.mxu0 0
      %201 = vmatpush1.bf16.msra.mxu0 0
      %202 = vmatprep.subr.bf16.mxu0 0
      %203 = vmatpush1.bf16.msra.mxu0 0
      %204 = vmatprep.subr.bf16.mxu0 0
      %205 = vmatpush1.bf16.msra.mxu0 0
      %206 = vmatprep.subr.bf16.mxu0 0
      %207 = vmatpush1.bf16.msra.mxu0 0
      %208 = vmatprep.subr.bf16.mxu0 0
      %209 = vmatpush1.bf16.msra.mxu0 0
      %210 = vmatprep.subr.bf16.mxu0 0
      %211 = vmatpush1.bf16.msra.mxu0 0
      %212 = vmatprep.subr.bf16.mxu0 0
      %213 = vmatpush1.bf16.msra.mxu0 0
      %214 = vmatprep.subr.bf16.mxu0 0
      %215 = vmatpush1.bf16.msra.mxu0 0
      %216 = vmatprep.subr.bf16.mxu0 0
      %217 = vmatpush1.bf16.msra.mxu0 0
      %218 = vmatprep.subr.bf16.mxu0 0
      %219 = vmatpush1.bf16.msra.mxu0 0
      %220 = vmatprep.subr.bf16.mxu0 0
      %221 = vmatpush1.bf16.msra.mxu0 0
      %222 = vmatprep.subr.bf16.mxu0 0
      %223 = vmatpush1.bf16.msra.mxu0 0
      %224 = vmatprep.subr.bf16.mxu0 0
      %225 = vmatpush1.bf16.msra.mxu0 0
      %226 = vmatprep.subr.bf16.mxu0 0
      %227 = vmatpush1.bf16.msra.mxu0 0
      %228 = vmatprep.mubr.bf16.mxu0 0
      %229 = vmatmul.mubr.bf16.gmra.mrb[0].mxu0 %v194
      %v230 = vpop.f32.mrb[0].mxu0
      %v231 = vadd.f32 %v178, %v230
      %v232 = vpop.f32.mrb[0].mxu0
      %v233 = vpop.f32.mrb[0].mxu0
      %v234 = vpop.f32.mrb[0].mxu0
      %235 = vdwg.mxu0
      %236 = vst.msk [vmem:[%s165] sm:$0xff] %vm192, %v231
      %p237 = scmp.lt.s32.totalorder %s14, 1
      %s238 = scalar_select %p237, %s14, 1
      %s239 = smul.addr %s238, 8
      %s240 = scalar_lea.vmem %s3, %s239
      // Predicated region
      $region33: #{transformer_decoder.19} parent=31 // pred_check
        %p241 = pneg %p100
      $region34: #{transformer_decoder.19} parent=31 // pred_check_branch
        %243 = sbr.rel (%p241) target = $region36
      $region35: #{transformer_decoder.19} parent=31 // pred_region
        _
      $region36: #{transformer_decoder.19} parent=31 // pred_fallthru
        _
    $region32: #{transformer_decoder.19} parent=5 // pred_fallthru
      _
    %p244 = scmp.le.s32.totalorder 2, %s9
    // Predicated region
    $region37: #{transformer_decoder.19} parent=5 // pred_check
      %p245 = pneg %p244
    $region38: #{transformer_decoder.19} parent=5 // pred_check_branch
      %247 = sbr.rel (%p245) target = $region40
    $region39: #{transformer_decoder.19} parent=5 // pred_region
      %s248 = ssub.s32 %s9, 2
      // Predicated region
      $region41: #{transformer_decoder.19} parent=39 // pred_check
        %p249 = pneg %p106
      $region42: #{transformer_decoder.19} parent=39 // pred_check_branch
        %251 = sbr.rel (%p249) target = $region44
      $region43: #{transformer_decoder.19} parent=39 // pred_region
        %p252 = scmp.lt.s32.totalorder %s15, 1
        %s253 = scalar_select %p252, %s15, 1
        %s254 = smul.addr %s253, 8
        %s255 = scalar_lea.vmem %s3, %s254
      $region44: #{transformer_decoder.19} parent=39 // pred_fallthru
        _
    $region40: #{transformer_decoder.19} parent=5 // pred_fallthru
      _
  $region6: #{transformer_decoder.19} parent=0 // loop_footer
    %s13 = sadd.s32 1, %s9
  $region7: #{transformer_decoder.19} parent=0 // loop_footer_branch
    %8 = sbr.rel target = $region3
  $region8: #{transformer_decoder.19} parent=0 // loop_exit
    _

// kernel: transformer_decoder.17
$region0: #{transformer_decoder.17}
  #allocation0 [shape = 'u32[]', space=smem, size = 0x4, offset = 0x4, fixed_abs, tag = 'smem constant byte address 0x4 - core index']
  #allocation1 [shape = 'u32[144,128]{1,0:T(1,128)}', space=vmem, size = 0x12000, scoped, tag = 'internal scratch']
  %s0 = inlined_call_operand.vmem [shape: f32[2,8,96], index: 0, kind: input, shape index: {}]
  %s1 = inlined_call_operand.vmem [shape: f32[2,8,32], index: 1, kind: output, shape index: {}]
  %s2 = sld [smem:[#allocation0]]
  $region37: #{transformer_decoder.17} parent=0
    _
  %s4 = ssub.s32 1, %s2
  %s5 = scalar_select 0, %s4, %s2
  loop: start=0, step=1, limit=4
  $region2: #{transformer_decoder.17} parent=0 // loop_pre_header
    _
  $region3: #{transformer_decoder.17} parent=0 // loop_header
    %s7 = sphi 0, %s11
    %p8 = scmp.ge.s32.totalorder %s7, 4
    %s17 = sphi 0, %s19
    %s20 = sphi 0, %s17
    %s21 = sphi 0, %s20
    %s37 = sphi 0, %s21
    %s43 = sphi 0, %s45
    %s46 = sphi 0, %s43
    %s47 = sphi 0, %s46
    %s63 = sphi 0, %s47
  $region4: #{transformer_decoder.17} parent=0 // loop_header_branch
    %10 = sbr.rel (%p8) target = $region8
  $region5: #{transformer_decoder.17} parent=0 // loop_body
    %s12 = ssub.s32 %s7, 1
    %s13 = ssub.s32 %s7, 2
    %s14 = sadd.s32 %s7, 1
    %s15 = ssub.s32 %s7, %s14
    %p16 = scmp.eq.s32.totalorder %s15, 0
    %s18 = sadd.s32 %s17, 1
    %s19 = scalar_select %p16, %s17, %s18
    %p22 = pneg %p16
    %p23 = scmp.eq.s32.totalorder %s7, 1
    %p24 = por %p22, %p23
    %p25 = scmp.ne.s32.totalorder %s17, %s20
    %p26 = scmp.eq.s32.totalorder %s7, 0
    %p27 = por %p25, %p26
    %p28 = scmp.ne.s32.totalorder %s17, %s20
    %p29 = scmp.eq.s32.totalorder %s12, 1
    %p30 = por %p28, %p29
    %p31 = scmp.ne.s32.totalorder %s20, %s21
    %p32 = scmp.eq.s32.totalorder %s12, 0
    %p33 = por %p31, %p32
    %p34 = scmp.ne.s32.totalorder %s20, %s21
    %p35 = scmp.eq.s32.totalorder %s13, 1
    %p36 = por %p34, %p35
    %p38 = scmp.ne.s32.totalorder %s21, %s37
    %p39 = scmp.eq.s32.totalorder %s13, 0
    %p40 = por %p38, %p39
    %s41 = ssub.s32 %s7, %s14
    %p42 = scmp.eq.s32.totalorder %s41, 0
    %s44 = sadd.s32 %s43, 1
    %s45 = scalar_select %p42, %s43, %s44
    %p48 = pneg %p42
    %p49 = scmp.eq.s32.totalorder %s7, 1
    %p50 = por %p48, %p49
    %p51 = scmp.ne.s32.totalorder %s43, %s46
    %p52 = scmp.eq.s32.totalorder %s7, 0
    %p53 = por %p51, %p52
    %p54 = scmp.ne.s32.totalorder %s43, %s46
    %p55 = scmp.eq.s32.totalorder %s12, 1
    %p56 = por %p54, %p55
    %p57 = scmp.ne.s32.totalorder %s46, %s47
    %p58 = scmp.eq.s32.totalorder %s12, 0
    %p59 = por %p57, %p58
    %p60 = scmp.ne.s32.totalorder %s46, %s47
    %p61 = scmp.eq.s32.totalorder %s13, 1
    %p62 = por %p60, %p61
    %p64 = scmp.ne.s32.totalorder %s47, %s63
    %p65 = scmp.eq.s32.totalorder %s13, 0
    %p66 = por %p64, %p65
    %p67 = scmp.le.s32.totalorder 1, %s7
    %p68 = scmp.lt.s32.totalorder %s7, 3
    %p69 = pnand %p67, %p68
    %p70 = pneg %p69
    // Predicated region
    $region9: #{transformer_decoder.17} parent=5 // pred_check
      _
    $region10: #{transformer_decoder.17} parent=5 // pred_check_branch
      %72 = sbr.rel (%p69) target = $region12
    $region11: #{transformer_decoder.17} parent=5 // pred_region
      %s73 = ssub.s32 %s7, 1
    $region12: #{transformer_decoder.17} parent=5 // pred_fallthru
      _
    %p74 = scmp.lt.s32.totalorder %s7, 2
    // Predicated region
    $region13: #{transformer_decoder.17} parent=5 // pred_check
      %p75 = pneg %p74
    $region14: #{transformer_decoder.17} parent=5 // pred_check_branch
      %77 = sbr.rel (%p75) target = $region16
    $region15: #{transformer_decoder.17} parent=5 // pred_region
      // Predicated region
      $region17: #{transformer_decoder.17} parent=15 // pred_check
        %p78 = pneg %p27
      $region18: #{transformer_decoder.17} parent=15 // pred_check_branch
        %80 = sbr.rel (%p78) target = $region20
      $region19: #{transformer_decoder.17} parent=15 // pred_region
        %p81 = scmp.lt.s32.totalorder %s7, 1
        %s82 = scalar_select %p81, %s7, 1
        %s83 = smul.addr %s82, 8
        %s84 = scalar_lea.vmem %s0, %s83
      $region20: #{transformer_decoder.17} parent=15 // pred_fallthru
        _
    $region16: #{transformer_decoder.17} parent=5 // pred_fallthru
      _
    %p85 = scmp.le.s32.totalorder 1, %s7
    %p86 = scmp.lt.s32.totalorder %s7, 3
    %p87 = pnand %p85, %p86
    %p88 = pneg %p87
    // Predicated region
    $region21: #{transformer_decoder.17} parent=5 // pred_check
      _
    $region22: #{transformer_decoder.17} parent=5 // pred_check_branch
      %90 = sbr.rel (%p87) target = $region24
    $region23: #{transformer_decoder.17} parent=5 // pred_region
      %s91 = ssub.s32 %s7, 1
      %p92 = scmp.lt.s32.totalorder %s12, 1
      %s93 = scalar_select %p92, %s12, 1
      %s94 = smul.addr %s93, 8
      %s95 = scalar_lea.vmem %s0, %s94
      %p96 = pneg %p33
      %p97 = pneg %p30
      %p98 = pneg %p59
      %p99 = pneg %p56
      %p100 = scmp.lt.s32.totalorder %s12, 1
      %s101 = scalar_select %p100, %s12, 1
      %s102 = smul.addr %s101, 8
      %s103 = scalar_lea.vmem %s1, %s102
      %p104 = scmp.lt.s32.totalorder %s12, 1
      %s105 = scalar_select %p104, %s12, 1
      %s106 = smul.addr %s105, 8
      %s107 = scalar_lea.vmem %s0, %s106
      %p108 = scmp.lt.s32.totalorder %s12, 1
      %s109 = scalar_select %p108, %s12, 1
      %s110 = smul.addr %s109, 8
      %s111 = scalar_lea.vmem %s1, %s110
      %v113 = vld [vmem:[%s107] sm:$0xff]
      %v114 = vpack.c.bf16 %v113, %v113
      %116 = vrot.lane.b32.xlu0 %v114, 96
      %v117 = vpop.permute.xlu0 %116
      %vm118 = vcmask 64512
      %v120 = vsel %vm118, %v114, 0
      %v123 = vsel %vm118, %v117, 0
      %125 = vmatprep.subr.bf16.mxu0 0
      %126 = vmatpush1.bf16.xpose.msra.mxu0 %v123
      %127 = vmatprep.subr.bf16.mxu0 0
      %128 = vmatpush1.bf16.xpose.msra.mxu0 0
      %129 = vmatprep.subr.bf16.mxu0 0
      %130 = vmatpush1.bf16.xpose.msra.mxu0 0
      %131 = vmatprep.subr.bf16.mxu0 0
      %132 = vmatpush1.bf16.xpose.msra.mxu0 0
      %133 = vmatprep.subr.bf16.mxu0 0
      %134 = vmatpush1.bf16.xpose.msra.mxu0 0
      %135 = vmatprep.subr.bf16.mxu0 0
      %136 = vmatpush1.bf16.xpose.msra.mxu0 0
      %137 = vmatprep.subr.bf16.mxu0 0
      %138 = vmatpush1.bf16.xpose.msra.mxu0 0
      %139 = vmatprep.subr.bf16.mxu0 0
      %140 = vmatpush1.bf16.xpose.msra.mxu0 0
      %141 = vmatprep.subr.bf16.mxu0 0
      %142 = vmatpush1.bf16.xpose.msra.mxu0 0
      %143 = vmatprep.subr.bf16.mxu0 0
      %144 = vmatpush1.bf16.xpose.msra.mxu0 0
      %145 = vmatprep.subr.bf16.mxu0 0
      %146 = vmatpush1.bf16.xpose.msra.mxu0 0
      %147 = vmatprep.subr.bf16.mxu0 0
      %148 = vmatpush1.bf16.xpose.msra.mxu0 0
      %149 = vmatprep.subr.bf16.mxu0 0
      %150 = vmatpush1.bf16.xpose.msra.mxu0 0
      %151 = vmatprep.subr.bf16.mxu0 0
      %152 = vmatpush1.bf16.xpose.msra.mxu0 0
      %153 = vmatprep.subr.bf16.mxu0 0
      %154 = vmatpush1.bf16.xpose.msra.mxu0 0
      %155 = vmatprep.subr.bf16.mxu0 0
      %156 = vmatpush1.bf16.xpose.msra.mxu0 0
      %157 = vmatprep.mubr.bf16.mxu0 0
      %158 = vmatmul.mubr.bf16.gmra.mrb[0].mxu0 %v120
      %v159 = vpop.f32.mrb[0].mxu0
      %v160 = vadd.f32 0.0, %v159
      %v161 = vpop.f32.mrb[0].mxu0
      %v162 = vpop.f32.mrb[0].mxu0
      %v163 = vpop.f32.mrb[0].mxu0
      %164 = vdwg.mxu0
      %v165 = vmul.f32 %v160, 0.35355338
      %v166 = vsel %vm118, %v165, -inf
      %167 = vmax.xlane.f32.xlu0 %v166
      %v168 = vpop.xlane.xlu0 %167
      %v169 = vsub.f32 %v165, %v168
      %v170 = vmul.f32 %v169, 1.442695
      %v171 = vpow.pop %v170
      %v172 = vsel %vm118, %v171, 0.0
      %173 = vadd.xlane.f32.xlu0 %v172
      %v174 = vpop.xlane.xlu0 %173
      %v175 = vrcp.pop %v174
      %v176 = vmul.f32 %v171, %v175
      %v177 = vpack.c.bf16 %v176, %v176
      %178 = vrot.lane.b32.xlu0 %v114, 64
      %v179 = vpop.permute.xlu0 %178
      %v181 = vsel %vm118, %v177, 0
      %vm183 = vcmask 1043456
      %v185 = vsel %vm183, %v179, 0
      %187 = vmatprep.subr.bf16.mxu0 0
      %188 = vmatpush1.bf16.msra.mxu0 %v185
      %189 = vmatprep.subr.bf16.mxu0 0
      %190 = vmatpush1.bf16.msra.mxu0 0
      %191 = vmatprep.subr.bf16.mxu0 0
      %192 = vmatpush1.bf16.msra.mxu0 0
      %193 = vmatprep.subr.bf16.mxu0 0
      %194 = vmatpush1.bf16.msra.mxu0 0
      %195 = vmatprep.subr.bf16.mxu0 0
      %196 = vmatpush1.bf16.msra.mxu0 0
      %197 = vmatprep.subr.bf16.mxu0 0
      %198 = vmatpush1.bf16.msra.mxu0 0
      %199 = vmatprep.subr.bf16.mxu0 0
      %200 = vmatpush1.bf16.msra.mxu0 0
      %201 = vmatprep.subr.bf16.mxu0 0
      %202 = vmatpush1.bf16.msra.mxu0 0
      %203 = vmatprep.subr.bf16.mxu0 0
      %204 = vmatpush1.bf16.msra.mxu0 0
      %205 = vmatprep.subr.bf16.mxu0 0
      %206 = vmatpush1.bf16.msra.mxu0 0
      %207 = vmatprep.subr.bf16.mxu0 0
      %208 = vmatpush1.bf16.msra.mxu0 0
      %209 = vmatprep.subr.bf16.mxu0 0
      %210 = vmatpush1.bf16.msra.mxu0 0
      %211 = vmatprep.subr.bf16.mxu0 0
      %212 = vmatpush1.bf16.msra.mxu0 0
      %213 = vmatprep.subr.bf16.mxu0 0
      %214 = vmatpush1.bf16.msra.mxu0 0
      %215 = vmatprep.subr.bf16.mxu0 0
      %216 = vmatpush1.bf16.msra.mxu0 0
      %217 = vmatprep.subr.bf16.mxu0 0
      %218 = vmatpush1.bf16.msra.mxu0 0
      %219 = vmatprep.mubr.bf16.mxu0 0
      %220 = vmatmul.mubr.bf16.gmra.mrb[0].mxu0 %v181
      %v221 = vpop.f32.mrb[0].mxu0
      %v222 = vadd.f32 0.0, %v221
      %v223 = vpop.f32.mrb[0].mxu0
      %v224 = vpop.f32.mrb[0].mxu0
      %v225 = vpop.f32.mrb[0].mxu0
      %226 = vdwg.mxu0
      %227 = vrot.lane.b32.xlu0 %v114, 120
      %v228 = vpop.permute.xlu0 %227
      %229 = vrot.lane.b32.xlu0 %v114, 88
      %v230 = vpop.permute.xlu0 %229
      %v232 = vsel %vm118, %v228, 0
      %v235 = vsel %vm118, %v230, 0
      %237 = vmatprep.subr.bf16.mxu0 0
      %238 = vmatpush1.bf16.xpose.msra.mxu0 %v235
      %239 = vmatprep.subr.bf16.mxu0 0
      %240 = vmatpush1.bf16.xpose.msra.mxu0 0
      %241 = vmatprep.subr.bf16.mxu0 0
      %242 = vmatpush1.bf16.xpose.msra.mxu0 0
      %243 = vmatprep.subr.bf16.mxu0 0
      %244 = vmatpush1.bf16.xpose.msra.mxu0 0
      %245 = vmatprep.subr.bf16.mxu0 0
      %246 = vmatpush1.bf16.xpose.msra.mxu0 0
      %247 = vmatprep.subr.bf16.mxu0 0
      %248 = vmatpush1.bf16.xpose.msra.mxu0 0
      %249 = vmatprep.subr.bf16.mxu0 0
      %250 = vmatpush1.bf16.xpose.msra.mxu0 0
      %251 = vmatprep.subr.bf16.mxu0 0
      %252 = vmatpush1.bf16.xpose.msra.mxu0 0
      %253 = vmatprep.subr.bf16.mxu0 0
      %254 = vmatpush1.bf16.xpose.msra.mxu0 0
      %255 = vmatprep.subr.bf16.mxu0 0
      %256 = vmatpush1.bf16.xpose.msra.mxu0 0
      %257 = vmatprep.subr.bf16.mxu0 0
      %258 = vmatpush1.bf16.xpose.msra.mxu0 0
      %259 = vmatprep.subr.bf16.mxu0 0
      %260 = vmatpush1.bf16.xpose.msra.mxu0 0
      %261 = vmatprep.subr.bf16.mxu0 0
      %262 = vmatpush1.bf16.xpose.msra.mxu0 0
      %263 = vmatprep.subr.bf16.mxu0 0
      %264 = vmatpush1.bf16.xpose.msra.mxu0 0
      %265 = vmatprep.subr.bf16.mxu0 0
      %266 = vmatpush1.bf16.xpose.msra.mxu0 0
      %267 = vmatprep.subr.bf16.mxu0 0
      %268 = vmatpush1.bf16.xpose.msra.mxu0 0
      %269 = vmatprep.mubr.bf16.mxu0 0
      %270 = vmatmul.mubr.bf16.gmra.mrb[0].mxu0 %v232
      %v271 = vpop.f32.mrb[0].mxu0
      %v272 = vadd.f32 0.0, %v271
      %v273 = vpop.f32.mrb[0].mxu0
      %v274 = vpop.f32.mrb[0].mxu0
      %v275 = vpop.f32.mrb[0].mxu0
      %276 = vdwg.mxu0
      %v277 = vmul.f32 %v272, 0.35355338
      %v278 = vsel %vm118, %v277, -inf
      %279 = vmax.xlane.f32.xlu0 %v278
      %v280 = vpop.xlane.xlu0 %279
      %v281 = vsub.f32 %v277, %v280
      %v282 = vmul.f32 %v281, 1.442695
      %v283 = vpow.pop %v282
      %v284 = vsel %vm118, %v283, 0.0
      %285 = vadd.xlane.f32.xlu0 %v284
      %v286 = vpop.xlane.xlu0 %285
      %v287 = vrcp.pop %v286
      %v288 = vmul.f32 %v283, %v287
      %v289 = vpack.c.bf16 %v288, %v288
      %290 = vrot.lane.b32.xlu0 %v114, 56
      %v291 = vpop.permute.xlu0 %290
      %v293 = vsel %vm118, %v289, 0
      %v296 = vsel %vm183, %v291, 0
      %298 = vmatprep.subr.bf16.mxu0 0
      %299 = vmatpush1.bf16.msra.mxu0 %v296
      %300 = vmatprep.subr.bf16.mxu0 0
      %301 = vmatpush1.bf16.msra.mxu0 0
      %302 = vmatprep.subr.bf16.mxu0 0
      %303 = vmatpush1.bf16.msra.mxu0 0
      %304 = vmatprep.subr.bf16.mxu0 0
      %305 = vmatpush1.bf16.msra.mxu0 0
      %306 = vmatprep.subr.bf16.mxu0 0
      %307 = vmatpush1.bf16.msra.mxu0 0
      %308 = vmatprep.subr.bf16.mxu0 0
      %309 = vmatpush1.bf16.msra.mxu0 0
      %310 = vmatprep.subr.bf16.mxu0 0
      %311 = vmatpush1.bf16.msra.mxu0 0
      %312 = vmatprep.subr.bf16.mxu0 0
      %313 = vmatpush1.bf16.msra.mxu0 0
      %314 = vmatprep.subr.bf16.mxu0 0
      %315 = vmatpush1.bf16.msra.mxu0 0
      %316 = vmatprep.subr.bf16.mxu0 0
      %317 = vmatpush1.bf16.msra.mxu0 0
      %318 = vmatprep.subr.bf16.mxu0 0
      %319 = vmatpush1.bf16.msra.mxu0 0
      %320 = vmatprep.subr.bf16.mxu0 0
      %321 = vmatpush1.bf16.msra.mxu0 0
      %322 = vmatprep.subr.bf16.mxu0 0
      %323 = vmatpush1.bf16.msra.mxu0 0
      %324 = vmatprep.subr.bf16.mxu0 0
      %325 = vmatpush1.bf16.msra.mxu0 0
      %326 = vmatprep.subr.bf16.mxu0 0
      %327 = vmatpush1.bf16.msra.mxu0 0
      %328 = vmatprep.subr.bf16.mxu0 0
      %329 = vmatpush1.bf16.msra.mxu0 0
      %330 = vmatprep.mubr.bf16.mxu0 0
      %331 = vmatmul.mubr.bf16.gmra.mrb[0].mxu0 %v293
      %v332 = vpop.f32.mrb[0].mxu0
      %v333 = vadd.f32 0.0, %v332
      %v334 = vpop.f32.mrb[0].mxu0
      %v335 = vpop.f32.mrb[0].mxu0
      %v336 = vpop.f32.mrb[0].mxu0
      %337 = vdwg.mxu0
      %338 = vrot.lane.b32.xlu0 %v114, 112
      %v339 = vpop.permute.xlu0 %338
      %340 = vrot.lane.b32.xlu0 %v114, 80
      %v341 = vpop.permute.xlu0 %340
      %v343 = vsel %vm118, %v339, 0
      %v346 = vsel %vm118, %v341, 0
      %348 = vmatprep.subr.bf16.mxu0 0
      %349 = vmatpush1.bf16.xpose.msra.mxu0 %v346
      %350 = vmatprep.subr.bf16.mxu0 0
      %351 = vmatpush1.bf16.xpose.msra.mxu0 0
      %352 = vmatprep.subr.bf16.mxu0 0
      %353 = vmatpush1.bf16.xpose.msra.mxu0 0
      %354 = vmatprep.subr.bf16.mxu0 0
      %355 = vmatpush1.bf16.xpose.msra.mxu0 0
      %356 = vmatprep.subr.bf16.mxu0 0
      %357 = vmatpush1.bf16.xpose.msra.mxu0 0
      %358 = vmatprep.subr.bf16.mxu0 0
      %359 = vmatpush1.bf16.xpose.msra.mxu0 0
      %360 = vmatprep.subr.bf16.mxu0 0
      %361 = vmatpush1.bf16.xpose.msra.mxu0 0
      %362 = vmatprep.subr.bf16.mxu0 0
      %363 = vmatpush1.bf16.xpose.msra.mxu0 0
      %364 = vmatprep.subr.bf16.mxu0 0
      %365 = vmatpush1.bf16.xpose.msra.mxu0 0
      %366 = vmatprep.subr.bf16.mxu0 0
      %367 = vmatpush1.bf16.xpose.msra.mxu0 0
      %368 = vmatprep.subr.bf16.mxu0 0
      %369 = vmatpush1.bf16.xpose.msra.mxu0 0
      %370 = vmatprep.subr.bf16.mxu0 0
      %371 = vmatpush1.bf16.xpose.msra.mxu0 0
      %372 = vmatprep.subr.bf16.mxu0 0
      %373 = vmatpush1.bf16.xpose.msra.mxu0 0
      %374 = vmatprep.subr.bf16.mxu0 0
      %375 = vmatpush1.bf16.xpose.msra.mxu0 0
      %376 = vmatprep.subr.bf16.mxu0 0
      %377 = vmatpush1.bf16.xpose.msra.mxu0 0
      %378 = vmatprep.subr.bf16.mxu0 0
      %379 = vmatpush1.bf16.xpose.msra.mxu0 0
      %380 = vmatprep.mubr.bf16.mxu0 0
      %381 = vmatmul.mubr.bf16.gmra.mrb[0].mxu0 %v343
      %v382 = vpop.f32.mrb[0].mxu0
      %v383 = vadd.f32 0.0, %v382
      %v384 = vpop.f32.mrb[0].mxu0
      %v385 = vpop.f32.mrb[0].mxu0
      %v386 = vpop.f32.mrb[0].mxu0
      %387 = vdwg.mxu0
      %v388 = vmul.f32 %v383, 0.35355338
      %v389 = vsel %vm118, %v388, -inf
      %390 = vmax.xlane.f32.xlu0 %v389
      %v391 = vpop.xlane.xlu0 %390
      %v392 = vsub.f32 %v388, %v391
      %v393 = vmul.f32 %v392, 1.442695
      %v394 = vpow.pop %v393
      %v395 = vsel %vm118, %v394, 0.0
      %396 = vadd.xlane.f32.xlu0 %v395
      %v397 = vpop.xlane.xlu0 %396
      %v398 = vrcp.pop %v397
      %v399 = vmul.f32 %v394, %v398
      %v400 = vpack.c.bf16 %v399, %v399
      %401 = vrot.lane.b32.xlu0 %v114, 48
      %v402 = vpop.permute.xlu0 %401
      %v404 = vsel %vm118, %v400, 0
      %v407 = vsel %vm183, %v402, 0
      %409 = vmatprep.subr.bf16.mxu0 0
      %410 = vmatpush1.bf16.msra.mxu0 %v407
      %411 = vmatprep.subr.bf16.mxu0 0
      %412 = vmatpush1.bf16.msra.mxu0 0
      %413 = vmatprep.subr.bf16.mxu0 0
      %414 = vmatpush1.bf16.msra.mxu0 0
      %415 = vmatprep.subr.bf16.mxu0 0
      %416 = vmatpush1.bf16.msra.mxu0 0
      %417 = vmatprep.subr.bf16.mxu0 0
      %418 = vmatpush1.bf16.msra.mxu0 0
      %419 = vmatprep.subr.bf16.mxu0 0
      %420 = vmatpush1.bf16.msra.mxu0 0
      %421 = vmatprep.subr.bf16.mxu0 0
      %422 = vmatpush1.bf16.msra.mxu0 0
      %423 = vmatprep.subr.bf16.mxu0 0
      %424 = vmatpush1.bf16.msra.mxu0 0
      %425 = vmatprep.subr.bf16.mxu0 0
      %426 = vmatpush1.bf16.msra.mxu0 0
      %427 = vmatprep.subr.bf16.mxu0 0
      %428 = vmatpush1.bf16.msra.mxu0 0
      %429 = vmatprep.subr.bf16.mxu0 0
      %430 = vmatpush1.bf16.msra.mxu0 0
      %431 = vmatprep.subr.bf16.mxu0 0
      %432 = vmatpush1.bf16.msra.mxu0 0
      %433 = vmatprep.subr.bf16.mxu0 0
      %434 = vmatpush1.bf16.msra.mxu0 0
      %435 = vmatprep.subr.bf16.mxu0 0
      %436 = vmatpush1.bf16.msra.mxu0 0
      %437 = vmatprep.subr.bf16.mxu0 0
      %438 = vmatpush1.bf16.msra.mxu0 0
      %439 = vmatprep.subr.bf16.mxu0 0
      %440 = vmatpush1.bf16.msra.mxu0 0
      %441 = vmatprep.mubr.bf16.mxu0 0
      %442 = vmatmul.mubr.bf16.gmra.mrb[0].mxu0 %v404
      %v443 = vpop.f32.mrb[0].mxu0
      %v444 = vadd.f32 0.0, %v443
      %v445 = vpop.f32.mrb[0].mxu0
      %v446 = vpop.f32.mrb[0].mxu0
      %v447 = vpop.f32.mrb[0].mxu0
      %448 = vdwg.mxu0
      %449 = vrot.lane.b32.xlu0 %v114, 104
      %v450 = vpop.permute.xlu0 %449
      %451 = vrot.lane.b32.xlu0 %v114, 72
      %v452 = vpop.permute.xlu0 %451
      %v454 = vsel %vm118, %v450, 0
      %v457 = vsel %vm118, %v452, 0
      %459 = vmatprep.subr.bf16.mxu0 0
      %460 = vmatpush1.bf16.xpose.msra.mxu0 %v457
      %461 = vmatprep.subr.bf16.mxu0 0
      %462 = vmatpush1.bf16.xpose.msra.mxu0 0
      %463 = vmatprep.subr.bf16.mxu0 0
      %464 = vmatpush1.bf16.xpose.msra.mxu0 0
      %465 = vmatprep.subr.bf16.mxu0 0
      %466 = vmatpush1.bf16.xpose.msra.mxu0 0
      %467 = vmatprep.subr.bf16.mxu0 0
      %468 = vmatpush1.bf16.xpose.msra.mxu0 0
      %469 = vmatprep.subr.bf16.mxu0 0
      %470 = vmatpush1.bf16.xpose.msra.mxu0 0
      %471 = vmatprep.subr.bf16.mxu0 0
      %472 = vmatpush1.bf16.xpose.msra.mxu0 0
      %473 = vmatprep.subr.bf16.mxu0 0
      %474 = vmatpush1.bf16.xpose.msra.mxu0 0
      %475 = vmatprep.subr.bf16.mxu0 0
      %476 = vmatpush1.bf16.xpose.msra.mxu0 0
      %477 = vmatprep.subr.bf16.mxu0 0
      %478 = vmatpush1.bf16.xpose.msra.mxu0 0
      %479 = vmatprep.subr.bf16.mxu0 0
      %480 = vmatpush1.bf16.xpose.msra.mxu0 0
      %481 = vmatprep.subr.bf16.mxu0 0
      %482 = vmatpush1.bf16.xpose.msra.mxu0 0
      %483 = vmatprep.subr.bf16.mxu0 0
      %484 = vmatpush1.bf16.xpose.msra.mxu0 0
      %485 = vmatprep.subr.bf16.mxu0 0
      %486 = vmatpush1.bf16.xpose.msra.mxu0 0
      %487 = vmatprep.subr.bf16.mxu0 0
      %488 = vmatpush1.bf16.xpose.msra.mxu0 0
      %489 = vmatprep.subr.bf16.mxu0 0
      %490 = vmatpush1.bf16.xpose.msra.mxu0 0
      %491 = vmatprep.mubr.bf16.mxu0 0
      %492 = vmatmul.mubr.bf16.gmra.mrb[0].mxu0 %v454
      %v493 = vpop.f32.mrb[0].mxu0
      %v494 = vadd.f32 0.0, %v493
      %v495 = vpop.f32.mrb[0].mxu0
      %v496 = vpop.f32.mrb[0].mxu0
      %v497 = vpop.f32.mrb[0].mxu0
      %498 = vdwg.mxu0
      %v499 = vmul.f32 %v494, 0.35355338
      %v500 = vsel %vm118, %v499, -inf
      %501 = vmax.xlane.f32.xlu0 %v500
      %v502 = vpop.xlane.xlu0 %501
      %v503 = vsub.f32 %v499, %v502
      %v504 = vmul.f32 %v503, 1.442695
      %v505 = vpow.pop %v504
      %v506 = vsel %vm118, %v505, 0.0
      %507 = vadd.xlane.f32.xlu0 %v506
      %v508 = vpop.xlane.xlu0 %507
      %v509 = vrcp.pop %v508
      %v510 = vmul.f32 %v505, %v509
      %v511 = vpack.c.bf16 %v510, %v510
      %512 = vrot.lane.b32.xlu0 %v114, 40
      %v513 = vpop.permute.xlu0 %512
      %v515 = vsel %vm118, %v511, 0
      %v518 = vsel %vm183, %v513, 0
      %520 = vmatprep.subr.bf16.mxu0 0
      %521 = vmatpush1.bf16.msra.mxu0 %v518
      %522 = vmatprep.subr.bf16.mxu0 0
      %523 = vmatpush1.bf16.msra.mxu0 0
      %524 = vmatprep.subr.bf16.mxu0 0
      %525 = vmatpush1.bf16.msra.mxu0 0
      %526 = vmatprep.subr.bf16.mxu0 0
      %527 = vmatpush1.bf16.msra.mxu0 0
      %528 = vmatprep.subr.bf16.mxu0 0
      %529 = vmatpush1.bf16.msra.mxu0 0
      %530 = vmatprep.subr.bf16.mxu0 0
      %531 = vmatpush1.bf16.msra.mxu0 0
      %532 = vmatprep.subr.bf16.mxu0 0
      %533 = vmatpush1.bf16.msra.mxu0 0
      %534 = vmatprep.subr.bf16.mxu0 0
      %535 = vmatpush1.bf16.msra.mxu0 0
      %536 = vmatprep.subr.bf16.mxu0 0
      %537 = vmatpush1.bf16.msra.mxu0 0
      %538 = vmatprep.subr.bf16.mxu0 0
      %539 = vmatpush1.bf16.msra.mxu0 0
      %540 = vmatprep.subr.bf16.mxu0 0
      %541 = vmatpush1.bf16.msra.mxu0 0
      %542 = vmatprep.subr.bf16.mxu0 0
      %543 = vmatpush1.bf16.msra.mxu0 0
      %544 = vmatprep.subr.bf16.mxu0 0
      %545 = vmatpush1.bf16.msra.mxu0 0
      %546 = vmatprep.subr.bf16.mxu0 0
      %547 = vmatpush1.bf16.msra.mxu0 0
      %548 = vmatprep.subr.bf16.mxu0 0
      %549 = vmatpush1.bf16.msra.mxu0 0
      %550 = vmatprep.subr.bf16.mxu0 0
      %551 = vmatpush1.bf16.msra.mxu0 0
      %552 = vmatprep.mubr.bf16.mxu0 0
      %553 = vmatmul.mubr.bf16.gmra.mrb[0].mxu0 %v515
      %v554 = vpop.f32.mrb[0].mxu0
      %v555 = vadd.f32 0.0, %v554
      %v556 = vpop.f32.mrb[0].mxu0
      %v557 = vpop.f32.mrb[0].mxu0
      %v558 = vpop.f32.mrb[0].mxu0
      %559 = vdwg.mxu0
      %561 = vrot.lane.b32.xlu0 %v333, 8
      %v562 = vpop.permute.xlu0 %561
      %565 = vrot.lane.b32.xlu0 %v444, 16
      %v566 = vpop.permute.xlu0 %565
      %569 = vrot.lane.b32.xlu0 %v555, 24
      %v570 = vpop.permute.xlu0 %569
      %v572 = vsel %vm118, %v222, %v562
      %vm573 = vcmask 130048
      %v574 = vsel %vm573, %v572, %v566
      %vm575 = vcmask 195584
      %v576 = vsel %vm575, %v574, %v570
      %vm577 = vcmask 261120
      %578 = vst.msk [vmem:[%s111] sm:$0xff] %vm577, %v576
      %p579 = scmp.lt.s32.totalorder %s12, 1
      %s580 = scalar_select %p579, %s12, 1
      %s581 = smul.addr %s580, 8
      %s582 = scalar_lea.vmem %s1, %s581
      // Predicated region
      $region25: #{transformer_decoder.17} parent=23 // pred_check
        %p583 = pneg %p56
      $region26: #{transformer_decoder.17} parent=23 // pred_check_branch
        %585 = sbr.rel (%p583) target = $region28
      $region27: #{transformer_decoder.17} parent=23 // pred_region
        _
      $region28: #{transformer_decoder.17} parent=23 // pred_fallthru
        _
    $region24: #{transformer_decoder.17} parent=5 // pred_fallthru
      _
    %p586 = scmp.le.s32.totalorder 2, %s7
    // Predicated region
    $region29: #{transformer_decoder.17} parent=5 // pred_check
      %p587 = pneg %p586
    $region30: #{transformer_decoder.17} parent=5 // pred_check_branch
      %589 = sbr.rel (%p587) target = $region32
    $region31: #{transformer_decoder.17} parent=5 // pred_region
      %s590 = ssub.s32 %s7, 2
      // Predicated region
      $region33: #{transformer_decoder.17} parent=31 // pred_check
        %p591 = pneg %p62
      $region34: #{transformer_decoder.17} parent=31 // pred_check_branch
        %593 = sbr.rel (%p591) target = $region36
      $region35: #{transformer_decoder.17} parent=31 // pred_region
        %p594 = scmp.lt.s32.totalorder %s13, 1
        %s595 = scalar_select %p594, %s13, 1
        %s596 = smul.addr %s595, 8
        %s597 = scalar_lea.vmem %s1, %s596
      $region36: #{transformer_decoder.17} parent=31 // pred_fallthru
        _
    $region32: #{transformer_decoder.17} parent=5 // pred_fallthru
      _
  $region6: #{transformer_decoder.17} parent=0 // loop_footer
    %s11 = sadd.s32 1, %s7
  $region7: #{transformer_decoder.17} parent=0 // loop_footer_branch
    %6 = sbr.rel target = $region3
  $region8: #{transformer_decoder.17} parent=0 // loop_exit
    _

// kernel: transformer_decoder.21
$region0: #{transformer_decoder.21}
  #allocation0 [shape = 'u32[]', space=smem, size = 0x4, offset = 0x4, fixed_abs, tag = 'smem constant byte address 0x4 - core index']
  #allocation1 [shape = 'u32[144,128]{1,0:T(1,128)}', space=vmem, size = 0x12000, scoped, tag = 'internal scratch']
  %s0 = inlined_call_operand.vmem [shape: f32[2,8,32], index: 0, kind: input, shape index: {}]
  %s1 = inlined_call_operand.vmem [shape: f32[2,8,64], index: 1, kind: input, shape index: {}]
  %s2 = inlined_call_operand.vmem [shape: f32[2,8,32], index: 2, kind: output, shape index: {}]
  %s3 = sld [smem:[#allocation0]]
  $region41: #{transformer_decoder.21} parent=0
    _
  %s5 = ssub.s32 1, %s3
  %s6 = scalar_select 0, %s5, %s3
  loop: start=0, step=1, limit=4
  $region2: #{transformer_decoder.21} parent=0 // loop_pre_header
    _
  $region3: #{transformer_decoder.21} parent=0 // loop_header
    %s8 = sphi 0, %s12
    %p9 = scmp.ge.s32.totalorder %s8, 4
    %s18 = sphi 0, %s20
    %s21 = sphi 0, %s18
    %s22 = sphi 0, %s21
    %s38 = sphi 0, %s22
    %s44 = sphi 0, %s46
    %s47 = sphi 0, %s44
    %s48 = sphi 0, %s47
    %s64 = sphi 0, %s48
    %s70 = sphi 0, %s72
    %s73 = sphi 0, %s70
    %s74 = sphi 0, %s73
    %s90 = sphi 0, %s74
  $region4: #{transformer_decoder.21} parent=0 // loop_header_branch
    %11 = sbr.rel (%p9) target = $region8
  $region5: #{transformer_decoder.21} parent=0 // loop_body
    %s13 = ssub.s32 %s8, 1
    %s14 = ssub.s32 %s8, 2
    %s15 = sadd.s32 %s8, 1
    %s16 = ssub.s32 %s8, %s15
    %p17 = scmp.eq.s32.totalorder %s16, 0
    %s19 = sadd.s32 %s18, 1
    %s20 = scalar_select %p17, %s18, %s19
    %p23 = pneg %p17
    %p24 = scmp.eq.s32.totalorder %s8, 1
    %p25 = por %p23, %p24
    %p26 = scmp.ne.s32.totalorder %s18, %s21
    %p27 = scmp.eq.s32.totalorder %s8, 0
    %p28 = por %p26, %p27
    %p29 = scmp.ne.s32.totalorder %s18, %s21
    %p30 = scmp.eq.s32.totalorder %s13, 1
    %p31 = por %p29, %p30
    %p32 = scmp.ne.s32.totalorder %s21, %s22
    %p33 = scmp.eq.s32.totalorder %s13, 0
    %p34 = por %p32, %p33
    %p35 = scmp.ne.s32.totalorder %s21, %s22
    %p36 = scmp.eq.s32.totalorder %s14, 1
    %p37 = por %p35, %p36
    %p39 = scmp.ne.s32.totalorder %s22, %s38
    %p40 = scmp.eq.s32.totalorder %s14, 0
    %p41 = por %p39, %p40
    %s42 = ssub.s32 %s8, %s15
    %p43 = scmp.eq.s32.totalorder %s42, 0
    %s45 = sadd.s32 %s44, 1
    %s46 = scalar_select %p43, %s44, %s45
    %p49 = pneg %p43
    %p50 = scmp.eq.s32.totalorder %s8, 1
    %p51 = por %p49, %p50
    %p52 = scmp.ne.s32.totalorder %s44, %s47
    %p53 = scmp.eq.s32.totalorder %s8, 0
    %p54 = por %p52, %p53
    %p55 = scmp.ne.s32.totalorder %s44, %s47
    %p56 = scmp.eq.s32.totalorder %s13, 1
    %p57 = por %p55, %p56
    %p58 = scmp.ne.s32.totalorder %s47, %s48
    %p59 = scmp.eq.s32.totalorder %s13, 0
    %p60 = por %p58, %p59
    %p61 = scmp.ne.s32.totalorder %s47, %s48
    %p62 = scmp.eq.s32.totalorder %s14, 1
    %p63 = por %p61, %p62
    %p65 = scmp.ne.s32.totalorder %s48, %s64
    %p66 = scmp.eq.s32.totalorder %s14, 0
    %p67 = por %p65, %p66
    %s68 = ssub.s32 %s8, %s15
    %p69 = scmp.eq.s32.totalorder %s68, 0
    %s71 = sadd.s32 %s70, 1
    %s72 = scalar_select %p69, %s70, %s71
    %p75 = pneg %p69
    %p76 = scmp.eq.s32.totalorder %s8, 1
    %p77 = por %p75, %p76
    %p78 = scmp.ne.s32.totalorder %s70, %s73
    %p79 = scmp.eq.s32.totalorder %s8, 0
    %p80 = por %p78, %p79
    %p81 = scmp.ne.s32.totalorder %s70, %s73
    %p82 = scmp.eq.s32.totalorder %s13, 1
    %p83 = por %p81, %p82
    %p84 = scmp.ne.s32.totalorder %s73, %s74
    %p85 = scmp.eq.s32.totalorder %s13, 0
    %p86 = por %p84, %p85
    %p87 = scmp.ne.s32.totalorder %s73, %s74
    %p88 = scmp.eq.s32.totalorder %s14, 1
    %p89 = por %p87, %p88
    %p91 = scmp.ne.s32.totalorder %s74, %s90
    %p92 = scmp.eq.s32.totalorder %s14, 0
    %p93 = por %p91, %p92
    %p94 = scmp.le.s32.totalorder 1, %s8
    %p95 = scmp.lt.s32.totalorder %s8, 3
    %p96 = pnand %p94, %p95
    %p97 = pneg %p96
    // Predicated region
    $region9: #{transformer_decoder.21} parent=5 // pred_check
      _
    $region10: #{transformer_decoder.21} parent=5 // pred_check_branch
      %99 = sbr.rel (%p96) target = $region12
    $region11: #{transformer_decoder.21} parent=5 // pred_region
      %s100 = ssub.s32 %s8, 1
    $region12: #{transformer_decoder.21} parent=5 // pred_fallthru
      _
    %p101 = scmp.lt.s32.totalorder %s8, 2
    // Predicated region
    $region13: #{transformer_decoder.21} parent=5 // pred_check
      %p102 = pneg %p101
    $region14: #{transformer_decoder.21} parent=5 // pred_check_branch
      %104 = sbr.rel (%p102) target = $region16
    $region15: #{transformer_decoder.21} parent=5 // pred_region
      // Predicated region
      $region17: #{transformer_decoder.21} parent=15 // pred_check
        %p105 = pneg %p28
      $region18: #{transformer_decoder.21} parent=15 // pred_check_branch
        %107 = sbr.rel (%p105) target = $region20
      $region19: #{transformer_decoder.21} parent=15 // pred_region
        %p108 = scmp.lt.s32.totalorder %s8, 1
        %s109 = scalar_select %p108, %s8, 1
        %s110 = smul.addr %s109, 8
        %s111 = scalar_lea.vmem %s0, %s110
      $region20: #{transformer_decoder.21} parent=15 // pred_fallthru
        _
      // Predicated region
      $region21: #{transformer_decoder.21} parent=15 // pred_check
        %p112 = pneg %p54
      $region22: #{transformer_decoder.21} parent=15 // pred_check_branch
        %114 = sbr.rel (%p112) target = $region24
      $region23: #{transformer_decoder.21} parent=15 // pred_region
        %p115 = scmp.lt.s32.totalorder %s8, 1
        %s116 = scalar_select %p115, %s8, 1
        %s117 = smul.addr %s116, 8
        %s118 = scalar_lea.vmem %s1, %s117
      $region24: #{transformer_decoder.21} parent=15 // pred_fallthru
        _
    $region16: #{transformer_decoder.21} parent=5 // pred_fallthru
      _
    %p119 = scmp.le.s32.totalorder 1, %s8
    %p120 = scmp.lt.s32.totalorder %s8, 3
    %p121 = pnand %p119, %p120
    %p122 = pneg %p121
    // Predicated region
    $region25: #{transformer_decoder.21} parent=5 // pred_check
      _
    $region26: #{transformer_decoder.21} parent=5 // pred_check_branch
      %124 = sbr.rel (%p121) target = $region28
    $region27: #{transformer_decoder.21} parent=5 // pred_region
      %s125 = ssub.s32 %s8, 1
      %p126 = scmp.lt.s32.totalorder %s13, 1
      %s127 = scalar_select %p126, %s13, 1
      %s128 = smul.addr %s127, 8
      %s129 = scalar_lea.vmem %s0, %s128
      %p130 = pneg %p34
      %p131 = pneg %p31
      %p132 = scmp.lt.s32.totalorder %s13, 1
      %s133 = scalar_select %p132, %s13, 1
      %s134 = smul.addr %s133, 8
      %s135 = scalar_lea.vmem %s1, %s134
      %p136 = pneg %p60
      %p137 = pneg %p57
      %p138 = pneg %p86
      %p139 = pneg %p83
      %p140 = scmp.lt.s32.totalorder %s13, 1
      %s141 = scalar_select %p140, %s13, 1
      %s142 = smul.addr %s141, 8
      %s143 = scalar_lea.vmem %s2, %s142
      %p144 = scmp.lt.s32.totalorder %s13, 1
      %s145 = scalar_select %p144, %s13, 1
      %s146 = smul.addr %s145, 8
      %s147 = scalar_lea.vmem %s0, %s146
      %p148 = scmp.lt.s32.totalorder %s13, 1
      %s149 = scalar_select %p148, %s13, 1
      %s150 = smul.addr %s149, 8
      %s151 = scalar_lea.vmem %s1, %s150
      %p152 = scmp.lt.s32.totalorder %s13, 1
      %s153 = scalar_select %p152, %s13, 1
      %s154 = smul.addr %s153, 8
      %s155 = scalar_lea.vmem %s2, %s154
      %v157 = vld [vmem:[%s147] sm:$0xff]
      %v158 = vld [vmem:[%s151] sm:$0xff]
      %v159 = vpack.c.bf16 %v157, %v157
      %v160 = vpack.c.bf16 %v158, %v158
      %vm161 = vcmask 64512
      %v163 = vsel %vm161, %v159, 0
      %v166 = vsel %vm161, %v160, 0
      %168 = vmatprep.subr.bf16.mxu0 0
      %169 = vmatpush1.bf16.xpose.msra.mxu0 %v166
      %170 = vmatprep.subr.bf16.mxu0 0
      %171 = vmatpush1.bf16.xpose.msra.mxu0 0
      %172 = vmatprep.subr.bf16.mxu0 0
      %173 = vmatpush1.bf16.xpose.msra.mxu0 0
      %174 = vmatprep.subr.bf16.mxu0 0
      %175 = vmatpush1.bf16.xpose.msra.mxu0 0
      %176 = vmatprep.subr.bf16.mxu0 0
      %177 = vmatpush1.bf16.xpose.msra.mxu0 0
      %178 = vmatprep.subr.bf16.mxu0 0
      %179 = vmatpush1.bf16.xpose.msra.mxu0 0
      %180 = vmatprep.subr.bf16.mxu0 0
      %181 = vmatpush1.bf16.xpose.msra.mxu0 0
      %182 = vmatprep.subr.bf16.mxu0 0
      %183 = vmatpush1.bf16.xpose.msra.mxu0 0
      %184 = vmatprep.subr.bf16.mxu0 0
      %185 = vmatpush1.bf16.xpose.msra.mxu0 0
      %186 = vmatprep.subr.bf16.mxu0 0
      %187 = vmatpush1.bf16.xpose.msra.mxu0 0
      %188 = vmatprep.subr.bf16.mxu0 0
      %189 = vmatpush1.bf16.xpose.msra.mxu0 0
      %190 = vmatprep.subr.bf16.mxu0 0
      %191 = vmatpush1.bf16.xpose.msra.mxu0 0
      %192 = vmatprep.subr.bf16.mxu0 0
      %193 = vmatpush1.bf16.xpose.msra.mxu0 0
      %194 = vmatprep.subr.bf16.mxu0 0
      %195 = vmatpush1.bf16.xpose.msra.mxu0 0
      %196 = vmatprep.subr.bf16.mxu0 0
      %197 = vmatpush1.bf16.xpose.msra.mxu0 0
      %198 = vmatprep.subr.bf16.mxu0 0
      %199 = vmatpush1.bf16.xpose.msra.mxu0 0
      %200 = vmatprep.mubr.bf16.mxu0 0
      %201 = vmatmul.mubr.bf16.gmra.mrb[0].mxu0 %v163
      %v202 = vpop.f32.mrb[0].mxu0
      %v203 = vadd.f32 0.0, %v202
      %v204 = vpop.f32.mrb[0].mxu0
      %v205 = vpop.f32.mrb[0].mxu0
      %v206 = vpop.f32.mrb[0].mxu0
      %207 = vdwg.mxu0
      %v208 = vmul.f32 %v203, 0.35355338
      %v209 = vsel %vm161, %v208, -inf
      %210 = vmax.xlane.f32.xlu0 %v209
      %v211 = vpop.xlane.xlu0 %210
      %v212 = vsub.f32 %v208, %v211
      %v213 = vmul.f32 %v212, 1.442695
      %v214 = vpow.pop %v213
      %v215 = vsel %vm161, %v214, 0.0
      %216 = vadd.xlane.f32.xlu0 %v215
      %v217 = vpop.xlane.xlu0 %216
      %v218 = vrcp.pop %v217
      %v219 = vmul.f32 %v214, %v218
      %v220 = vpack.c.bf16 %v219, %v219
      %222 = vrot.lane.b32.xlu0 %v160, 96
      %v223 = vpop.permute.xlu0 %222
      %v225 = vsel %vm161, %v220, 0
      %vm227 = vcmask 1043456
      %v229 = vsel %vm227, %v223, 0
      %231 = vmatprep.subr.bf16.mxu0 0
      %232 = vmatpush1.bf16.msra.mxu0 %v229
      %233 = vmatprep.subr.bf16.mxu0 0
      %234 = vmatpush1.bf16.msra.mxu0 0
      %235 = vmatprep.subr.bf16.mxu0 0
      %236 = vmatpush1.bf16.msra.mxu0 0
      %237 = vmatprep.subr.bf16.mxu0 0
      %238 = vmatpush1.bf16.msra.mxu0 0
      %239 = vmatprep.subr.bf16.mxu0 0
      %240 = vmatpush1.bf16.msra.mxu0 0
      %241 = vmatprep.subr.bf16.mxu0 0
      %242 = vmatpush1.bf16.msra.mxu0 0
      %243 = vmatprep.subr.bf16.mxu0 0
      %244 = vmatpush1.bf16.msra.mxu0 0
      %245 = vmatprep.subr.bf16.mxu0 0
      %246 = vmatpush1.bf16.msra.mxu0 0
      %247 = vmatprep.subr.bf16.mxu0 0
      %248 = vmatpush1.bf16.msra.mxu0 0
      %249 = vmatprep.subr.bf16.mxu0 0
      %250 = vmatpush1.bf16.msra.mxu0 0
      %251 = vmatprep.subr.bf16.mxu0 0
      %252 = vmatpush1.bf16.msra.mxu0 0
      %253 = vmatprep.subr.bf16.mxu0 0
      %254 = vmatpush1.bf16.msra.mxu0 0
      %255 = vmatprep.subr.bf16.mxu0 0
      %256 = vmatpush1.bf16.msra.mxu0 0
      %257 = vmatprep.subr.bf16.mxu0 0
      %258 = vmatpush1.bf16.msra.mxu0 0
      %259 = vmatprep.subr.bf16.mxu0 0
      %260 = vmatpush1.bf16.msra.mxu0 0
      %261 = vmatprep.subr.bf16.mxu0 0
      %262 = vmatpush1.bf16.msra.mxu0 0
      %263 = vmatprep.mubr.bf16.mxu0 0
      %264 = vmatmul.mubr.bf16.gmra.mrb[0].mxu0 %v225
      %v265 = vpop.f32.mrb[0].mxu0
      %v266 = vadd.f32 0.0, %v265
      %v267 = vpop.f32.mrb[0].mxu0
      %v268 = vpop.f32.mrb[0].mxu0
      %v269 = vpop.f32.mrb[0].mxu0
      %270 = vdwg.mxu0
      %272 = vrot.lane.b32.xlu0 %v159, 120
      %v273 = vpop.permute.xlu0 %272
      %274 = vrot.lane.b32.xlu0 %v160, 120
      %v275 = vpop.permute.xlu0 %274
      %v277 = vsel %vm161, %v273, 0
      %v280 = vsel %vm161, %v275, 0
      %282 = vmatprep.subr.bf16.mxu0 0
      %283 = vmatpush1.bf16.xpose.msra.mxu0 %v280
      %284 = vmatprep.subr.bf16.mxu0 0
      %285 = vmatpush1.bf16.xpose.msra.mxu0 0
      %286 = vmatprep.subr.bf16.mxu0 0
      %287 = vmatpush1.bf16.xpose.msra.mxu0 0
      %288 = vmatprep.subr.bf16.mxu0 0
      %289 = vmatpush1.bf16.xpose.msra.mxu0 0
      %290 = vmatprep.subr.bf16.mxu0 0
      %291 = vmatpush1.bf16.xpose.msra.mxu0 0
      %292 = vmatprep.subr.bf16.mxu0 0
      %293 = vmatpush1.bf16.xpose.msra.mxu0 0
      %294 = vmatprep.subr.bf16.mxu0 0
      %295 = vmatpush1.bf16.xpose.msra.mxu0 0
      %296 = vmatprep.subr.bf16.mxu0 0
      %297 = vmatpush1.bf16.xpose.msra.mxu0 0
      %298 = vmatprep.subr.bf16.mxu0 0
      %299 = vmatpush1.bf16.xpose.msra.mxu0 0
      %300 = vmatprep.subr.bf16.mxu0 0
      %301 = vmatpush1.bf16.xpose.msra.mxu0 0
      %302 = vmatprep.subr.bf16.mxu0 0
      %303 = vmatpush1.bf16.xpose.msra.mxu0 0
      %304 = vmatprep.subr.bf16.mxu0 0
      %305 = vmatpush1.bf16.xpose.msra.mxu0 0
      %306 = vmatprep.subr.bf16.mxu0 0
      %307 = vmatpush1.bf16.xpose.msra.mxu0 0
      %308 = vmatprep.subr.bf16.mxu0 0
      %309 = vmatpush1.bf16.xpose.msra.mxu0 0
      %310 = vmatprep.subr.bf16.mxu0 0
      %311 = vmatpush1.bf16.xpose.msra.mxu0 0
      %312 = vmatprep.subr.bf16.mxu0 0
      %313 = vmatpush1.bf16.xpose.msra.mxu0 0
      %314 = vmatprep.mubr.bf16.mxu0 0
      %315 = vmatmul.mubr.bf16.gmra.mrb[0].mxu0 %v277
      %v316 = vpop.f32.mrb[0].mxu0
      %v317 = vadd.f32 0.0, %v316
      %v318 = vpop.f32.mrb[0].mxu0
      %v319 = vpop.f32.mrb[0].mxu0
      %v320 = vpop.f32.mrb[0].mxu0
      %321 = vdwg.mxu0
      %v322 = vmul.f32 %v317, 0.35355338
      %v323 = vsel %vm161, %v322, -inf
      %324 = vmax.xlane.f32.xlu0 %v323
      %v325 = vpop.xlane.xlu0 %324
      %v326 = vsub.f32 %v322, %v325
      %v327 = vmul.f32 %v326, 1.442695
      %v328 = vpow.pop %v327
      %v329 = vsel %vm161, %v328, 0.0
      %330 = vadd.xlane.f32.xlu0 %v329
      %v331 = vpop.xlane.xlu0 %330
      %v332 = vrcp.pop %v331
      %v333 = vmul.f32 %v328, %v332
      %v334 = vpack.c.bf16 %v333, %v333
      %335 = vrot.lane.b32.xlu0 %v160, 88
      %v336 = vpop.permute.xlu0 %335
      %v338 = vsel %vm161, %v334, 0
      %v341 = vsel %vm227, %v336, 0
      %343 = vmatprep.subr.bf16.mxu0 0
      %344 = vmatpush1.bf16.msra.mxu0 %v341
      %345 = vmatprep.subr.bf16.mxu0 0
      %346 = vmatpush1.bf16.msra.mxu0 0
      %347 = vmatprep.subr.bf16.mxu0 0
      %348 = vmatpush1.bf16.msra.mxu0 0
      %349 = vmatprep.subr.bf16.mxu0 0
      %350 = vmatpush1.bf16.msra.mxu0 0
      %351 = vmatprep.subr.bf16.mxu0 0
      %352 = vmatpush1.bf16.msra.mxu0 0
      %353 = vmatprep.subr.bf16.mxu0 0
      %354 = vmatpush1.bf16.msra.mxu0 0
      %355 = vmatprep.subr.bf16.mxu0 0
      %356 = vmatpush1.bf16.msra.mxu0 0
      %357 = vmatprep.subr.bf16.mxu0 0
      %358 = vmatpush1.bf16.msra.mxu0 0
      %359 = vmatprep.subr.bf16.mxu0 0
      %360 = vmatpush1.bf16.msra.mxu0 0
      %361 = vmatprep.subr.bf16.mxu0 0
      %362 = vmatpush1.bf16.msra.mxu0 0
      %363 = vmatprep.subr.bf16.mxu0 0
      %364 = vmatpush1.bf16.msra.mxu0 0
      %365 = vmatprep.subr.bf16.mxu0 0
      %366 = vmatpush1.bf16.msra.mxu0 0
      %367 = vmatprep.subr.bf16.mxu0 0
      %368 = vmatpush1.bf16.msra.mxu0 0
      %369 = vmatprep.subr.bf16.mxu0 0
      %370 = vmatpush1.bf16.msra.mxu0 0
      %371 = vmatprep.subr.bf16.mxu0 0
      %372 = vmatpush1.bf16.msra.mxu0 0
      %373 = vmatprep.subr.bf16.mxu0 0
      %374 = vmatpush1.bf16.msra.mxu0 0
      %375 = vmatprep.mubr.bf16.mxu0 0
      %376 = vmatmul.mubr.bf16.gmra.mrb[0].mxu0 %v338
      %v377 = vpop.f32.mrb[0].mxu0
      %v378 = vadd.f32 0.0, %v377
      %v379 = vpop.f32.mrb[0].mxu0
      %v380 = vpop.f32.mrb[0].mxu0
      %v381 = vpop.f32.mrb[0].mxu0
      %382 = vdwg.mxu0
      %383 = vrot.lane.b32.xlu0 %v159, 112
      %v384 = vpop.permute.xlu0 %383
      %385 = vrot.lane.b32.xlu0 %v160, 112
      %v386 = vpop.permute.xlu0 %385
      %v388 = vsel %vm161, %v384, 0
      %v391 = vsel %vm161, %v386, 0
      %393 = vmatprep.subr.bf16.mxu0 0
      %394 = vmatpush1.bf16.xpose.msra.mxu0 %v391
      %395 = vmatprep.subr.bf16.mxu0 0
      %396 = vmatpush1.bf16.xpose.msra.mxu0 0
      %397 = vmatprep.subr.bf16.mxu0 0
      %398 = vmatpush1.bf16.xpose.msra.mxu0 0
      %399 = vmatprep.subr.bf16.mxu0 0
      %400 = vmatpush1.bf16.xpose.msra.mxu0 0
      %401 = vmatprep.subr.bf16.mxu0 0
      %402 = vmatpush1.bf16.xpose.msra.mxu0 0
      %403 = vmatprep.subr.bf16.mxu0 0
      %404 = vmatpush1.bf16.xpose.msra.mxu0 0
      %405 = vmatprep.subr.bf16.mxu0 0
      %406 = vmatpush1.bf16.xpose.msra.mxu0 0
      %407 = vmatprep.subr.bf16.mxu0 0
      %408 = vmatpush1.bf16.xpose.msra.mxu0 0
      %409 = vmatprep.subr.bf16.mxu0 0
      %410 = vmatpush1.bf16.xpose.msra.mxu0 0
      %411 = vmatprep.subr.bf16.mxu0 0
      %412 = vmatpush1.bf16.xpose.msra.mxu0 0
      %413 = vmatprep.subr.bf16.mxu0 0
      %414 = vmatpush1.bf16.xpose.msra.mxu0 0
      %415 = vmatprep.subr.bf16.mxu0 0
      %416 = vmatpush1.bf16.xpose.msra.mxu0 0
      %417 = vmatprep.subr.bf16.mxu0 0
      %418 = vmatpush1.bf16.xpose.msra.mxu0 0
      %419 = vmatprep.subr.bf16.mxu0 0
      %420 = vmatpush1.bf16.xpose.msra.mxu0 0
      %421 = vmatprep.subr.bf16.mxu0 0
      %422 = vmatpush1.bf16.xpose.msra.mxu0 0
      %423 = vmatprep.subr.bf16.mxu0 0
      %424 = vmatpush1.bf16.xpose.msra.mxu0 0
      %425 = vmatprep.mubr.bf16.mxu0 0
      %426 = vmatmul.mubr.bf16.gmra.mrb[0].mxu0 %v388
      %v427 = vpop.f32.mrb[0].mxu0
      %v428 = vadd.f32 0.0, %v427
      %v429 = vpop.f32.mrb[0].mxu0
      %v430 = vpop.f32.mrb[0].mxu0
      %v431 = vpop.f32.mrb[0].mxu0
      %432 = vdwg.mxu0
      %v433 = vmul.f32 %v428, 0.35355338
      %v434 = vsel %vm161, %v433, -inf
      %435 = vmax.xlane.f32.xlu0 %v434
      %v436 = vpop.xlane.xlu0 %435
      %v437 = vsub.f32 %v433, %v436
      %v438 = vmul.f32 %v437, 1.442695
      %v439 = vpow.pop %v438
      %v440 = vsel %vm161, %v439, 0.0
      %441 = vadd.xlane.f32.xlu0 %v440
      %v442 = vpop.xlane.xlu0 %441
      %v443 = vrcp.pop %v442
      %v444 = vmul.f32 %v439, %v443
      %v445 = vpack.c.bf16 %v444, %v444
      %446 = vrot.lane.b32.xlu0 %v160, 80
      %v447 = vpop.permute.xlu0 %446
      %v449 = vsel %vm161, %v445, 0
      %v452 = vsel %vm227, %v447, 0
      %454 = vmatprep.subr.bf16.mxu0 0
      %455 = vmatpush1.bf16.msra.mxu0 %v452
      %456 = vmatprep.subr.bf16.mxu0 0
      %457 = vmatpush1.bf16.msra.mxu0 0
      %458 = vmatprep.subr.bf16.mxu0 0
      %459 = vmatpush1.bf16.msra.mxu0 0
      %460 = vmatprep.subr.bf16.mxu0 0
      %461 = vmatpush1.bf16.msra.mxu0 0
      %462 = vmatprep.subr.bf16.mxu0 0
      %463 = vmatpush1.bf16.msra.mxu0 0
      %464 = vmatprep.subr.bf16.mxu0 0
      %465 = vmatpush1.bf16.msra.mxu0 0
      %466 = vmatprep.subr.bf16.mxu0 0
      %467 = vmatpush1.bf16.msra.mxu0 0
      %468 = vmatprep.subr.bf16.mxu0 0
      %469 = vmatpush1.bf16.msra.mxu0 0
      %470 = vmatprep.subr.bf16.mxu0 0
      %471 = vmatpush1.bf16.msra.mxu0 0
      %472 = vmatprep.subr.bf16.mxu0 0
      %473 = vmatpush1.bf16.msra.mxu0 0
      %474 = vmatprep.subr.bf16.mxu0 0
      %475 = vmatpush1.bf16.msra.mxu0 0
      %476 = vmatprep.subr.bf16.mxu0 0
      %477 = vmatpush1.bf16.msra.mxu0 0
      %478 = vmatprep.subr.bf16.mxu0 0
      %479 = vmatpush1.bf16.msra.mxu0 0
      %480 = vmatprep.subr.bf16.mxu0 0
      %481 = vmatpush1.bf16.msra.mxu0 0
      %482 = vmatprep.subr.bf16.mxu0 0
      %483 = vmatpush1.bf16.msra.mxu0 0
      %484 = vmatprep.subr.bf16.mxu0 0
      %485 = vmatpush1.bf16.msra.mxu0 0
      %486 = vmatprep.mubr.bf16.mxu0 0
      %487 = vmatmul.mubr.bf16.gmra.mrb[0].mxu0 %v449
      %v488 = vpop.f32.mrb[0].mxu0
      %v489 = vadd.f32 0.0, %v488
      %v490 = vpop.f32.mrb[0].mxu0
      %v491 = vpop.f32.mrb[0].mxu0
      %v492 = vpop.f32.mrb[0].mxu0
      %493 = vdwg.mxu0
      %494 = vrot.lane.b32.xlu0 %v159, 104
      %v495 = vpop.permute.xlu0 %494
      %496 = vrot.lane.b32.xlu0 %v160, 104
      %v497 = vpop.permute.xlu0 %496
      %v499 = vsel %vm161, %v495, 0
      %v502 = vsel %vm161, %v497, 0
      %504 = vmatprep.subr.bf16.mxu0 0
      %505 = vmatpush1.bf16.xpose.msra.mxu0 %v502
      %506 = vmatprep.subr.bf16.mxu0 0
      %507 = vmatpush1.bf16.xpose.msra.mxu0 0
      %508 = vmatprep.subr.bf16.mxu0 0
      %509 = vmatpush1.bf16.xpose.msra.mxu0 0
      %510 = vmatprep.subr.bf16.mxu0 0
      %511 = vmatpush1.bf16.xpose.msra.mxu0 0
      %512 = vmatprep.subr.bf16.mxu0 0
      %513 = vmatpush1.bf16.xpose.msra.mxu0 0
      %514 = vmatprep.subr.bf16.mxu0 0
      %515 = vmatpush1.bf16.xpose.msra.mxu0 0
      %516 = vmatprep.subr.bf16.mxu0 0
      %517 = vmatpush1.bf16.xpose.msra.mxu0 0
      %518 = vmatprep.subr.bf16.mxu0 0
      %519 = vmatpush1.bf16.xpose.msra.mxu0 0
      %520 = vmatprep.subr.bf16.mxu0 0
      %521 = vmatpush1.bf16.xpose.msra.mxu0 0
      %522 = vmatprep.subr.bf16.mxu0 0
      %523 = vmatpush1.bf16.xpose.msra.mxu0 0
      %524 = vmatprep.subr.bf16.mxu0 0
      %525 = vmatpush1.bf16.xpose.msra.mxu0 0
      %526 = vmatprep.subr.bf16.mxu0 0
      %527 = vmatpush1.bf16.xpose.msra.mxu0 0
      %528 = vmatprep.subr.bf16.mxu0 0
      %529 = vmatpush1.bf16.xpose.msra.mxu0 0
      %530 = vmatprep.subr.bf16.mxu0 0
      %531 = vmatpush1.bf16.xpose.msra.mxu0 0
      %532 = vmatprep.subr.bf16.mxu0 0
      %533 = vmatpush1.bf16.xpose.msra.mxu0 0
      %534 = vmatprep.subr.bf16.mxu0 0
      %535 = vmatpush1.bf16.xpose.msra.mxu0 0
      %536 = vmatprep.mubr.bf16.mxu0 0
      %537 = vmatmul.mubr.bf16.gmra.mrb[0].mxu0 %v499
      %v538 = vpop.f32.mrb[0].mxu0
      %v539 = vadd.f32 0.0, %v538
      %v540 = vpop.f32.mrb[0].mxu0
      %v541 = vpop.f32.mrb[0].mxu0
      %v542 = vpop.f32.mrb[0].mxu0
      %543 = vdwg.mxu0
      %v544 = vmul.f32 %v539, 0.35355338
      %v545 = vsel %vm161, %v544, -inf
      %546 = vmax.xlane.f32.xlu0 %v545
      %v547 = vpop.xlane.xlu0 %546
      %v548 = vsub.f32 %v544, %v547
      %v549 = vmul.f32 %v548, 1.442695
      %v550 = vpow.pop %v549
      %v551 = vsel %vm161, %v550, 0.0
      %552 = vadd.xlane.f32.xlu0 %v551
      %v553 = vpop.xlane.xlu0 %552
      %v554 = vrcp.pop %v553
      %v555 = vmul.f32 %v550, %v554
      %v556 = vpack.c.bf16 %v555, %v555
      %557 = vrot.lane.b32.xlu0 %v160, 72
      %v558 = vpop.permute.xlu0 %557
      %v560 = vsel %vm161, %v556, 0
      %v563 = vsel %vm227, %v558, 0
      %565 = vmatprep.subr.bf16.mxu0 0
      %566 = vmatpush1.bf16.msra.mxu0 %v563
      %567 = vmatprep.subr.bf16.mxu0 0
      %568 = vmatpush1.bf16.msra.mxu0 0
      %569 = vmatprep.subr.bf16.mxu0 0
      %570 = vmatpush1.bf16.msra.mxu0 0
      %571 = vmatprep.subr.bf16.mxu0 0
      %572 = vmatpush1.bf16.msra.mxu0 0
      %573 = vmatprep.subr.bf16.mxu0 0
      %574 = vmatpush1.bf16.msra.mxu0 0
      %575 = vmatprep.subr.bf16.mxu0 0
      %576 = vmatpush1.bf16.msra.mxu0 0
      %577 = vmatprep.subr.bf16.mxu0 0
      %578 = vmatpush1.bf16.msra.mxu0 0
      %579 = vmatprep.subr.bf16.mxu0 0
      %580 = vmatpush1.bf16.msra.mxu0 0
      %581 = vmatprep.subr.bf16.mxu0 0
      %582 = vmatpush1.bf16.msra.mxu0 0
      %583 = vmatprep.subr.bf16.mxu0 0
      %584 = vmatpush1.bf16.msra.mxu0 0
      %585 = vmatprep.subr.bf16.mxu0 0
      %586 = vmatpush1.bf16.msra.mxu0 0
      %587 = vmatprep.subr.bf16.mxu0 0
      %588 = vmatpush1.bf16.msra.mxu0 0
      %589 = vmatprep.subr.bf16.mxu0 0
      %590 = vmatpush1.bf16.msra.mxu0 0
      %591 = vmatprep.subr.bf16.mxu0 0
      %592 = vmatpush1.bf16.msra.mxu0 0
      %593 = vmatprep.subr.bf16.mxu0 0
      %594 = vmatpush1.bf16.msra.mxu0 0
      %595 = vmatprep.subr.bf16.mxu0 0
      %596 = vmatpush1.bf16.msra.mxu0 0
      %597 = vmatprep.mubr.bf16.mxu0 0
      %598 = vmatmul.mubr.bf16.gmra.mrb[0].mxu0 %v560
      %v599 = vpop.f32.mrb[0].mxu0
      %v600 = vadd.f32 0.0, %v599
      %v601 = vpop.f32.mrb[0].mxu0
      %v602 = vpop.f32.mrb[0].mxu0
      %v603 = vpop.f32.mrb[0].mxu0
      %604 = vdwg.mxu0
      %606 = vrot.lane.b32.xlu0 %v378, 8
      %v607 = vpop.permute.xlu0 %606
      %610 = vrot.lane.b32.xlu0 %v489, 16
      %v611 = vpop.permute.xlu0 %610
      %614 = vrot.lane.b32.xlu0 %v600, 24
      %v615 = vpop.permute.xlu0 %614
      %v617 = vsel %vm161, %v266, %v607
      %vm618 = vcmask 130048
      %v619 = vsel %vm618, %v617, %v611
      %vm620 = vcmask 195584
      %v621 = vsel %vm620, %v619, %v615
      %vm622 = vcmask 261120
      %623 = vst.msk [vmem:[%s155] sm:$0xff] %vm622, %v621
      %p624 = scmp.lt.s32.totalorder %s13, 1
      %s625 = scalar_select %p624, %s13, 1
      %s626 = smul.addr %s625, 8
      %s627 = scalar_lea.vmem %s2, %s626
      // Predicated region
      $region29: #{transformer_decoder.21} parent=27 // pred_check
        %p628 = pneg %p83
      $region30: #{transformer_decoder.21} parent=27 // pred_check_branch
        %630 = sbr.rel (%p628) target = $region32
      $region31: #{transformer_decoder.21} parent=27 // pred_region
        _
      $region32: #{transformer_decoder.21} parent=27 // pred_fallthru
        _
    $region28: #{transformer_decoder.21} parent=5 // pred_fallthru
      _
    %p631 = scmp.le.s32.totalorder 2, %s8
    // Predicated region
    $region33: #{transformer_decoder.21} parent=5 // pred_check
      %p632 = pneg %p631
    $region34: #{transformer_decoder.21} parent=5 // pred_check_branch
      %634 = sbr.rel (%p632) target = $region36
    $region35: #{transformer_decoder.21} parent=5 // pred_region
      %s635 = ssub.s32 %s8, 2
      // Predicated region
      $region37: #{transformer_decoder.21} parent=35 // pred_check
        %p636 = pneg %p89
      $region38: #{transformer_decoder.21} parent=35 // pred_check_branch
        %638 = sbr.rel (%p636) target = $region40
      $region39: #{transformer_decoder.21} parent=35 // pred_region
        %p639 = scmp.lt.s32.totalorder %s14, 1
        %s640 = scalar_select %p639, %s14, 1
        %s641 = smul.addr %s640, 8
        %s642 = scalar_lea.vmem %s2, %s641
      $region40: #{transformer_decoder.21} parent=35 // pred_fallthru
        _
    $region36: #{transformer_decoder.21} parent=5 // pred_fallthru
      _
  $region6: #{transformer_decoder.21} parent=0 // loop_footer
    %s12 = sadd.s32 1, %s8
  $region7: #{transformer_decoder.21} parent=0 // loop_footer_branch
    %7 = sbr.rel target = $region3
  $region8: #{transformer_decoder.21} parent=0 // loop_exit
    _

// kernel: transformer_decoder.31
$region0: #{transformer_decoder.31}
  #allocation0 [shape = 'u32[]', space=smem, size = 0x4, offset = 0x4, fixed_abs, tag = 'smem constant byte address 0x4 - core index']
  #allocation1 [shape = 'u32[144,128]{1,0:T(1,128)}', space=vmem, size = 0x12000, scoped, tag = 'internal scratch']
  #allocation2 [shape = 'f32[8,32]{1,0:T(8,128)}', space=vmem, size = 0x1000, scoped, tag = 'scratch operand']
  %s0 = inlined_call_operand.vmem [shape: f32[16,32], index: 0, kind: input, shape index: {}]
  %s1 = inlined_call_operand.vmem [shape: bf16[32,64], index: 1, kind: input, shape index: {}]
  %s2 = inlined_call_operand.vmem [shape: f32[1,64], index: 2, kind: input, shape index: {}]
  %s3 = inlined_call_operand.vmem [shape: bf16[64,32], index: 3, kind: input, shape index: {}]
  %s4 = inlined_call_operand.vmem [shape: f32[1,32], index: 4, kind: input, shape index: {}]
  %s5 = inlined_call_operand.vmem [shape: f32[1,32], index: 5, kind: input, shape index: {}]
  %s6 = inlined_call_operand.vmem [shape: f32[1,32], index: 6, kind: input, shape index: {}]
  %s7 = inlined_call_operand.vmem [shape: f32[1,32], index: 7, kind: input, shape index: {}]
  %s8 = inlined_call_operand.vmem [shape: f32[1,32], index: 8, kind: input, shape index: {}]
  %s9 = inlined_call_operand.vmem [shape: f32[16,32], index: 9, kind: output, shape index: {}]
  %s10 = sld [smem:[#allocation0]]
  $region77: #{transformer_decoder.31} parent=0
    _
  %s12 = ssub.s32 1, %s10
  %s13 = scalar_select 0, %s12, %s10
  loop: start=0, step=1, limit=4
  $region2: #{transformer_decoder.31} parent=0 // loop_pre_header
    _
  $region3: #{transformer_decoder.31} parent=0 // loop_header
    %s15 = sphi 0, %s19
    %p16 = scmp.ge.s32.totalorder %s15, 4
    %s22 = sphi 0, %s34
    %s23 = sphi 0, %s30
    %s24 = sphi 0, %s22
    %s25 = sphi 0, %s23
    %s26 = sphi 0, %s24
    %s27 = sphi 0, %s25
    %s37 = sphi 0, %s39
    %s40 = sphi 0, %s37
    %s41 = sphi 0, %s40
    %s57 = sphi 0, %s41
    %s63 = sphi 0, %s65
    %s66 = sphi 0, %s63
    %s67 = sphi 0, %s66
    %s83 = sphi 0, %s67
    %s89 = sphi 0, %s91
    %s92 = sphi 0, %s89
    %s93 = sphi 0, %s92
    %s109 = sphi 0, %s93
    %s115 = sphi 0, %s117
    %s118 = sphi 0, %s115
    %s119 = sphi 0, %s118
    %s135 = sphi 0, %s119
    %s139 = sphi 0, %s139
    %s141 = sphi 0, %s139
    %s142 = sphi 0, %s141
    %s156 = sphi 0, %s142
    %s160 = sphi 0, %s160
    %s162 = sphi 0, %s160
    %s163 = sphi 0, %s162
    %s177 = sphi 0, %s163
    %s181 = sphi 0, %s181
    %s183 = sphi 0, %s181
    %s184 = sphi 0, %s183
    %s198 = sphi 0, %s184
    %s202 = sphi 0, %s202
    %s204 = sphi 0, %s202
    %s205 = sphi 0, %s204
    %s219 = sphi 0, %s205
    %s223 = sphi 0, %s223
    %s225 = sphi 0, %s223
    %s226 = sphi 0, %s225
    %s240 = sphi 0, %s226
    %s246 = sphi 0, %s248
    %s249 = sphi 0, %s246
    %s250 = sphi 0, %s249
    %s266 = sphi 0, %s250
  $region4: #{transformer_decoder.31} parent=0 // loop_header_branch
    %18 = sbr.rel (%p16) target = $region8
  $region5: #{transformer_decoder.31} parent=0 // loop_body
    %s20 = ssub.s32 %s15, 1
    %s21 = ssub.s32 %s15, 2
    %s28 = sadd.s32 1, %s23
    %p29 = scmp.ge.s32.totalorder %s28, 1
    %s30 = scalar_select %p29, 0, %s28
    %s31 = sadd.s32 1, %s22
    %s32 = scalar_select %p29, %s31, %s22
    %p33 = scmp.ge.s32.totalorder %s32, 2
    %s34 = scalar_select %p33, 0, %s32
    %s35 = ssub.s32 %s22, %s34
    %p36 = scmp.eq.s32.totalorder %s35, 0
    %s38 = sadd.s32 %s37, 1
    %s39 = scalar_select %p36, %s37, %s38
    %p42 = pneg %p36
    %p43 = scmp.eq.s32.totalorder %s15, 1
    %p44 = por %p42, %p43
    %p45 = scmp.ne.s32.totalorder %s37, %s40
    %p46 = scmp.eq.s32.totalorder %s15, 0
    %p47 = por %p45, %p46
    %p48 = scmp.ne.s32.totalorder %s37, %s40
    %p49 = scmp.eq.s32.totalorder %s20, 1
    %p50 = por %p48, %p49
    %p51 = scmp.ne.s32.totalorder %s40, %s41
    %p52 = scmp.eq.s32.totalorder %s20, 0
    %p53 = por %p51, %p52
    %p54 = scmp.ne.s32.totalorder %s40, %s41
    %p55 = scmp.eq.s32.totalorder %s21, 1
    %p56 = por %p54, %p55
    %p58 = scmp.ne.s32.totalorder %s41, %s57
    %p59 = scmp.eq.s32.totalorder %s21, 0
    %p60 = por %p58, %p59
    %s61 = ssub.s32 %s23, %s30
    %p62 = scmp.eq.s32.totalorder %s61, 0
    %s64 = sadd.s32 %s63, 1
    %s65 = scalar_select %p62, %s63, %s64
    %p68 = pneg %p62
    %p69 = scmp.eq.s32.totalorder %s15, 1
    %p70 = por %p68, %p69
    %p71 = scmp.ne.s32.totalorder %s63, %s66
    %p72 = scmp.eq.s32.totalorder %s15, 0
    %p73 = por %p71, %p72
    %p74 = scmp.ne.s32.totalorder %s63, %s66
    %p75 = scmp.eq.s32.totalorder %s20, 1
    %p76 = por %p74, %p75
    %p77 = scmp.ne.s32.totalorder %s66, %s67
    %p78 = scmp.eq.s32.totalorder %s20, 0
    %p79 = por %p77, %p78
    %p80 = scmp.ne.s32.totalorder %s66, %s67
    %p81 = scmp.eq.s32.totalorder %s21, 1
    %p82 = por %p80, %p81
    %p84 = scmp.ne.s32.totalorder %s67, %s83
    %p85 = scmp.eq.s32.totalorder %s21, 0
    %p86 = por %p84, %p85
    %s87 = ssub.s32 %s23, %s30
    %p88 = scmp.eq.s32.totalorder %s87, 0
    %s90 = sadd.s32 %s89, 1
    %s91 = scalar_select %p88, %s89, %s90
    %p94 = pneg %p88
    %p95 = scmp.eq.s32.totalorder %s15, 1
    %p96 = por %p94, %p95
    %p97 = scmp.ne.s32.totalorder %s89, %s92
    %p98 = scmp.eq.s32.totalorder %s15, 0
    %p99 = por %p97, %p98
    %p100 = scmp.ne.s32.totalorder %s89, %s92
    %p101 = scmp.eq.s32.totalorder %s20, 1
    %p102 = por %p100, %p101
    %p103 = scmp.ne.s32.totalorder %s92, %s93
    %p104 = scmp.eq.s32.totalorder %s20, 0
    %p105 = por %p103, %p104
    %p106 = scmp.ne.s32.totalorder %s92, %s93
    %p107 = scmp.eq.s32.totalorder %s21, 1
    %p108 = por %p106, %p107
    %p110 = scmp.ne.s32.totalorder %s93, %s109
    %p111 = scmp.eq.s32.totalorder %s21, 0
    %p112 = por %p110, %p111
    %s113 = ssub.s32 %s23, %s30
    %p114 = scmp.eq.s32.totalorder %s113, 0
    %s116 = sadd.s32 %s115, 1
    %s117 = scalar_select %p114, %s115, %s116
    %p120 = pneg %p114
    %p121 = scmp.eq.s32.totalorder %s15, 1
    %p122 = por %p120, %p121
    %p123 = scmp.ne.s32.totalorder %s115, %s118
    %p124 = scmp.eq.s32.totalorder %s15, 0
    %p125 = por %p123, %p124
    %p126 = scmp.ne.s32.totalorder %s115, %s118
    %p127 = scmp.eq.s32.totalorder %s20, 1
    %p128 = por %p126, %p127
    %p129 = scmp.ne.s32.totalorder %s118, %s119
    %p130 = scmp.eq.s32.totalorder %s20, 0
    %p131 = por %p129, %p130
    %p132 = scmp.ne.s32.totalorder %s118, %s119
    %p133 = scmp.eq.s32.totalorder %s21, 1
    %p134 = por %p132, %p133
    %p136 = scmp.ne.s32.totalorder %s119, %s135
    %p137 = scmp.eq.s32.totalorder %s21, 0
    %p138 = por %p136, %p137
    %s140 = sadd.s32 %s139, 1
    %p143 = scmp.eq.s32.totalorder %s15, 1
    %p144 = scmp.ne.s32.totalorder %s139, %s141
    %p145 = scmp.eq.s32.totalorder %s15, 0
    %p146 = por %p144, %p145
    %p147 = scmp.ne.s32.totalorder %s139, %s141
    %p148 = scmp.eq.s32.totalorder %s20, 1
    %p149 = por %p147, %p148
    %p150 = scmp.ne.s32.totalorder %s141, %s142
    %p151 = scmp.eq.s32.totalorder %s20, 0
    %p152 = por %p150, %p151
    %p153 = scmp.ne.s32.totalorder %s141, %s142
    %p154 = scmp.eq.s32.totalorder %s21, 1
    %p155 = por %p153, %p154
    %p157 = scmp.ne.s32.totalorder %s142, %s156
    %p158 = scmp.eq.s32.totalorder %s21, 0
    %p159 = por %p157, %p158
    %s161 = sadd.s32 %s160, 1
    %p164 = scmp.eq.s32.totalorder %s15, 1
    %p165 = scmp.ne.s32.totalorder %s160, %s162
    %p166 = scmp.eq.s32.totalorder %s15, 0
    %p167 = por %p165, %p166
    %p168 = scmp.ne.s32.totalorder %s160, %s162
    %p169 = scmp.eq.s32.totalorder %s20, 1
    %p170 = por %p168, %p169
    %p171 = scmp.ne.s32.totalorder %s162, %s163
    %p172 = scmp.eq.s32.totalorder %s20, 0
    %p173 = por %p171, %p172
    %p174 = scmp.ne.s32.totalorder %s162, %s163
    %p175 = scmp.eq.s32.totalorder %s21, 1
    %p176 = por %p174, %p175
    %p178 = scmp.ne.s32.totalorder %s163, %s177
    %p179 = scmp.eq.s32.totalorder %s21, 0
    %p180 = por %p178, %p179
    %s182 = sadd.s32 %s181, 1
    %p185 = scmp.eq.s32.totalorder %s15, 1
    %p186 = scmp.ne.s32.totalorder %s181, %s183
    %p187 = scmp.eq.s32.totalorder %s15, 0
    %p188 = por %p186, %p187
    %p189 = scmp.ne.s32.totalorder %s181, %s183
    %p190 = scmp.eq.s32.totalorder %s20, 1
    %p191 = por %p189, %p190
    %p192 = scmp.ne.s32.totalorder %s183, %s184
    %p193 = scmp.eq.s32.totalorder %s20, 0
    %p194 = por %p192, %p193
    %p195 = scmp.ne.s32.totalorder %s183, %s184
    %p196 = scmp.eq.s32.totalorder %s21, 1
    %p197 = por %p195, %p196
    %p199 = scmp.ne.s32.totalorder %s184, %s198
    %p200 = scmp.eq.s32.totalorder %s21, 0
    %p201 = por %p199, %p200
    %s203 = sadd.s32 %s202, 1
    %p206 = scmp.eq.s32.totalorder %s15, 1
    %p207 = scmp.ne.s32.totalorder %s202, %s204
    %p208 = scmp.eq.s32.totalorder %s15, 0
    %p209 = por %p207, %p208
    %p210 = scmp.ne.s32.totalorder %s202, %s204
    %p211 = scmp.eq.s32.totalorder %s20, 1
    %p212 = por %p210, %p211
    %p213 = scmp.ne.s32.totalorder %s204, %s205
    %p214 = scmp.eq.s32.totalorder %s20, 0
    %p215 = por %p213, %p214
    %p216 = scmp.ne.s32.totalorder %s204, %s205
    %p217 = scmp.eq.s32.totalorder %s21, 1
    %p218 = por %p216, %p217
    %p220 = scmp.ne.s32.totalorder %s205, %s219
    %p221 = scmp.eq.s32.totalorder %s21, 0
    %p222 = por %p220, %p221
    %s224 = sadd.s32 %s223, 1
    %p227 = scmp.eq.s32.totalorder %s15, 1
    %p228 = scmp.ne.s32.totalorder %s223, %s225
    %p229 = scmp.eq.s32.totalorder %s15, 0
    %p230 = por %p228, %p229
    %p231 = scmp.ne.s32.totalorder %s223, %s225
    %p232 = scmp.eq.s32.totalorder %s20, 1
    %p233 = por %p231, %p232
    %p234 = scmp.ne.s32.totalorder %s225, %s226
    %p235 = scmp.eq.s32.totalorder %s20, 0
    %p236 = por %p234, %p235
    %p237 = scmp.ne.s32.totalorder %s225, %s226
    %p238 = scmp.eq.s32.totalorder %s21, 1
    %p239 = por %p237, %p238
    %p241 = scmp.ne.s32.totalorder %s226, %s240
    %p242 = scmp.eq.s32.totalorder %s21, 0
    %p243 = por %p241, %p242
    %s244 = ssub.s32 %s22, %s34
    %p245 = scmp.eq.s32.totalorder %s244, 0
    %s247 = sadd.s32 %s246, 1
    %s248 = scalar_select %p245, %s246, %s247
    %p251 = pneg %p245
    %p252 = scmp.eq.s32.totalorder %s15, 1
    %p253 = por %p251, %p252
    %p254 = scmp.ne.s32.totalorder %s246, %s249
    %p255 = scmp.eq.s32.totalorder %s15, 0
    %p256 = por %p254, %p255
    %p257 = scmp.ne.s32.totalorder %s246, %s249
    %p258 = scmp.eq.s32.totalorder %s20, 1
    %p259 = por %p257, %p258
    %p260 = scmp.ne.s32.totalorder %s249, %s250
    %p261 = scmp.eq.s32.totalorder %s20, 0
    %p262 = por %p260, %p261
    %p263 = scmp.ne.s32.totalorder %s249, %s250
    %p264 = scmp.eq.s32.totalorder %s21, 1
    %p265 = por %p263, %p264
    %p267 = scmp.ne.s32.totalorder %s250, %s266
    %p268 = scmp.eq.s32.totalorder %s21, 0
    %p269 = por %p267, %p268
    %p270 = scmp.le.s32.totalorder 1, %s15
    %p271 = scmp.lt.s32.totalorder %s15, 3
    %p272 = pnand %p270, %p271
    %p273 = pneg %p272
    // Predicated region
    $region9: #{transformer_decoder.31} parent=5 // pred_check
      _
    $region10: #{transformer_decoder.31} parent=5 // pred_check_branch
      %275 = sbr.rel (%p272) target = $region12
    $region11: #{transformer_decoder.31} parent=5 // pred_region
      %s276 = ssub.s32 %s15, 1
      // Predicated region
      $region13: #{transformer_decoder.31} parent=11 // pred_check
        %p277 = pneg %p79
      $region14: #{transformer_decoder.31} parent=11 // pred_check_branch
        %279 = sbr.rel (%p277) target = $region16
      $region15: #{transformer_decoder.31} parent=11 // pred_region
        %p280 = scmp.lt.s32.totalorder %s25, 0
        %s281 = scalar_select %p280, %s25, 0
        %s282 = smul.addr %s281, 4
        %s283 = scalar_lea.vmem %s1, %s282
      $region16: #{transformer_decoder.31} parent=11 // pred_fallthru
        _
      // Predicated region
      $region17: #{transformer_decoder.31} parent=11 // pred_check
        %p284 = pneg %p105
      $region18: #{transformer_decoder.31} parent=11 // pred_check_branch
        %286 = sbr.rel (%p284) target = $region20
      $region19: #{transformer_decoder.31} parent=11 // pred_region
        %p287 = scmp.lt.s32.totalorder %s25, 0
        %s288 = scalar_select %p287, %s25, 0
        %s289 = scalar_lea.vmem %s2, %s288
      $region20: #{transformer_decoder.31} parent=11 // pred_fallthru
        _
      // Predicated region
      $region21: #{transformer_decoder.31} parent=11 // pred_check
        %p290 = pneg %p131
      $region22: #{transformer_decoder.31} parent=11 // pred_check_branch
        %292 = sbr.rel (%p290) target = $region24
      $region23: #{transformer_decoder.31} parent=11 // pred_region
        %s293 = smul.u32 8, %s25
        %p294 = scmp.lt.s32.totalorder %s293, 7
        %s295 = scalar_select %p294, %s293, 7
        %s296 = smul.addr %s295, 4
        %s297 = scalar_lea.vmem %s3, %s296
        %s298 = smul.u32 8, %s25
      $region24: #{transformer_decoder.31} parent=11 // pred_fallthru
        _
      // Predicated region
      $region25: #{transformer_decoder.31} parent=11 // pred_check
        %p299 = pneg %p152
      $region26: #{transformer_decoder.31} parent=11 // pred_check_branch
        %301 = sbr.rel (%p299) target = $region28
      $region27: #{transformer_decoder.31} parent=11 // pred_region
        _
      $region28: #{transformer_decoder.31} parent=11 // pred_fallthru
        _
      // Predicated region
      $region29: #{transformer_decoder.31} parent=11 // pred_check
        %p302 = pneg %p173
      $region30: #{transformer_decoder.31} parent=11 // pred_check_branch
        %304 = sbr.rel (%p302) target = $region32
      $region31: #{transformer_decoder.31} parent=11 // pred_region
        _
      $region32: #{transformer_decoder.31} parent=11 // pred_fallthru
        _
      // Predicated region
      $region33: #{transformer_decoder.31} parent=11 // pred_check
        %p305 = pneg %p194
      $region34: #{transformer_decoder.31} parent=11 // pred_check_branch
        %307 = sbr.rel (%p305) target = $region36
      $region35: #{transformer_decoder.31} parent=11 // pred_region
        _
      $region36: #{transformer_decoder.31} parent=11 // pred_fallthru
        _
      // Predicated region
      $region37: #{transformer_decoder.31} parent=11 // pred_check
        %p308 = pneg %p215
      $region38: #{transformer_decoder.31} parent=11 // pred_check_branch
        %310 = sbr.rel (%p308) target = $region40
      $region39: #{transformer_decoder.31} parent=11 // pred_region
        _
      $region40: #{transformer_decoder.31} parent=11 // pred_fallthru
        _
      // Predicated region
      $region41: #{transformer_decoder.31} parent=11 // pred_check
        %p311 = pneg %p236
      $region42: #{transformer_decoder.31} parent=11 // pred_check_branch
        %313 = sbr.rel (%p311) target = $region44
      $region43: #{transformer_decoder.31} parent=11 // pred_region
        _
      $region44: #{transformer_decoder.31} parent=11 // pred_fallthru
        _
    $region12: #{transformer_decoder.31} parent=5 // pred_fallthru
      _
    %p314 = scmp.lt.s32.totalorder %s15, 2
    // Predicated region
    $region45: #{transformer_decoder.31} parent=5 // pred_check
      %p315 = pneg %p314
    $region46: #{transformer_decoder.31} parent=5 // pred_check_branch
      %317 = sbr.rel (%p315) target = $region48
    $region47: #{transformer_decoder.31} parent=5 // pred_region
      // Predicated region
      $region49: #{transformer_decoder.31} parent=47 // pred_check
        %p318 = pneg %p47
      $region50: #{transformer_decoder.31} parent=47 // pred_check_branch
        %320 = sbr.rel (%p318) target = $region52
      $region51: #{transformer_decoder.31} parent=47 // pred_region
        %p321 = scmp.lt.s32.totalorder %s22, 1
        %s322 = scalar_select %p321, %s22, 1
        %s323 = smul.addr %s322, 8
        %s324 = scalar_lea.vmem %s0, %s323
      $region52: #{transformer_decoder.31} parent=47 // pred_fallthru
        _
    $region48: #{transformer_decoder.31} parent=5 // pred_fallthru
      _
    %p325 = scmp.le.s32.totalorder 1, %s15
    %p326 = scmp.lt.s32.totalorder %s15, 3
    %p327 = pnand %p325, %p326
    %p328 = pneg %p327
    // Predicated region
    $region53: #{transformer_decoder.31} parent=5 // pred_check
      _
    $region54: #{transformer_decoder.31} parent=5 // pred_check_branch
      %330 = sbr.rel (%p327) target = $region56
    $region55: #{transformer_decoder.31} parent=5 // pred_region
      %s331 = ssub.s32 %s15, 1
      %p332 = scmp.lt.s32.totalorder %s24, 1
      %s333 = scalar_select %p332, %s24, 1
      %s334 = smul.addr %s333, 8
      %s335 = scalar_lea.vmem %s0, %s334
      %p336 = pneg %p53
      %p337 = pneg %p50
      %p338 = scmp.lt.s32.totalorder %s25, 0
      %s339 = scalar_select %p338, %s25, 0
      %s340 = smul.addr %s339, 4
      %s341 = scalar_lea.vmem %s1, %s340
      %p342 = pneg %p79
      %p343 = pneg %p76
      %p344 = scmp.lt.s32.totalorder %s25, 0
      %s345 = scalar_select %p344, %s25, 0
      %s346 = scalar_lea.vmem %s2, %s345
      %p347 = pneg %p105
      %p348 = pneg %p102
      %s349 = smul.u32 8, %s25
      %p350 = scmp.lt.s32.totalorder %s349, 7
      %s351 = scalar_select %p350, %s349, 7
      %s352 = smul.addr %s351, 4
      %s353 = scalar_lea.vmem %s3, %s352
      %p354 = pneg %p131
      %p355 = pneg %p128
      %p356 = pneg %p152
      %p357 = pneg %p149
      %p358 = pneg %p173
      %p359 = pneg %p170
      %p360 = pneg %p194
      %p361 = pneg %p191
      %p362 = pneg %p215
      %p363 = pneg %p212
      %p364 = pneg %p236
      %p365 = pneg %p233
      %p366 = pneg %p262
      %p367 = pneg %p259
      %p368 = scmp.lt.s32.totalorder %s24, 1
      %s369 = scalar_select %p368, %s24, 1
      %s370 = smul.addr %s369, 8
      %s371 = scalar_lea.vmem %s9, %s370
      %p372 = scmp.lt.s32.totalorder %s24, 1
      %s373 = scalar_select %p372, %s24, 1
      %s374 = smul.addr %s373, 8
      %s375 = scalar_lea.vmem %s0, %s374
      %p376 = scmp.lt.s32.totalorder %s25, 0
      %s377 = scalar_select %p376, %s25, 0
      %s378 = smul.addr %s377, 4
      %s379 = scalar_lea.vmem %s1, %s378
      %p380 = scmp.lt.s32.totalorder %s25, 0
      %s381 = scalar_select %p380, %s25, 0
      %s382 = scalar_lea.vmem %s2, %s381
      %s383 = smul.u32 8, %s25
      %p384 = scmp.lt.s32.totalorder %s383, 7
      %s385 = scalar_select %p384, %s383, 7
      %s386 = smul.addr %s385, 4
      %s387 = scalar_lea.vmem %s3, %s386
      %s388 = smul.u32 8, %s25
      %p389 = scmp.lt.s32.totalorder %s24, 1
      %s390 = scalar_select %p389, %s24, 1
      %s391 = smul.addr %s390, 8
      %s392 = scalar_lea.vmem %s9, %s391
      %p394 = scmp.eq.s32.totalorder %s25, 0
      // Predicated region
      $region57: #{transformer_decoder.31} parent=55 // pred_check
        %p395 = pneg %p394
      $region58: #{transformer_decoder.31} parent=55 // pred_check_branch
        %397 = sbr.rel (%p395) target = $region60
      $region59: #{transformer_decoder.31} parent=55 // pred_region
        %vm398 = vcmask 261120
        %399 = vst.msk [vmem:[#allocation2] sm:$0xff] %vm398, 0.0
      $region60: #{transformer_decoder.31} parent=55 // pred_fallthru
        _
      %v400 = vld [vmem:[%s375] sm:$0xff]
      %v401 = vpack.c.bf16 %v400, %v400
      %v402 = vld [vmem:[%s379] sm:$0xf]
      %v403 = vld [vmem:[%s379 + $0x4] sm:$0xf]
      %v404 = vld [vmem:[%s379 + $0x8] sm:$0xf]
      %v405 = vld [vmem:[%s379 + $0xc] sm:$0xf]
      %v406 = vld [vmem:[%s382] sm:$0x1]
      %v408 = vlaneseq
      %v409 = vshrl.u32 %v408, 7
      %v410 = vsub.s32 0, %v409
      %v411 = vrot.slane %v406, %v410
      %v417 = vunpack.c.l.b16 %v402
      %v418 = vunpack.c.l.b16 %v403
      %v419 = vunpack.c.l.b16 %v404
      %v420 = vunpack.c.l.b16 %v405
      %v421 = vpack.c.b16 %v418, %v417
      %v422 = vpack.c.b16 %v420, %v419
      %vm425 = vcmask 261120
      %v427 = vsel %vm425, %v401, 0
      %429 = vmatprep.subr.bf16.mxu0 0
      %430 = vmatpush1.bf16.msra.mxu0 %v421
      %431 = vmatprep.subr.bf16.mxu0 0
      %432 = vmatpush1.bf16.msra.mxu0 %v422
      %433 = vmatprep.subr.bf16.mxu0 0
      %434 = vmatpush1.bf16.msra.mxu0 0
      %435 = vmatprep.subr.bf16.mxu0 0
      %436 = vmatpush1.bf16.msra.mxu0 0
      %437 = vmatprep.subr.bf16.mxu0 0
      %438 = vmatpush1.bf16.msra.mxu0 0
      %439 = vmatprep.subr.bf16.mxu0 0
      %440 = vmatpush1.bf16.msra.mxu0 0
      %441 = vmatprep.subr.bf16.mxu0 0
      %442 = vmatpush1.bf16.msra.mxu0 0
      %443 = vmatprep.subr.bf16.mxu0 0
      %444 = vmatpush1.bf16.msra.mxu0 0
      %445 = vmatprep.subr.bf16.mxu0 0
      %446 = vmatpush1.bf16.msra.mxu0 0
      %447 = vmatprep.subr.bf16.mxu0 0
      %448 = vmatpush1.bf16.msra.mxu0 0
      %449 = vmatprep.subr.bf16.mxu0 0
      %450 = vmatpush1.bf16.msra.mxu0 0
      %451 = vmatprep.subr.bf16.mxu0 0
      %452 = vmatpush1.bf16.msra.mxu0 0
      %453 = vmatprep.subr.bf16.mxu0 0
      %454 = vmatpush1.bf16.msra.mxu0 0
      %455 = vmatprep.subr.bf16.mxu0 0
      %456 = vmatpush1.bf16.msra.mxu0 0
      %457 = vmatprep.subr.bf16.mxu0 0
      %458 = vmatpush1.bf16.msra.mxu0 0
      %459 = vmatprep.subr.bf16.mxu0 0
      %460 = vmatpush1.bf16.msra.mxu0 0
      %461 = vmatprep.mubr.bf16.mxu0 0
      %462 = vmatmul.mubr.bf16.gmra.mrb[0].mxu0 %v427
      %v463 = vpop.f32.mrb[0].mxu0
      %v464 = vadd.f32 %v411, %v463
      %v465 = vpop.f32.mrb[0].mxu0
      %v466 = vpop.f32.mrb[0].mxu0
      %v467 = vpop.f32.mrb[0].mxu0
      %468 = vdwg.mxu0
      %v469 = vmax.f32 %v464, 0.0
      %v470 = vld [vmem:[#allocation2] sm:$0xff]
      %v471 = vpack.c.bf16 %v469, %v469
      %v472 = vld [vmem:[%s387] sm:$0xf]
      %v473 = vld [vmem:[%s387 + $0x4] sm:$0xf]
      %v474 = vld [vmem:[%s387 + $0x8] sm:$0xf]
      %v475 = vld [vmem:[%s387 + $0xc] sm:$0xf]
      %v476 = vld [vmem:[%s387 + $0x10] sm:$0xf]
      %v477 = vld [vmem:[%s387 + $0x14] sm:$0xf]
      %v478 = vld [vmem:[%s387 + $0x18] sm:$0xf]
      %v479 = vld [vmem:[%s387 + $0x1c] sm:$0xf]
      %v488 = vunpack.c.l.b16 %v472
      %v489 = vunpack.c.l.b16 %v473
      %v490 = vunpack.c.l.b16 %v474
      %v491 = vunpack.c.l.b16 %v475
      %v492 = vunpack.c.l.b16 %v476
      %v493 = vunpack.c.l.b16 %v477
      %v494 = vunpack.c.l.b16 %v478
      %v495 = vunpack.c.l.b16 %v479
      %v496 = vpack.c.b16 %v489, %v488
      %v497 = vpack.c.b16 %v491, %v490
      %v498 = vpack.c.b16 %v493, %v492
      %v499 = vpack.c.b16 %v495, %v494
      %vm504 = vcmask 523264
      %v506 = vsel %vm504, %v471, 0
      %508 = vmatprep.subr.bf16.mxu0 0
      %509 = vmatpush1.bf16.msra.mxu0 %v496
      %510 = vmatprep.subr.bf16.mxu0 0
      %511 = vmatpush1.bf16.msra.mxu0 %v497
      %512 = vmatprep.subr.bf16.mxu0 0
      %513 = vmatpush1.bf16.msra.mxu0 %v498
      %514 = vmatprep.subr.bf16.mxu0 0
      %515 = vmatpush1.bf16.msra.mxu0 %v499
      %516 = vmatprep.subr.bf16.mxu0 0
      %517 = vmatpush1.bf16.msra.mxu0 0
      %518 = vmatprep.subr.bf16.mxu0 0
      %519 = vmatpush1.bf16.msra.mxu0 0
      %520 = vmatprep.subr.bf16.mxu0 0
      %521 = vmatpush1.bf16.msra.mxu0 0
      %522 = vmatprep.subr.bf16.mxu0 0
      %523 = vmatpush1.bf16.msra.mxu0 0
      %524 = vmatprep.subr.bf16.mxu0 0
      %525 = vmatpush1.bf16.msra.mxu0 0
      %526 = vmatprep.subr.bf16.mxu0 0
      %527 = vmatpush1.bf16.msra.mxu0 0
      %528 = vmatprep.subr.bf16.mxu0 0
      %529 = vmatpush1.bf16.msra.mxu0 0
      %530 = vmatprep.subr.bf16.mxu0 0
      %531 = vmatpush1.bf16.msra.mxu0 0
      %532 = vmatprep.subr.bf16.mxu0 0
      %533 = vmatpush1.bf16.msra.mxu0 0
      %534 = vmatprep.subr.bf16.mxu0 0
      %535 = vmatpush1.bf16.msra.mxu0 0
      %536 = vmatprep.subr.bf16.mxu0 0
      %537 = vmatpush1.bf16.msra.mxu0 0
      %538 = vmatprep.subr.bf16.mxu0 0
      %539 = vmatpush1.bf16.msra.mxu0 0
      %540 = vmatprep.mubr.bf16.mxu0 0
      %541 = vmatmul.mubr.bf16.gmra.mrb[0].mxu0 %v506
      %v542 = vpop.f32.mrb[0].mxu0
      %v543 = vadd.f32 0.0, %v542
      %v544 = vpop.f32.mrb[0].mxu0
      %v545 = vpop.f32.mrb[0].mxu0
      %v546 = vpop.f32.mrb[0].mxu0
      %547 = vdwg.mxu0
      %v548 = vadd.f32 %v470, %v543
      %549 = vst.msk [vmem:[#allocation2] sm:$0xff] %vm425, %v548
      // Predicated region
      $region61: #{transformer_decoder.31} parent=55 // pred_check
        %p550 = pneg %p394
      $region62: #{transformer_decoder.31} parent=55 // pred_check_branch
        %552 = sbr.rel (%p550) target = $region64
      $region63: #{transformer_decoder.31} parent=55 // pred_region
        %v553 = vld [vmem:[#allocation2] sm:$0xff]
        %v554 = vld [vmem:[%s4] sm:$0x1]
        %v556 = vlaneseq
        %v557 = vshrl.u32 %v556, 7
        %v558 = vsub.s32 0, %v557
        %v559 = vrot.slane %v554, %v558
        %v561 = vadd.f32 %v553, %v559
        %v562 = vld [vmem:[%s375] sm:$0xff]
        %v563 = vadd.f32 %v561, %v562
        %v564 = vsel %vm425, %v563, 0.0
        %565 = vadd.xlane.f32.xlu0 %v564
        %v566 = vpop.xlane.xlu0 %565
        %v567 = vrcp.pop 32.0
        %v568 = vmul.f32 %v566, %v567
        %v569 = vsub.f32 %v563, %v568
        %v570 = vmul.f32 %v569, %v569
        %v571 = vsel %vm425, %v570, 0.0
        %572 = vadd.xlane.f32.xlu0 %v571
        %v573 = vpop.xlane.xlu0 %572
        %v574 = vmul.f32 %v573, %v567
        %v575 = vadd.f32 %v574, 1e-05
        %v576 = vrsqrt.pop %v575
        %v577 = vmul.f32 %v569, %v576
        %v578 = vld [vmem:[%s5] sm:$0x1]
        %v580 = vlaneseq
        %v581 = vshrl.u32 %v580, 7
        %v582 = vsub.s32 0, %v581
        %v583 = vrot.slane %v578, %v582
        %v585 = vmul.f32 %v577, %v583
        %v586 = vld [vmem:[%s6] sm:$0x1]
        %v588 = vlaneseq
        %v589 = vshrl.u32 %v588, 7
        %v590 = vsub.s32 0, %v589
        %v591 = vrot.slane %v586, %v590
        %v593 = vadd.f32 %v585, %v591
        %v594 = vsel %vm425, %v593, 0.0
        %595 = vadd.xlane.f32.xlu0 %v594
        %v596 = vpop.xlane.xlu0 %595
        %v597 = vmul.f32 %v596, %v567
        %v598 = vsub.f32 %v593, %v597
        %v599 = vmul.f32 %v598, %v598
        %v600 = vsel %vm425, %v599, 0.0
        %601 = vadd.xlane.f32.xlu0 %v600
        %v602 = vpop.xlane.xlu0 %601
        %v603 = vmul.f32 %v602, %v567
        %v604 = vadd.f32 %v603, 1e-05
        %v605 = vrsqrt.pop %v604
        %v606 = vmul.f32 %v598, %v605
        %v607 = vld [vmem:[%s7] sm:$0x1]
        %v609 = vlaneseq
        %v610 = vshrl.u32 %v609, 7
        %v611 = vsub.s32 0, %v610
        %v612 = vrot.slane %v607, %v611
        %v614 = vmul.f32 %v606, %v612
        %v615 = vld [vmem:[%s8] sm:$0x1]
        %v617 = vlaneseq
        %v618 = vshrl.u32 %v617, 7
        %v619 = vsub.s32 0, %v618
        %v620 = vrot.slane %v615, %v619
        %v622 = vadd.f32 %v614, %v620
        %623 = vst.msk [vmem:[%s392] sm:$0xff] %vm425, %v622
      $region64: #{transformer_decoder.31} parent=55 // pred_fallthru
        _
      %p624 = scmp.lt.s32.totalorder %s24, 1
      %s625 = scalar_select %p624, %s24, 1
      %s626 = smul.addr %s625, 8
      %s627 = scalar_lea.vmem %s9, %s626
      // Predicated region
      $region65: #{transformer_decoder.31} parent=55 // pred_check
        %p628 = pneg %p259
      $region66: #{transformer_decoder.31} parent=55 // pred_check_branch
        %630 = sbr.rel (%p628) target = $region68
      $region67: #{transformer_decoder.31} parent=55 // pred_region
        _
      $region68: #{transformer_decoder.31} parent=55 // pred_fallthru
        _
    $region56: #{transformer_decoder.31} parent=5 // pred_fallthru
      _
    %p631 = scmp.le.s32.totalorder 2, %s15
    // Predicated region
    $region69: #{transformer_decoder.31} parent=5 // pred_check
      %p632 = pneg %p631
    $region70: #{transformer_decoder.31} parent=5 // pred_check_branch
      %634 = sbr.rel (%p632) target = $region72
    $region71: #{transformer_decoder.31} parent=5 // pred_region
      %s635 = ssub.s32 %s15, 2
      // Predicated region
      $region73: #{transformer_decoder.31} parent=71 // pred_check
        %p636 = pneg %p265
      $region74: #{transformer_decoder.31} parent=71 // pred_check_branch
        %638 = sbr.rel (%p636) target = $region76
      $region75: #{transformer_decoder.31} parent=71 // pred_region
        %p639 = scmp.lt.s32.totalorder %s26, 1
        %s640 = scalar_select %p639, %s26, 1
        %s641 = smul.addr %s640, 8
        %s642 = scalar_lea.vmem %s9, %s641
      $region76: #{transformer_decoder.31} parent=71 // pred_fallthru
        _
    $region72: #{transformer_decoder.31} parent=5 // pred_fallthru
      _
  $region6: #{transformer_decoder.31} parent=0 // loop_footer
    %s19 = sadd.s32 1, %s15
  $region7: #{transformer_decoder.31} parent=0 // loop_footer_branch
    %14 = sbr.rel target = $region3
  $region8: #{transformer_decoder.31} parent=0 // loop_exit
    _

// kernel: transformer_decoder.23
$region0: #{transformer_decoder.23}
  #allocation0 [shape = 'u32[]', space=smem, size = 0x4, offset = 0x4, fixed_abs, tag = 'smem constant byte address 0x4 - core index']
  #allocation1 [shape = 'u32[144,128]{1,0:T(1,128)}', space=vmem, size = 0x12000, scoped, tag = 'internal scratch']
  #allocation2 [shape = 'f32[8,32]{1,0:T(8,128)}', space=vmem, size = 0x1000, scoped, tag = 'scratch operand']
  %s0 = inlined_call_operand.vmem [shape: f32[16,32], index: 0, kind: input, shape index: {}]
  %s1 = inlined_call_operand.vmem [shape: bf16[32,64], index: 1, kind: input, shape index: {}]
  %s2 = inlined_call_operand.vmem [shape: f32[1,64], index: 2, kind: input, shape index: {}]
  %s3 = inlined_call_operand.vmem [shape: bf16[64,32], index: 3, kind: input, shape index: {}]
  %s4 = inlined_call_operand.vmem [shape: f32[1,32], index: 4, kind: input, shape index: {}]
  %s5 = inlined_call_operand.vmem [shape: f32[1,32], index: 5, kind: input, shape index: {}]
  %s6 = inlined_call_operand.vmem [shape: f32[1,32], index: 6, kind: input, shape index: {}]
  %s7 = inlined_call_operand.vmem [shape: f32[16,32], index: 7, kind: output, shape index: {}]
  %s8 = sld [smem:[#allocation0]]
  $region69: #{transformer_decoder.23} parent=0
    _
  %s10 = ssub.s32 1, %s8
  %s11 = scalar_select 0, %s10, %s8
  loop: start=0, step=1, limit=4
  $region2: #{transformer_decoder.23} parent=0 // loop_pre_header
    _
  $region3: #{transformer_decoder.23} parent=0 // loop_header
    %s13 = sphi 0, %s17
    %p14 = scmp.ge.s32.totalorder %s13, 4
    %s20 = sphi 0, %s32
    %s21 = sphi 0, %s28
    %s22 = sphi 0, %s20
    %s23 = sphi 0, %s21
    %s24 = sphi 0, %s22
    %s25 = sphi 0, %s23
    %s35 = sphi 0, %s37
    %s38 = sphi 0, %s35
    %s39 = sphi 0, %s38
    %s55 = sphi 0, %s39
    %s61 = sphi 0, %s63
    %s64 = sphi 0, %s61
    %s65 = sphi 0, %s64
    %s81 = sphi 0, %s65
    %s87 = sphi 0, %s89
    %s90 = sphi 0, %s87
    %s91 = sphi 0, %s90
    %s107 = sphi 0, %s91
    %s113 = sphi 0, %s115
    %s116 = sphi 0, %s113
    %s117 = sphi 0, %s116
    %s133 = sphi 0, %s117
    %s137 = sphi 0, %s137
    %s139 = sphi 0, %s137
    %s140 = sphi 0, %s139
    %s154 = sphi 0, %s140
    %s158 = sphi 0, %s158
    %s160 = sphi 0, %s158
    %s161 = sphi 0, %s160
    %s175 = sphi 0, %s161
    %s179 = sphi 0, %s179
    %s181 = sphi 0, %s179
    %s182 = sphi 0, %s181
    %s196 = sphi 0, %s182
    %s202 = sphi 0, %s204
    %s205 = sphi 0, %s202
    %s206 = sphi 0, %s205
    %s222 = sphi 0, %s206
  $region4: #{transformer_decoder.23} parent=0 // loop_header_branch
    %16 = sbr.rel (%p14) target = $region8
  $region5: #{transformer_decoder.23} parent=0 // loop_body
    %s18 = ssub.s32 %s13, 1
    %s19 = ssub.s32 %s13, 2
    %s26 = sadd.s32 1, %s21
    %p27 = scmp.ge.s32.totalorder %s26, 1
    %s28 = scalar_select %p27, 0, %s26
    %s29 = sadd.s32 1, %s20
    %s30 = scalar_select %p27, %s29, %s20
    %p31 = scmp.ge.s32.totalorder %s30, 2
    %s32 = scalar_select %p31, 0, %s30
    %s33 = ssub.s32 %s20, %s32
    %p34 = scmp.eq.s32.totalorder %s33, 0
    %s36 = sadd.s32 %s35, 1
    %s37 = scalar_select %p34, %s35, %s36
    %p40 = pneg %p34
    %p41 = scmp.eq.s32.totalorder %s13, 1
    %p42 = por %p40, %p41
    %p43 = scmp.ne.s32.totalorder %s35, %s38
    %p44 = scmp.eq.s32.totalorder %s13, 0
    %p45 = por %p43, %p44
    %p46 = scmp.ne.s32.totalorder %s35, %s38
    %p47 = scmp.eq.s32.totalorder %s18, 1
    %p48 = por %p46, %p47
    %p49 = scmp.ne.s32.totalorder %s38, %s39
    %p50 = scmp.eq.s32.totalorder %s18, 0
    %p51 = por %p49, %p50
    %p52 = scmp.ne.s32.totalorder %s38, %s39
    %p53 = scmp.eq.s32.totalorder %s19, 1
    %p54 = por %p52, %p53
    %p56 = scmp.ne.s32.totalorder %s39, %s55
    %p57 = scmp.eq.s32.totalorder %s19, 0
    %p58 = por %p56, %p57
    %s59 = ssub.s32 %s21, %s28
    %p60 = scmp.eq.s32.totalorder %s59, 0
    %s62 = sadd.s32 %s61, 1
    %s63 = scalar_select %p60, %s61, %s62
    %p66 = pneg %p60
    %p67 = scmp.eq.s32.totalorder %s13, 1
    %p68 = por %p66, %p67
    %p69 = scmp.ne.s32.totalorder %s61, %s64
    %p70 = scmp.eq.s32.totalorder %s13, 0
    %p71 = por %p69, %p70
    %p72 = scmp.ne.s32.totalorder %s61, %s64
    %p73 = scmp.eq.s32.totalorder %s18, 1
    %p74 = por %p72, %p73
    %p75 = scmp.ne.s32.totalorder %s64, %s65
    %p76 = scmp.eq.s32.totalorder %s18, 0
    %p77 = por %p75, %p76
    %p78 = scmp.ne.s32.totalorder %s64, %s65
    %p79 = scmp.eq.s32.totalorder %s19, 1
    %p80 = por %p78, %p79
    %p82 = scmp.ne.s32.totalorder %s65, %s81
    %p83 = scmp.eq.s32.totalorder %s19, 0
    %p84 = por %p82, %p83
    %s85 = ssub.s32 %s21, %s28
    %p86 = scmp.eq.s32.totalorder %s85, 0
    %s88 = sadd.s32 %s87, 1
    %s89 = scalar_select %p86, %s87, %s88
    %p92 = pneg %p86
    %p93 = scmp.eq.s32.totalorder %s13, 1
    %p94 = por %p92, %p93
    %p95 = scmp.ne.s32.totalorder %s87, %s90
    %p96 = scmp.eq.s32.totalorder %s13, 0
    %p97 = por %p95, %p96
    %p98 = scmp.ne.s32.totalorder %s87, %s90
    %p99 = scmp.eq.s32.totalorder %s18, 1
    %p100 = por %p98, %p99
    %p101 = scmp.ne.s32.totalorder %s90, %s91
    %p102 = scmp.eq.s32.totalorder %s18, 0
    %p103 = por %p101, %p102
    %p104 = scmp.ne.s32.totalorder %s90, %s91
    %p105 = scmp.eq.s32.totalorder %s19, 1
    %p106 = por %p104, %p105
    %p108 = scmp.ne.s32.totalorder %s91, %s107
    %p109 = scmp.eq.s32.totalorder %s19, 0
    %p110 = por %p108, %p109
    %s111 = ssub.s32 %s21, %s28
    %p112 = scmp.eq.s32.totalorder %s111, 0
    %s114 = sadd.s32 %s113, 1
    %s115 = scalar_select %p112, %s113, %s114
    %p118 = pneg %p112
    %p119 = scmp.eq.s32.totalorder %s13, 1
    %p120 = por %p118, %p119
    %p121 = scmp.ne.s32.totalorder %s113, %s116
    %p122 = scmp.eq.s32.totalorder %s13, 0
    %p123 = por %p121, %p122
    %p124 = scmp.ne.s32.totalorder %s113, %s116
    %p125 = scmp.eq.s32.totalorder %s18, 1
    %p126 = por %p124, %p125
    %p127 = scmp.ne.s32.totalorder %s116, %s117
    %p128 = scmp.eq.s32.totalorder %s18, 0
    %p129 = por %p127, %p128
    %p130 = scmp.ne.s32.totalorder %s116, %s117
    %p131 = scmp.eq.s32.totalorder %s19, 1
    %p132 = por %p130, %p131
    %p134 = scmp.ne.s32.totalorder %s117, %s133
    %p135 = scmp.eq.s32.totalorder %s19, 0
    %p136 = por %p134, %p135
    %s138 = sadd.s32 %s137, 1
    %p141 = scmp.eq.s32.totalorder %s13, 1
    %p142 = scmp.ne.s32.totalorder %s137, %s139
    %p143 = scmp.eq.s32.totalorder %s13, 0
    %p144 = por %p142, %p143
    %p145 = scmp.ne.s32.totalorder %s137, %s139
    %p146 = scmp.eq.s32.totalorder %s18, 1
    %p147 = por %p145, %p146
    %p148 = scmp.ne.s32.totalorder %s139, %s140
    %p149 = scmp.eq.s32.totalorder %s18, 0
    %p150 = por %p148, %p149
    %p151 = scmp.ne.s32.totalorder %s139, %s140
    %p152 = scmp.eq.s32.totalorder %s19, 1
    %p153 = por %p151, %p152
    %p155 = scmp.ne.s32.totalorder %s140, %s154
    %p156 = scmp.eq.s32.totalorder %s19, 0
    %p157 = por %p155, %p156
    %s159 = sadd.s32 %s158, 1
    %p162 = scmp.eq.s32.totalorder %s13, 1
    %p163 = scmp.ne.s32.totalorder %s158, %s160
    %p164 = scmp.eq.s32.totalorder %s13, 0
    %p165 = por %p163, %p164
    %p166 = scmp.ne.s32.totalorder %s158, %s160
    %p167 = scmp.eq.s32.totalorder %s18, 1
    %p168 = por %p166, %p167
    %p169 = scmp.ne.s32.totalorder %s160, %s161
    %p170 = scmp.eq.s32.totalorder %s18, 0
    %p171 = por %p169, %p170
    %p172 = scmp.ne.s32.totalorder %s160, %s161
    %p173 = scmp.eq.s32.totalorder %s19, 1
    %p174 = por %p172, %p173
    %p176 = scmp.ne.s32.totalorder %s161, %s175
    %p177 = scmp.eq.s32.totalorder %s19, 0
    %p178 = por %p176, %p177
    %s180 = sadd.s32 %s179, 1
    %p183 = scmp.eq.s32.totalorder %s13, 1
    %p184 = scmp.ne.s32.totalorder %s179, %s181
    %p185 = scmp.eq.s32.totalorder %s13, 0
    %p186 = por %p184, %p185
    %p187 = scmp.ne.s32.totalorder %s179, %s181
    %p188 = scmp.eq.s32.totalorder %s18, 1
    %p189 = por %p187, %p188
    %p190 = scmp.ne.s32.totalorder %s181, %s182
    %p191 = scmp.eq.s32.totalorder %s18, 0
    %p192 = por %p190, %p191
    %p193 = scmp.ne.s32.totalorder %s181, %s182
    %p194 = scmp.eq.s32.totalorder %s19, 1
    %p195 = por %p193, %p194
    %p197 = scmp.ne.s32.totalorder %s182, %s196
    %p198 = scmp.eq.s32.totalorder %s19, 0
    %p199 = por %p197, %p198
    %s200 = ssub.s32 %s20, %s32
    %p201 = scmp.eq.s32.totalorder %s200, 0
    %s203 = sadd.s32 %s202, 1
    %s204 = scalar_select %p201, %s202, %s203
    %p207 = pneg %p201
    %p208 = scmp.eq.s32.totalorder %s13, 1
    %p209 = por %p207, %p208
    %p210 = scmp.ne.s32.totalorder %s202, %s205
    %p211 = scmp.eq.s32.totalorder %s13, 0
    %p212 = por %p210, %p211
    %p213 = scmp.ne.s32.totalorder %s202, %s205
    %p214 = scmp.eq.s32.totalorder %s18, 1
    %p215 = por %p213, %p214
    %p216 = scmp.ne.s32.totalorder %s205, %s206
    %p217 = scmp.eq.s32.totalorder %s18, 0
    %p218 = por %p216, %p217
    %p219 = scmp.ne.s32.totalorder %s205, %s206
    %p220 = scmp.eq.s32.totalorder %s19, 1
    %p221 = por %p219, %p220
    %p223 = scmp.ne.s32.totalorder %s206, %s222
    %p224 = scmp.eq.s32.totalorder %s19, 0
    %p225 = por %p223, %p224
    %p226 = scmp.le.s32.totalorder 1, %s13
    %p227 = scmp.lt.s32.totalorder %s13, 3
    %p228 = pnand %p226, %p227
    %p229 = pneg %p228
    // Predicated region
    $region9: #{transformer_decoder.23} parent=5 // pred_check
      _
    $region10: #{transformer_decoder.23} parent=5 // pred_check_branch
      %231 = sbr.rel (%p228) target = $region12
    $region11: #{transformer_decoder.23} parent=5 // pred_region
      %s232 = ssub.s32 %s13, 1
      // Predicated region
      $region13: #{transformer_decoder.23} parent=11 // pred_check
        %p233 = pneg %p77
      $region14: #{transformer_decoder.23} parent=11 // pred_check_branch
        %235 = sbr.rel (%p233) target = $region16
      $region15: #{transformer_decoder.23} parent=11 // pred_region
        %p236 = scmp.lt.s32.totalorder %s23, 0
        %s237 = scalar_select %p236, %s23, 0
        %s238 = smul.addr %s237, 4
        %s239 = scalar_lea.vmem %s1, %s238
      $region16: #{transformer_decoder.23} parent=11 // pred_fallthru
        _
      // Predicated region
      $region17: #{transformer_decoder.23} parent=11 // pred_check
        %p240 = pneg %p103
      $region18: #{transformer_decoder.23} parent=11 // pred_check_branch
        %242 = sbr.rel (%p240) target = $region20
      $region19: #{transformer_decoder.23} parent=11 // pred_region
        %p243 = scmp.lt.s32.totalorder %s23, 0
        %s244 = scalar_select %p243, %s23, 0
        %s245 = scalar_lea.vmem %s2, %s244
      $region20: #{transformer_decoder.23} parent=11 // pred_fallthru
        _
      // Predicated region
      $region21: #{transformer_decoder.23} parent=11 // pred_check
        %p246 = pneg %p129
      $region22: #{transformer_decoder.23} parent=11 // pred_check_branch
        %248 = sbr.rel (%p246) target = $region24
      $region23: #{transformer_decoder.23} parent=11 // pred_region
        %s249 = smul.u32 8, %s23
        %p250 = scmp.lt.s32.totalorder %s249, 7
        %s251 = scalar_select %p250, %s249, 7
        %s252 = smul.addr %s251, 4
        %s253 = scalar_lea.vmem %s3, %s252
        %s254 = smul.u32 8, %s23
      $region24: #{transformer_decoder.23} parent=11 // pred_fallthru
        _
      // Predicated region
      $region25: #{transformer_decoder.23} parent=11 // pred_check
        %p255 = pneg %p150
      $region26: #{transformer_decoder.23} parent=11 // pred_check_branch
        %257 = sbr.rel (%p255) target = $region28
      $region27: #{transformer_decoder.23} parent=11 // pred_region
        _
      $region28: #{transformer_decoder.23} parent=11 // pred_fallthru
        _
      // Predicated region
      $region29: #{transformer_decoder.23} parent=11 // pred_check
        %p258 = pneg %p171
      $region30: #{transformer_decoder.23} parent=11 // pred_check_branch
        %260 = sbr.rel (%p258) target = $region32
      $region31: #{transformer_decoder.23} parent=11 // pred_region
        _
      $region32: #{transformer_decoder.23} parent=11 // pred_fallthru
        _
      // Predicated region
      $region33: #{transformer_decoder.23} parent=11 // pred_check
        %p261 = pneg %p192
      $region34: #{transformer_decoder.23} parent=11 // pred_check_branch
        %263 = sbr.rel (%p261) target = $region36
      $region35: #{transformer_decoder.23} parent=11 // pred_region
        _
      $region36: #{transformer_decoder.23} parent=11 // pred_fallthru
        _
    $region12: #{transformer_decoder.23} parent=5 // pred_fallthru
      _
    %p264 = scmp.lt.s32.totalorder %s13, 2
    // Predicated region
    $region37: #{transformer_decoder.23} parent=5 // pred_check
      %p265 = pneg %p264
    $region38: #{transformer_decoder.23} parent=5 // pred_check_branch
      %267 = sbr.rel (%p265) target = $region40
    $region39: #{transformer_decoder.23} parent=5 // pred_region
      // Predicated region
      $region41: #{transformer_decoder.23} parent=39 // pred_check
        %p268 = pneg %p45
      $region42: #{transformer_decoder.23} parent=39 // pred_check_branch
        %270 = sbr.rel (%p268) target = $region44
      $region43: #{transformer_decoder.23} parent=39 // pred_region
        %p271 = scmp.lt.s32.totalorder %s20, 1
        %s272 = scalar_select %p271, %s20, 1
        %s273 = smul.addr %s272, 8
        %s274 = scalar_lea.vmem %s0, %s273
      $region44: #{transformer_decoder.23} parent=39 // pred_fallthru
        _
    $region40: #{transformer_decoder.23} parent=5 // pred_fallthru
      _
    %p275 = scmp.le.s32.totalorder 1, %s13
    %p276 = scmp.lt.s32.totalorder %s13, 3
    %p277 = pnand %p275, %p276
    %p278 = pneg %p277
    // Predicated region
    $region45: #{transformer_decoder.23} parent=5 // pred_check
      _
    $region46: #{transformer_decoder.23} parent=5 // pred_check_branch
      %280 = sbr.rel (%p277) target = $region48
    $region47: #{transformer_decoder.23} parent=5 // pred_region
      %s281 = ssub.s32 %s13, 1
      %p282 = scmp.lt.s32.totalorder %s22, 1
      %s283 = scalar_select %p282, %s22, 1
      %s284 = smul.addr %s283, 8
      %s285 = scalar_lea.vmem %s0, %s284
      %p286 = pneg %p51
      %p287 = pneg %p48
      %p288 = scmp.lt.s32.totalorder %s23, 0
      %s289 = scalar_select %p288, %s23, 0
      %s290 = smul.addr %s289, 4
      %s291 = scalar_lea.vmem %s1, %s290
      %p292 = pneg %p77
      %p293 = pneg %p74
      %p294 = scmp.lt.s32.totalorder %s23, 0
      %s295 = scalar_select %p294, %s23, 0
      %s296 = scalar_lea.vmem %s2, %s295
      %p297 = pneg %p103
      %p298 = pneg %p100
      %s299 = smul.u32 8, %s23
      %p300 = scmp.lt.s32.totalorder %s299, 7
      %s301 = scalar_select %p300, %s299, 7
      %s302 = smul.addr %s301, 4
      %s303 = scalar_lea.vmem %s3, %s302
      %p304 = pneg %p129
      %p305 = pneg %p126
      %p306 = pneg %p150
      %p307 = pneg %p147
      %p308 = pneg %p171
      %p309 = pneg %p168
      %p310 = pneg %p192
      %p311 = pneg %p189
      %p312 = pneg %p218
      %p313 = pneg %p215
      %p314 = scmp.lt.s32.totalorder %s22, 1
      %s315 = scalar_select %p314, %s22, 1
      %s316 = smul.addr %s315, 8
      %s317 = scalar_lea.vmem %s7, %s316
      %p318 = scmp.lt.s32.totalorder %s22, 1
      %s319 = scalar_select %p318, %s22, 1
      %s320 = smul.addr %s319, 8
      %s321 = scalar_lea.vmem %s0, %s320
      %p322 = scmp.lt.s32.totalorder %s23, 0
      %s323 = scalar_select %p322, %s23, 0
      %s324 = smul.addr %s323, 4
      %s325 = scalar_lea.vmem %s1, %s324
      %p326 = scmp.lt.s32.totalorder %s23, 0
      %s327 = scalar_select %p326, %s23, 0
      %s328 = scalar_lea.vmem %s2, %s327
      %s329 = smul.u32 8, %s23
      %p330 = scmp.lt.s32.totalorder %s329, 7
      %s331 = scalar_select %p330, %s329, 7
      %s332 = smul.addr %s331, 4
      %s333 = scalar_lea.vmem %s3, %s332
      %s334 = smul.u32 8, %s23
      %p335 = scmp.lt.s32.totalorder %s22, 1
      %s336 = scalar_select %p335, %s22, 1
      %s337 = smul.addr %s336, 8
      %s338 = scalar_lea.vmem %s7, %s337
      %p340 = scmp.eq.s32.totalorder %s23, 0
      // Predicated region
      $region49: #{transformer_decoder.23} parent=47 // pred_check
        %p341 = pneg %p340
      $region50: #{transformer_decoder.23} parent=47 // pred_check_branch
        %343 = sbr.rel (%p341) target = $region52
      $region51: #{transformer_decoder.23} parent=47 // pred_region
        %vm344 = vcmask 261120
        %345 = vst.msk [vmem:[#allocation2] sm:$0xff] %vm344, 0.0
      $region52: #{transformer_decoder.23} parent=47 // pred_fallthru
        _
      %v346 = vld [vmem:[%s321] sm:$0xff]
      %v347 = vpack.c.bf16 %v346, %v346
      %v348 = vld [vmem:[%s325] sm:$0xf]
      %v349 = vld [vmem:[%s325 + $0x4] sm:$0xf]
      %v350 = vld [vmem:[%s325 + $0x8] sm:$0xf]
      %v351 = vld [vmem:[%s325 + $0xc] sm:$0xf]
      %v352 = vld [vmem:[%s328] sm:$0x1]
      %v354 = vlaneseq
      %v355 = vshrl.u32 %v354, 7
      %v356 = vsub.s32 0, %v355
      %v357 = vrot.slane %v352, %v356
      %v363 = vunpack.c.l.b16 %v348
      %v364 = vunpack.c.l.b16 %v349
      %v365 = vunpack.c.l.b16 %v350
      %v366 = vunpack.c.l.b16 %v351
      %v367 = vpack.c.b16 %v364, %v363
      %v368 = vpack.c.b16 %v366, %v365
      %vm371 = vcmask 261120
      %v373 = vsel %vm371, %v347, 0
      %375 = vmatprep.subr.bf16.mxu0 0
      %376 = vmatpush1.bf16.msra.mxu0 %v367
      %377 = vmatprep.subr.bf16.mxu0 0
      %378 = vmatpush1.bf16.msra.mxu0 %v368
      %379 = vmatprep.subr.bf16.mxu0 0
      %380 = vmatpush1.bf16.msra.mxu0 0
      %381 = vmatprep.subr.bf16.mxu0 0
      %382 = vmatpush1.bf16.msra.mxu0 0
      %383 = vmatprep.subr.bf16.mxu0 0
      %384 = vmatpush1.bf16.msra.mxu0 0
      %385 = vmatprep.subr.bf16.mxu0 0
      %386 = vmatpush1.bf16.msra.mxu0 0
      %387 = vmatprep.subr.bf16.mxu0 0
      %388 = vmatpush1.bf16.msra.mxu0 0
      %389 = vmatprep.subr.bf16.mxu0 0
      %390 = vmatpush1.bf16.msra.mxu0 0
      %391 = vmatprep.subr.bf16.mxu0 0
      %392 = vmatpush1.bf16.msra.mxu0 0
      %393 = vmatprep.subr.bf16.mxu0 0
      %394 = vmatpush1.bf16.msra.mxu0 0
      %395 = vmatprep.subr.bf16.mxu0 0
      %396 = vmatpush1.bf16.msra.mxu0 0
      %397 = vmatprep.subr.bf16.mxu0 0
      %398 = vmatpush1.bf16.msra.mxu0 0
      %399 = vmatprep.subr.bf16.mxu0 0
      %400 = vmatpush1.bf16.msra.mxu0 0
      %401 = vmatprep.subr.bf16.mxu0 0
      %402 = vmatpush1.bf16.msra.mxu0 0
      %403 = vmatprep.subr.bf16.mxu0 0
      %404 = vmatpush1.bf16.msra.mxu0 0
      %405 = vmatprep.subr.bf16.mxu0 0
      %406 = vmatpush1.bf16.msra.mxu0 0
      %407 = vmatprep.mubr.bf16.mxu0 0
      %408 = vmatmul.mubr.bf16.gmra.mrb[0].mxu0 %v373
      %v409 = vpop.f32.mrb[0].mxu0
      %v410 = vadd.f32 %v357, %v409
      %v411 = vpop.f32.mrb[0].mxu0
      %v412 = vpop.f32.mrb[0].mxu0
      %v413 = vpop.f32.mrb[0].mxu0
      %414 = vdwg.mxu0
      %v415 = vmax.f32 %v410, 0.0
      %v416 = vld [vmem:[#allocation2] sm:$0xff]
      %v417 = vpack.c.bf16 %v415, %v415
      %v418 = vld [vmem:[%s333] sm:$0xf]
      %v419 = vld [vmem:[%s333 + $0x4] sm:$0xf]
      %v420 = vld [vmem:[%s333 + $0x8] sm:$0xf]
      %v421 = vld [vmem:[%s333 + $0xc] sm:$0xf]
      %v422 = vld [vmem:[%s333 + $0x10] sm:$0xf]
      %v423 = vld [vmem:[%s333 + $0x14] sm:$0xf]
      %v424 = vld [vmem:[%s333 + $0x18] sm:$0xf]
      %v425 = vld [vmem:[%s333 + $0x1c] sm:$0xf]
      %v434 = vunpack.c.l.b16 %v418
      %v435 = vunpack.c.l.b16 %v419
      %v436 = vunpack.c.l.b16 %v420
      %v437 = vunpack.c.l.b16 %v421
      %v438 = vunpack.c.l.b16 %v422
      %v439 = vunpack.c.l.b16 %v423
      %v440 = vunpack.c.l.b16 %v424
      %v441 = vunpack.c.l.b16 %v425
      %v442 = vpack.c.b16 %v435, %v434
      %v443 = vpack.c.b16 %v437, %v436
      %v444 = vpack.c.b16 %v439, %v438
      %v445 = vpack.c.b16 %v441, %v440
      %vm450 = vcmask 523264
      %v452 = vsel %vm450, %v417, 0
      %454 = vmatprep.subr.bf16.mxu0 0
      %455 = vmatpush1.bf16.msra.mxu0 %v442
      %456 = vmatprep.subr.bf16.mxu0 0
      %457 = vmatpush1.bf16.msra.mxu0 %v443
      %458 = vmatprep.subr.bf16.mxu0 0
      %459 = vmatpush1.bf16.msra.mxu0 %v444
      %460 = vmatprep.subr.bf16.mxu0 0
      %461 = vmatpush1.bf16.msra.mxu0 %v445
      %462 = vmatprep.subr.bf16.mxu0 0
      %463 = vmatpush1.bf16.msra.mxu0 0
      %464 = vmatprep.subr.bf16.mxu0 0
      %465 = vmatpush1.bf16.msra.mxu0 0
      %466 = vmatprep.subr.bf16.mxu0 0
      %467 = vmatpush1.bf16.msra.mxu0 0
      %468 = vmatprep.subr.bf16.mxu0 0
      %469 = vmatpush1.bf16.msra.mxu0 0
      %470 = vmatprep.subr.bf16.mxu0 0
      %471 = vmatpush1.bf16.msra.mxu0 0
      %472 = vmatprep.subr.bf16.mxu0 0
      %473 = vmatpush1.bf16.msra.mxu0 0
      %474 = vmatprep.subr.bf16.mxu0 0
      %475 = vmatpush1.bf16.msra.mxu0 0
      %476 = vmatprep.subr.bf16.mxu0 0
      %477 = vmatpush1.bf16.msra.mxu0 0
      %478 = vmatprep.subr.bf16.mxu0 0
      %479 = vmatpush1.bf16.msra.mxu0 0
      %480 = vmatprep.subr.bf16.mxu0 0
      %481 = vmatpush1.bf16.msra.mxu0 0
      %482 = vmatprep.subr.bf16.mxu0 0
      %483 = vmatpush1.bf16.msra.mxu0 0
      %484 = vmatprep.subr.bf16.mxu0 0
      %485 = vmatpush1.bf16.msra.mxu0 0
      %486 = vmatprep.mubr.bf16.mxu0 0
      %487 = vmatmul.mubr.bf16.gmra.mrb[0].mxu0 %v452
      %v488 = vpop.f32.mrb[0].mxu0
      %v489 = vadd.f32 0.0, %v488
      %v490 = vpop.f32.mrb[0].mxu0
      %v491 = vpop.f32.mrb[0].mxu0
      %v492 = vpop.f32.mrb[0].mxu0
      %493 = vdwg.mxu0
      %v494 = vadd.f32 %v416, %v489
      %495 = vst.msk [vmem:[#allocation2] sm:$0xff] %vm371, %v494
      // Predicated region
      $region53: #{transformer_decoder.23} parent=47 // pred_check
        %p496 = pneg %p340
      $region54: #{transformer_decoder.23} parent=47 // pred_check_branch
        %498 = sbr.rel (%p496) target = $region56
      $region55: #{transformer_decoder.23} parent=47 // pred_region
        %v499 = vld [vmem:[#allocation2] sm:$0xff]
        %v500 = vld [vmem:[%s4] sm:$0x1]
        %v502 = vlaneseq
        %v503 = vshrl.u32 %v502, 7
        %v504 = vsub.s32 0, %v503
        %v505 = vrot.slane %v500, %v504
        %v507 = vadd.f32 %v499, %v505
        %v508 = vld [vmem:[%s321] sm:$0xff]
        %v509 = vadd.f32 %v507, %v508
        %v510 = vsel %vm371, %v509, 0.0
        %511 = vadd.xlane.f32.xlu0 %v510
        %v512 = vpop.xlane.xlu0 %511
        %v513 = vrcp.pop 32.0
        %v514 = vmul.f32 %v512, %v513
        %v515 = vsub.f32 %v509, %v514
        %v516 = vmul.f32 %v515, %v515
        %v517 = vsel %vm371, %v516, 0.0
        %518 = vadd.xlane.f32.xlu0 %v517
        %v519 = vpop.xlane.xlu0 %518
        %v520 = vmul.f32 %v519, %v513
        %v521 = vadd.f32 %v520, 1e-05
        %v522 = vrsqrt.pop %v521
        %v523 = vmul.f32 %v515, %v522
        %v524 = vld [vmem:[%s5] sm:$0x1]
        %v526 = vlaneseq
        %v527 = vshrl.u32 %v526, 7
        %v528 = vsub.s32 0, %v527
        %v529 = vrot.slane %v524, %v528
        %v531 = vmul.f32 %v523, %v529
        %v532 = vld [vmem:[%s6] sm:$0x1]
        %v534 = vlaneseq
        %v535 = vshrl.u32 %v534, 7
        %v536 = vsub.s32 0, %v535
        %v537 = vrot.slane %v532, %v536
        %v539 = vadd.f32 %v531, %v537
        %540 = vst.msk [vmem:[%s338] sm:$0xff] %vm371, %v539
      $region56: #{transformer_decoder.23} parent=47 // pred_fallthru
        _
      %p541 = scmp.lt.s32.totalorder %s22, 1
      %s542 = scalar_select %p541, %s22, 1
      %s543 = smul.addr %s542, 8
      %s544 = scalar_lea.vmem %s7, %s543
      // Predicated region
      $region57: #{transformer_decoder.23} parent=47 // pred_check
        %p545 = pneg %p215
      $region58: #{transformer_decoder.23} parent=47 // pred_check_branch
        %547 = sbr.rel (%p545) target = $region60
      $region59: #{transformer_decoder.23} parent=47 // pred_region
        _
      $region60: #{transformer_decoder.23} parent=47 // pred_fallthru
        _
    $region48: #{transformer_decoder.23} parent=5 // pred_fallthru
      _
    %p548 = scmp.le.s32.totalorder 2, %s13
    // Predicated region
    $region61: #{transformer_decoder.23} parent=5 // pred_check
      %p549 = pneg %p548
    $region62: #{transformer_decoder.23} parent=5 // pred_check_branch
      %551 = sbr.rel (%p549) target = $region64
    $region63: #{transformer_decoder.23} parent=5 // pred_region
      %s552 = ssub.s32 %s13, 2
      // Predicated region
      $region65: #{transformer_decoder.23} parent=63 // pred_check
        %p553 = pneg %p221
      $region66: #{transformer_decoder.23} parent=63 // pred_check_branch
        %555 = sbr.rel (%p553) target = $region68
      $region67: #{transformer_decoder.23} parent=63 // pred_region
        %p556 = scmp.lt.s32.totalorder %s24, 1
        %s557 = scalar_select %p556, %s24, 1
        %s558 = smul.addr %s557, 8
        %s559 = scalar_lea.vmem %s7, %s558
      $region68: #{transformer_decoder.23} parent=63 // pred_fallthru
        _
    $region64: #{transformer_decoder.23} parent=5 // pred_fallthru
      _
  $region6: #{transformer_decoder.23} parent=0 // loop_footer
    %s17 = sadd.s32 1, %s13
  $region7: #{transformer_decoder.23} parent=0 // loop_footer_branch
    %12 = sbr.rel target = $region3
  $region8: #{transformer_decoder.23} parent=0 // loop_exit
    _

</llo_original>
